<compile_context>
chip_gen: v6e
topology: v6e:2x2x1
jax: 0.10.0
libtpu: 0.0.40
codegen_flags: <defaults>
</compile_context>

<pallas_src>
import jax
import jax.numpy as jnp
from jax import lax
from jax.experimental import pallas as pl
from jax.experimental.pallas import tpu as pltpu


EDGE_BLOCK = 512  # edges per grid step (multiple of 128; tiny graphs collapse to one step)


def _round_up(x, m):
    return ((x + m - 1) // m) * m


def _vmem_limit_bytes():
    # Generation-aware cap: v5e/v6e have 128 MiB physical VMEM, v7x only 64 MiB per TC.
    # Never ask for more than half of physical (and never more than 48 MiB).
    try:
        cap = int(pltpu.get_tpu_info().vmem_capacity_bytes)
    except Exception:
        cap = 64 * 1024 * 1024
    return int(min(cap // 2, 48 * 1024 * 1024))


def dice_gin_stack_kernel(edges_ref, eps_ref,                    # (2,TE) edge block, (L,) eps (SMEM)
                          nh_ref, w1_ref, b1_ref, w2_ref, b2_ref,  # node feats + stacked MLP params
                          out_ref,                               # (Npad, Opad) resident output
                          adj_ref):                              # (Npad, Npad) f32 adjacency scratch
    j = pl.program_id(0)

    @pl.when(j == 0)
    def _init():
        adj_ref[...] = jnp.zeros_like(adj_ref)

    n_pad = nh_ref.shape[0]
    te = edges_ref.shape[1]

    # Lane-dense edge indices: one (2, TE) int32 load per step.
    idx = edges_ref[...]
    # One-hot selectors with node ids on the sublane axis and edges on lanes.
    # Padded edge slots carry index -1 -> all-zero columns (OOB-safe, zero contribution).
    # Values are exactly 0/1, so bf16 MXU operands are lossless with f32 accumulation.
    node_ids = lax.broadcasted_iota(jnp.int32, (n_pad, te), 0)
    s_src = (idx[0:1, :] == node_ids).astype(jnp.bfloat16)       # (Npad, TE)
    s_dst = (idx[1:2, :] == node_ids).astype(jnp.bfloat16)       # (Npad, TE)

    # Adjacency-multiplicity accumulation on the MXU: A[d, s] += #edges (s -> d) in block.
    adj_ref[...] += lax.dot_general(
        s_dst, s_src, (((1,), (1,)), ((), ())),
        preferred_element_type=jnp.float32)

    @pl.when(j == pl.num_programs(0) - 1)
    def _finalize():
        num_layers = w1_ref.shape[0]                             # static
        h = nh_ref[...]                                          # f32
        for l in range(num_layers):                              # fused GIN layers (static unroll)
            # Exact f32 aggregation: nz[d] = sum_{edges s->d} h[s].
            nz = jnp.dot(adj_ref[...], h, preferred_element_type=jnp.float32)
            h = (1.0 + eps_ref[l]) * h + nz
            # 2-layer MLP: Linear -> ReLU -> Linear (operand dtype = weight dtype).
            h1 = jnp.dot(h.astype(w1_ref.dtype), w1_ref[l],
                         preferred_element_type=jnp.float32) + b1_ref[l]
            h1 = jnp.maximum(h1, 0.0)
            h = jnp.dot(h1.astype(w2_ref.dtype), w2_ref[l],
                        preferred_element_type=jnp.float32) + b2_ref[l]
            # dropout = 0.0 in the reference module -> identity, omitted.
        out_ref[...] = h.astype(out_ref.dtype)


def dice_gin_stack_forward(nh, eh, edge_index, layer_params,
                           use_bf16_mlp=True, edge_block=EDGE_BLOCK):
    """Fused forward through DICE's gnn loop (gnn_depth GIN layers).

    nh: [N, D] f32 node features; eh: edge features (GIN passes them through unchanged);
    edge_index: [2, E] int; layer_params: list of dicts with eps, w1, b1, w2, b2.
    """
    N, Din = nh.shape
    E = edge_index.shape[1]
    L = len(layer_params)
    H = layer_params[0]["w1"].shape[1]
    Dout = layer_params[0]["w2"].shape[1]
    for p in layer_params:
        assert p["w1"].shape == (Din, H) and p["w2"].shape == (H, Dout)
    if L > 1:
        assert Dout == Din  # chained layers feed output back in (DICE: hidden -> hidden)

    # Node axis padded to a multiple of 128: lane-dense adjacency slab and a full MXU
    # contraction dim for A @ h (review item for v5e's 128-wide MXU). Feature dims -> 128.
    n_pad = _round_up(max(N, 128), 128)
    d_pad = _round_up(Din, 128)
    h_pad = _round_up(H, 128)
    o_pad = _round_up(Dout, 128)

    f32 = jnp.float32
    mlp_dtype = jnp.bfloat16 if use_bf16_mlp else f32

    nh_p = jnp.zeros((n_pad, d_pad), f32).at[:N, :Din].set(nh.astype(f32))

    w1_p = jnp.zeros((L, d_pad, h_pad), f32)
    b1_p = jnp.zeros((L, 1, h_pad), f32)
    w2_p = jnp.zeros((L, h_pad, o_pad), f32)
    b2_p = jnp.zeros((L, 1, o_pad), f32)
    eps = jnp.zeros((L,), f32)
    for l, p in enumerate(layer_params):
        w1_p = w1_p.at[l, :Din, :H].set(p["w1"].astype(f32))
        b1_p = b1_p.at[l, :, :H].set(p["b1"].astype(f32).reshape(1, H))
        w2_p = w2_p.at[l, :H, :Dout].set(p["w2"].astype(f32))
        b2_p = b2_p.at[l, :, :Dout].set(p["b2"].astype(f32).reshape(1, Dout))
        eps = eps.at[l].set(p["eps"].reshape(()).astype(f32))
    w1_p = w1_p.astype(mlp_dtype)
    w2_p = w2_p.astype(mlp_dtype)

    # Lane-dense edge-index slab: (2, E_pad); padded slots hold -1 (zero selector columns).
    eb = min(edge_block, _round_up(max(E, 128), 128))   # collapse tiny graphs to one step
    e_pad = _round_up(max(E, eb), eb)
    n_blocks = e_pad // eb
    edges = jnp.full((2, e_pad), -1, jnp.int32).at[:, :E].set(edge_index.astype(jnp.int32))

    # Advisory cost estimate.
    agg_flops = 2 * e_pad * n_pad * n_pad
    per_layer_flops = (2 * n_pad * n_pad * d_pad
                       + 2 * n_pad * d_pad * h_pad
                       + 2 * n_pad * h_pad * o_pad)
    wbytes = 2 if use_bf16_mlp else 4
    bytes_accessed = (2 * e_pad * 4 + n_pad * d_pad * 4 + n_pad * o_pad * 4
                      + L * (d_pad * h_pad + h_pad * o_pad) * wbytes
                      + L * (h_pad + o_pad) * 4)
    vmem_limit = _vmem_limit_bytes()

    def build(single_buffer_resident):
        def resident(shape):
            # Constant index map -> operand is VMEM-resident across all grid steps.
            imap = lambda j, _s=shape: (0,) * len(_s)
            if single_buffer_resident:
                # Resident slabs never change between steps -> no need for double buffers.
                return pl.BlockSpec(shape, imap, pipeline_mode=pl.Buffered(1))
            return pl.BlockSpec(shape, imap)

        return pl.pallas_call(
            dice_gin_stack_kernel,
            out_shape=jax.ShapeDtypeStruct((n_pad, o_pad), f32),
            grid=(n_blocks,),
            in_specs=[
                pl.BlockSpec((2, eb), lambda j: (0, j)),             # edge-index block (lane-dense)
                pl.BlockSpec(memory_space=pltpu.MemorySpace.SMEM),   # eps per layer (scalars)
                resident((n_pad, d_pad)),                            # nh
                resident((L, d_pad, h_pad)),                         # w1 stack
                resident((L, 1, h_pad)),                             # b1 stack
                resident((L, h_pad, o_pad)),                         # w2 stack
                resident((L, 1, o_pad)),                             # b2 stack
            ],
            out_specs=resident((n_pad, o_pad)),                      # resident output slab
            scratch_shapes=[pltpu.VMEM((n_pad, n_pad), jnp.float32)],  # adjacency accumulator
            compiler_params=pltpu.CompilerParams(
                # Edge axis is a reduction into adj_ref -> must stay "arbitrary".
                # TODO(synk): add a "parallel" node-tile axis so v7x megacore gets both TCs.
                dimension_semantics=("arbitrary",),
                vmem_limit_bytes=vmem_limit,
            ),
            cost_estimate=pl.CostEstimate(
                flops=int(agg_flops + L * per_layer_flops),
                transcendentals=0,
                bytes_accessed=int(bytes_accessed),
            ),
        )

    args = (edges, eps, nh_p, w1_p, b1_p, w2_p, b2_p)
    try:
        out_p = build(True)(*args)
    except Exception:
        # pipeline_mode=pl.Buffered(1) not supported by this jax version -> default buffering.
        out_p = build(False)(*args)

    return out_p[:N, :Dout], eh


def reference_gin_stack(nh, eh, edge_index, layers):
    """Pure-JAX f32 reference of DICE's gnn loop over GINlayer forwards."""
    src, dst = edge_index[0], edge_index[1]
    h = nh
    for p in layers:
        nz = jnp.zeros_like(h).at[dst].add(h[src])
        g = (1.0 + p["eps"][0]) * h + nz
        g1 = jnp.maximum(g @ p["w1"] + p["b1"], 0.0)
        h = g1 @ p["w2"] + p["b2"]
    return h, eh


if __name__ == "__main__":
    key = jax.random.PRNGKey(0)
    N, E = 100, 1200        # nodes, edges (3 edge blocks of 512 -> exercises grid accumulation)
    HID = 32                # DICE hidden_dim: GIN layers map hidden -> hidden
    GNN_DEPTH = 2           # DICE default gnn_depth

    keys = jax.random.split(key, 4 + 4 * GNN_DEPTH)
    nh = jax.random.normal(keys[0], (N, HID), dtype=jnp.float32)
    eh = jax.random.normal(keys[1], (E, HID), dtype=jnp.float32)
    edge_index = jnp.stack([
        jax.random.randint(keys[2], (E,), 0, N),
        jax.random.randint(keys[3], (E,), 0, N),
    ]).astype(jnp.int32)

    layers = []
    for l in range(GNN_DEPTH):
        kw1, kb1, kw2, kb2 = keys[4 + 4 * l: 8 + 4 * l]
        layers.append({
            "eps": jnp.array([0.1 * (l + 1)], jnp.float32),
            "w1": jax.random.normal(kw1, (HID, HID), jnp.float32) * 0.08,
            "b1": jax.random.normal(kb1, (1, HID), jnp.float32) * 0.05,
            "w2": jax.random.normal(kw2, (HID, HID), jnp.float32) * 0.08,
            "b2": jax.random.normal(kb2, (1, HID), jnp.float32) * 0.05,
        })

    # Pallas path: all GNN_DEPTH GIN layers fused into one kernel.
    nh_k, eh_k = dice_gin_stack_forward(nh, eh, edge_index, layers)
    jax.block_until_ready(nh_k)

    # f32 reference.
    nh_r, eh_r = reference_gin_stack(nh, eh, edge_index, layers)

    max_err = float(jnp.max(jnp.abs(nh_k - nh_r)))
    # Tolerance is loose vs. the f32 reference because the MLP matmuls use bf16 MXU
    # operands (f32 accumulation), compounded over gnn_depth layers. The graph
    # aggregation itself is exact f32 (integer adjacency, f32 contraction).
    assert jnp.allclose(nh_k, nh_r, atol=1e-1, rtol=1e-1), f"mismatch, max abs err {max_err}"
    assert jnp.array_equal(eh_k, eh)

    print("KERNEL_OK")
</pallas_src>

<mosaic_0001>
module attributes {stable_mosaic.version = 11 : i64} {
  func.func @dice_gin_stack_kernel(%arg0: i32, %arg1: memref<2x512xi32, #tpu.memory_space<vmem>>, %arg2: memref<2xf32, #tpu.memory_space<smem>>, %arg3: memref<128x128xf32, #tpu.memory_space<vmem>>, %arg4: memref<2x128x128xbf16, #tpu.memory_space<vmem>>, %arg5: memref<2x1x128xf32, #tpu.memory_space<vmem>>, %arg6: memref<2x128x128xbf16, #tpu.memory_space<vmem>>, %arg7: memref<2x1x128xf32, #tpu.memory_space<vmem>>, %arg8: memref<128x128xf32, #tpu.memory_space<vmem>>, %arg9: memref<128x128xf32, #tpu.memory_space<vmem>>) attributes {dimension_semantics = [#tpu.dimension_semantics<arbitrary>], iteration_bounds = array<i64: 3>, scalar_prefetch = 0 : i64, scratch_operands = 1 : i64, tpu.core_type = #tpu.core_type<tc>, window_params = [{transform_indices = @transform_0, window_bounds = array<i64: 2, 512>}, {transform_indices = @transform_1, window_bounds = array<i64: 2>}, {pipeline_mode = #tpu.pipeline_mode<synchronous>, transform_indices = @transform_2, window_bounds = array<i64: 128, 128>}, {pipeline_mode = #tpu.pipeline_mode<synchronous>, transform_indices = @transform_3, window_bounds = array<i64: 2, 128, 128>}, {pipeline_mode = #tpu.pipeline_mode<synchronous>, transform_indices = @transform_4, window_bounds = array<i64: 2, 1, 128>}, {pipeline_mode = #tpu.pipeline_mode<synchronous>, transform_indices = @transform_5, window_bounds = array<i64: 2, 128, 128>}, {pipeline_mode = #tpu.pipeline_mode<synchronous>, transform_indices = @transform_6, window_bounds = array<i64: 2, 1, 128>}, {pipeline_mode = #tpu.pipeline_mode<synchronous>, transform_indices = @transform_7, window_bounds = array<i64: 128, 128>}]} {
    %c0_i32 = arith.constant 0 : i32
    %0 = arith.cmpi eq, %arg0, %c0_i32 : i32
    %1 = arith.extui %0 : i1 to i32
    %c0_i32_0 = arith.constant 0 : i32
    %2 = arith.cmpi ne, %1, %c0_i32_0 : i32
    scf.if %2 {
      %cst_7 = arith.constant 0.000000e+00 : f32
      %24 = vector.broadcast %cst_7 : f32 to vector<128x128xf32>
      %c0_8 = arith.constant 0 : index
      %c0_9 = arith.constant 0 : index
      %25 = vector.load %arg9[%c0_8, %c0_9] : memref<128x128xf32, #tpu.memory_space<vmem>>, vector<128x128xf32>
      tpu.vector_store %arg9[%c0_8, %c0_9], %24 {strides = array<i32>} : memref<128x128xf32, #tpu.memory_space<vmem>>, vector<128x128xf32>,
    } else {
    }
    %c0 = arith.constant 0 : index
    %c0_1 = arith.constant 0 : index
    %3 = vector.load %arg1[%c0, %c0_1] : memref<2x512xi32, #tpu.memory_space<vmem>>, vector<2x512xi32>
    %4 = tpu.iota {dimensions = array<i32: 0>} : vector<128x512xi32>
    %5 = vector.extract_strided_slice %3 {offsets = [0, 0], sizes = [1, 512], strides = [1, 1]} : vector<2x512xi32> to vector<1x512xi32>
    %6 = vector.broadcast %5 : vector<1x512xi32> to vector<128x512xi32>
    %7 = arith.cmpi eq, %6, %4 : vector<128x512xi32>
    %8 = arith.extui %7 : vector<128x512xi1> to vector<128x512xi32>
    %9 = arith.sitofp %8 : vector<128x512xi32> to vector<128x512xf32>
    %10 = arith.truncf %9 : vector<128x512xf32> to vector<128x512xbf16>
    %11 = vector.extract_strided_slice %3 {offsets = [1, 0], sizes = [1, 512], strides = [1, 1]} : vector<2x512xi32> to vector<1x512xi32>
    %12 = vector.broadcast %11 : vector<1x512xi32> to vector<128x512xi32>
    %13 = arith.cmpi eq, %12, %4 : vector<128x512xi32>
    %14 = arith.extui %13 : vector<128x512xi1> to vector<128x512xi32>
    %15 = arith.sitofp %14 : vector<128x512xi32> to vector<128x512xf32>
    %16 = arith.truncf %15 : vector<128x512xf32> to vector<128x512xbf16>
    %c0_2 = arith.constant 0 : index
    %c0_3 = arith.constant 0 : index
    %17 = vector.load %arg9[%c0_2, %c0_3] : memref<128x128xf32, #tpu.memory_space<vmem>>, vector<128x128xf32>
    %cst = arith.constant dense<0.000000e+00> : vector<128x128xf32>
    %18 = tpu.matmul %16, %10, %cst {dimension_numbers = #tpu.dot_dimension_numbers<[1], [1], [0], [0], [0, 0, 1, 0], [], []>} : vector<128x512xbf16>, vector<128x512xbf16>, vector<128x128xf32> -> vector<128x128xf32>
    %19 = arith.addf %17, %18 : vector<128x128xf32>
    %c0_4 = arith.constant 0 : index
    %c0_5 = arith.constant 0 : index
    %20 = vector.load %arg9[%c0_4, %c0_5] : memref<128x128xf32, #tpu.memory_space<vmem>>, vector<128x128xf32>
    tpu.vector_store %arg9[%c0_4, %c0_5], %19 {strides = array<i32>} : memref<128x128xf32, #tpu.memory_space<vmem>>, vector<128x128xf32>,
    %c2_i32 = arith.constant 2 : i32
    %21 = arith.cmpi eq, %arg0, %c2_i32 : i32
    %22 = arith.extui %21 : i1 to i32
    %c0_i32_6 = arith.constant 0 : i32
    %23 = arith.cmpi ne, %22, %c0_i32_6 : i32
    scf.if %23 {
      %c0_7 = arith.constant 0 : index
      %c0_8 = arith.constant 0 : index
      %24 = vector.load %arg3[%c0_7, %c0_8] : memref<128x128xf32, #tpu.memory_space<vmem>>, vector<128x128xf32>
      %c0_9 = arith.constant 0 : index
      %c0_10 = arith.constant 0 : index
      %25 = vector.load %arg9[%c0_9, %c0_10] : memref<128x128xf32, #tpu.memory_space<vmem>>, vector<128x128xf32>
      %cst_11 = arith.constant dense<0.000000e+00> : vector<128x128xf32>
      %26 = tpu.matmul %25, %24, %cst_11 {dimension_numbers = #tpu.dot_dimension_numbers<[1], [0], [0], [1], [0, 0, 1, 1], [], []>} : vector<128x128xf32>, vector<128x128xf32>, vector<128x128xf32> -> vector<128x128xf32>
      %c0_12 = arith.constant 0 : index
      %27 = memref.load %arg2[%c0_12] : memref<2xf32, #tpu.memory_space<smem>>
      %cst_13 = arith.constant 1.000000e+00 : f32
      %28 = arith.addf %cst_13, %27 : f32
      %29 = vector.broadcast %28 : f32 to vector<128x128xf32>
      %30 = arith.mulf %29, %24 : vector<128x128xf32>
      %31 = arith.addf %30, %26 : vector<128x128xf32>
      %32 = arith.truncf %31 : vector<128x128xf32> to vector<128x128xbf16>
      %c0_14 = arith.constant 0 : index
      %c0_15 = arith.constant 0 : index
      %c0_16 = arith.constant 0 : index
      %33 = vector.load %arg4[%c0_14, %c0_15, %c0_16] : memref<2x128x128xbf16, #tpu.memory_space<vmem>>, vector<1x128x128xbf16>
      %34 = vector.shape_cast %33 : vector<1x128x128xbf16> to vector<128x128xbf16>
      %cst_17 = arith.constant dense<0.000000e+00> : vector<128x128xf32>
      %35 = tpu.matmul %32, %34, %cst_17 {dimension_numbers = #tpu.dot_dimension_numbers<[1], [0], [0], [1], [0, 0, 1, 1], [], []>} : vector<128x128xbf16>, vector<128x128xbf16>, vector<128x128xf32> -> vector<128x128xf32>
      %c0_18 = arith.constant 0 : index
      %c0_19 = arith.constant 0 : index
      %c0_20 = arith.constant 0 : index
      %36 = vector.load %arg5[%c0_18, %c0_19, %c0_20] : memref<2x1x128xf32, #tpu.memory_space<vmem>>, vector<1x1x128xf32>
      %37 = vector.shape_cast %36 : vector<1x1x128xf32> to vector<1x128xf32>
      %38 = vector.broadcast %37 : vector<1x128xf32> to vector<128x128xf32>
      %39 = arith.addf %35, %38 : vector<128x128xf32>
      %cst_21 = arith.constant 0.000000e+00 : f32
      %40 = vector.broadcast %cst_21 : f32 to vector<128x128xf32>
      %41 = arith.maximumf %39, %40 : vector<128x128xf32>
      %42 = arith.truncf %41 : vector<128x128xf32> to vector<128x128xbf16>
      %c0_22 = arith.constant 0 : index
      %c0_23 = arith.constant 0 : index
      %c0_24 = arith.constant 0 : index
      %43 = vector.load %arg6[%c0_22, %c0_23, %c0_24] : memref<2x128x128xbf16, #tpu.memory_space<vmem>>, vector<1x128x128xbf16>
      %44 = vector.shape_cast %43 : vector<1x128x128xbf16> to vector<128x128xbf16>
      %cst_25 = arith.constant dense<0.000000e+00> : vector<128x128xf32>
      %45 = tpu.matmul %42, %44, %cst_25 {dimension_numbers = #tpu.dot_dimension_numbers<[1], [0], [0], [1], [0, 0, 1, 1], [], []>} : vector<128x128xbf16>, vector<128x128xbf16>, vector<128x128xf32> -> vector<128x128xf32>
      %c0_26 = arith.constant 0 : index
      %c0_27 = arith.constant 0 : index
      %c0_28 = arith.constant 0 : index
      %46 = vector.load %arg7[%c0_26, %c0_27, %c0_28] : memref<2x1x128xf32, #tpu.memory_space<vmem>>, vector<1x1x128xf32>
      %47 = vector.shape_cast %46 : vector<1x1x128xf32> to vector<1x128xf32>
      %48 = vector.broadcast %47 : vector<1x128xf32> to vector<128x128xf32>
      %49 = arith.addf %45, %48 : vector<128x128xf32>
      %c0_29 = arith.constant 0 : index
      %c0_30 = arith.constant 0 : index
      %50 = vector.load %arg9[%c0_29, %c0_30] : memref<128x128xf32, #tpu.memory_space<vmem>>, vector<128x128xf32>
      %cst_31 = arith.constant dense<0.000000e+00> : vector<128x128xf32>
      %51 = tpu.matmul %50, %49, %cst_31 {dimension_numbers = #tpu.dot_dimension_numbers<[1], [0], [0], [1], [0, 0, 1, 1], [], []>} : vector<128x128xf32>, vector<128x128xf32>, vector<128x128xf32> -> vector<128x128xf32>
      %c1 = arith.constant 1 : index
      %52 = memref.load %arg2[%c1] : memref<2xf32, #tpu.memory_space<smem>>
      %cst_32 = arith.constant 1.000000e+00 : f32
      %53 = arith.addf %cst_32, %52 : f32
      %54 = vector.broadcast %53 : f32 to vector<128x128xf32>
      %55 = arith.mulf %54, %49 : vector<128x128xf32>
      %56 = arith.addf %55, %51 : vector<128x128xf32>
      %57 = arith.truncf %56 : vector<128x128xf32> to vector<128x128xbf16>
      %c1_33 = arith.constant 1 : index
      %c0_34 = arith.constant 0 : index
      %c0_35 = arith.constant 0 : index
      %58 = vector.load %arg4[%c1_33, %c0_34, %c0_35] : memref<2x128x128xbf16, #tpu.memory_space<vmem>>, vector<1x128x128xbf16>
      %59 = vector.shape_cast %58 : vector<1x128x128xbf16> to vector<128x128xbf16>
      %cst_36 = arith.constant dense<0.000000e+00> : vector<128x128xf32>
      %60 = tpu.matmul %57, %59, %cst_36 {dimension_numbers = #tpu.dot_dimension_numbers<[1], [0], [0], [1], [0, 0, 1, 1], [], []>} : vector<128x128xbf16>, vector<128x128xbf16>, vector<128x128xf32> -> vector<128x128xf32>
      %c1_37 = arith.constant 1 : index
      %c0_38 = arith.constant 0 : index
      %c0_39 = arith.constant 0 : index
      %61 = vector.load %arg5[%c1_37, %c0_38, %c0_39] : memref<2x1x128xf32, #tpu.memory_space<vmem>>, vector<1x1x128xf32>
      %62 = vector.shape_cast %61 : vector<1x1x128xf32> to vector<1x128xf32>
      %63 = vector.broadcast %62 : vector<1x128xf32> to vector<128x128xf32>
      %64 = arith.addf %60, %63 : vector<128x128xf32>
      %cst_40 = arith.constant 0.000000e+00 : f32
      %65 = vector.broadcast %cst_40 : f32 to vector<128x128xf32>
      %66 = arith.maximumf %64, %65 : vector<128x128xf32>
      %67 = arith.truncf %66 : vector<128x128xf32> to vector<128x128xbf16>
      %c1_41 = arith.constant 1 : index
      %c0_42 = arith.constant 0 : index
      %c0_43 = arith.constant 0 : index
      %68 = vector.load %arg6[%c1_41, %c0_42, %c0_43] : memref<2x128x128xbf16, #tpu.memory_space<vmem>>, vector<1x128x128xbf16>
      %69 = vector.shape_cast %68 : vector<1x128x128xbf16> to vector<128x128xbf16>
      %cst_44 = arith.constant dense<0.000000e+00> : vector<128x128xf32>
      %70 = tpu.matmul %67, %69, %cst_44 {dimension_numbers = #tpu.dot_dimension_numbers<[1], [0], [0], [1], [0, 0, 1, 1], [], []>} : vector<128x128xbf16>, vector<128x128xbf16>, vector<128x128xf32> -> vector<128x128xf32>
      %c1_45 = arith.constant 1 : index
      %c0_46 = arith.constant 0 : index
      %c0_47 = arith.constant 0 : index
      %71 = vector.load %arg7[%c1_45, %c0_46, %c0_47] : memref<2x1x128xf32, #tpu.memory_space<vmem>>, vector<1x1x128xf32>
      %72 = vector.shape_cast %71 : vector<1x1x128xf32> to vector<1x128xf32>
      %73 = vector.broadcast %72 : vector<1x128xf32> to vector<128x128xf32>
      %74 = arith.addf %70, %73 : vector<128x128xf32>
      %c0_48 = arith.constant 0 : index
      %c0_49 = arith.constant 0 : index
      %75 = vector.load %arg8[%c0_48, %c0_49] : memref<128x128xf32, #tpu.memory_space<vmem>>, vector<128x128xf32>
      tpu.vector_store %arg8[%c0_48, %c0_49], %74 {strides = array<i32>} : memref<128x128xf32, #tpu.memory_space<vmem>>, vector<128x128xf32>,
    } else {
    }
    return
  }
  func.func @transform_0(%arg0: i32) -> (i32, i32) {
    %c0_i32 = arith.constant 0 : i32
    %c0_i32_0 = arith.constant 0 : i32
    return %c0_i32, %arg0 : i32, i32
  }
  func.func @transform_1(%arg0: i32) -> i32 {
    %c0_i32 = arith.constant 0 : i32
    %c0_i32_0 = arith.constant 0 : i32
    return %c0_i32 : i32
  }
  func.func @transform_2(%arg0: i32) -> (i32, i32) {
    %c0_i32 = arith.constant 0 : i32
    %c0_i32_0 = arith.constant 0 : i32
    %c0_i32_1 = arith.constant 0 : i32
    return %c0_i32, %c0_i32_0 : i32, i32
  }
  func.func @transform_3(%arg0: i32) -> (i32, i32, i32) {
    %c0_i32 = arith.constant 0 : i32
    %c0_i32_0 = arith.constant 0 : i32
    %c0_i32_1 = arith.constant 0 : i32
    %c0_i32_2 = arith.constant 0 : i32
    return %c0_i32, %c0_i32_0, %c0_i32_1 : i32, i32, i32
  }
  func.func @transform_4(%arg0: i32) -> (i32, i32, i32) {
    %c0_i32 = arith.constant 0 : i32
    %c0_i32_0 = arith.constant 0 : i32
    %c0_i32_1 = arith.constant 0 : i32
    %c0_i32_2 = arith.constant 0 : i32
    return %c0_i32, %c0_i32_0, %c0_i32_1 : i32, i32, i32
  }
  func.func @transform_5(%arg0: i32) -> (i32, i32, i32) {
    %c0_i32 = arith.constant 0 : i32
    %c0_i32_0 = arith.constant 0 : i32
    %c0_i32_1 = arith.constant 0 : i32
    %c0_i32_2 = arith.constant 0 : i32
    return %c0_i32, %c0_i32_0, %c0_i32_1 : i32, i32, i32
  }
  func.func @transform_6(%arg0: i32) -> (i32, i32, i32) {
    %c0_i32 = arith.constant 0 : i32
    %c0_i32_0 = arith.constant 0 : i32
    %c0_i32_1 = arith.constant 0 : i32
    %c0_i32_2 = arith.constant 0 : i32
    return %c0_i32, %c0_i32_0, %c0_i32_1 : i32, i32, i32
  }
  func.func @transform_7(%arg0: i32) -> (i32, i32) {
    %c0_i32 = arith.constant 0 : i32
    %c0_i32_0 = arith.constant 0 : i32
    %c0_i32_1 = arith.constant 0 : i32
    return %c0_i32, %c0_i32_0 : i32, i32
  }
}

module attributes {stable_mosaic.version = 11 : i64} {
  func.func @dice_gin_stack_kernel(%arg0: i32, %arg1: memref<2x512xi32, #tpu.memory_space<vmem>>, %arg2: memref<2xf32, #tpu.memory_space<smem>>, %arg3: memref<128x128xf32, #tpu.memory_space<vmem>>, %arg4: memref<2x128x128xbf16, #tpu.memory_space<vmem>>, %arg5: memref<2x1x128xf32, #tpu.memory_space<vmem>>, %arg6: memref<2x128x128xbf16, #tpu.memory_space<vmem>>, %arg7: memref<2x1x128xf32, #tpu.memory_space<vmem>>, %arg8: memref<128x128xf32, #tpu.memory_space<vmem>>, %arg9: memref<128x128xf32, #tpu.memory_space<vmem>>) attributes {dimension_semantics = [#tpu.dimension_semantics<arbitrary>], iteration_bounds = array<i64: 3>, scalar_prefetch = 0 : i64, scratch_operands = 1 : i64, tpu.core_type = #tpu.core_type<tc>, window_params = [{transform_indices = @transform_0, window_bounds = array<i64: 2, 512>}, {transform_indices = @transform_1, window_bounds = array<i64: 2>}, {pipeline_mode = #tpu.pipeline_mode<synchronous>, transform_indices = @transform_2, window_bounds = array<i64: 128, 128>}, {pipeline_mode = #tpu.pipeline_mode<synchronous>, transform_indices = @transform_3, window_bounds = array<i64: 2, 128, 128>}, {pipeline_mode = #tpu.pipeline_mode<synchronous>, transform_indices = @transform_4, window_bounds = array<i64: 2, 1, 128>}, {pipeline_mode = #tpu.pipeline_mode<synchronous>, transform_indices = @transform_5, window_bounds = array<i64: 2, 128, 128>}, {pipeline_mode = #tpu.pipeline_mode<synchronous>, transform_indices = @transform_6, window_bounds = array<i64: 2, 1, 128>}, {pipeline_mode = #tpu.pipeline_mode<synchronous>, transform_indices = @transform_7, window_bounds = array<i64: 128, 128>}]} {
    %c0_i32 = arith.constant 0 : i32
    %0 = arith.cmpi eq, %arg0, %c0_i32 : i32
    %1 = arith.extui %0 : i1 to i32
    %c0_i32_0 = arith.constant 0 : i32
    %2 = arith.cmpi ne, %1, %c0_i32_0 : i32
    scf.if %2 {
      %cst_7 = arith.constant 0.000000e+00 : f32
      %24 = vector.broadcast %cst_7 : f32 to vector<128x128xf32>
      %c0_8 = arith.constant 0 : index
      %c0_9 = arith.constant 0 : index
      %25 = vector.load %arg9[%c0_8, %c0_9] : memref<128x128xf32, #tpu.memory_space<vmem>>, vector<128x128xf32>
      tpu.vector_store %arg9[%c0_8, %c0_9], %24 {strides = array<i32>} : memref<128x128xf32, #tpu.memory_space<vmem>>, vector<128x128xf32>,
    } else {
    }
    %c0 = arith.constant 0 : index
    %c0_1 = arith.constant 0 : index
    %3 = vector.load %arg1[%c0, %c0_1] : memref<2x512xi32, #tpu.memory_space<vmem>>, vector<2x512xi32>
    %4 = tpu.iota {dimensions = array<i32: 0>} : vector<128x512xi32>
    %5 = vector.extract_strided_slice %3 {offsets = [0, 0], sizes = [1, 512], strides = [1, 1]} : vector<2x512xi32> to vector<1x512xi32>
    %6 = vector.broadcast %5 : vector<1x512xi32> to vector<128x512xi32>
    %7 = arith.cmpi eq, %6, %4 : vector<128x512xi32>
    %8 = arith.extui %7 : vector<128x512xi1> to vector<128x512xi32>
    %9 = arith.sitofp %8 : vector<128x512xi32> to vector<128x512xf32>
    %10 = arith.truncf %9 : vector<128x512xf32> to vector<128x512xbf16>
    %11 = vector.extract_strided_slice %3 {offsets = [1, 0], sizes = [1, 512], strides = [1, 1]} : vector<2x512xi32> to vector<1x512xi32>
    %12 = vector.broadcast %11 : vector<1x512xi32> to vector<128x512xi32>
    %13 = arith.cmpi eq, %12, %4 : vector<128x512xi32>
    %14 = arith.extui %13 : vector<128x512xi1> to vector<128x512xi32>
    %15 = arith.sitofp %14 : vector<128x512xi32> to vector<128x512xf32>
    %16 = arith.truncf %15 : vector<128x512xf32> to vector<128x512xbf16>
    %c0_2 = arith.constant 0 : index
    %c0_3 = arith.constant 0 : index
    %17 = vector.load %arg9[%c0_2, %c0_3] : memref<128x128xf32, #tpu.memory_space<vmem>>, vector<128x128xf32>
    %cst = arith.constant dense<0.000000e+00> : vector<128x128xf32>
    %18 = tpu.matmul %16, %10, %cst {dimension_numbers = #tpu.dot_dimension_numbers<[1], [1], [0], [0], [0, 0, 1, 0], [], []>} : vector<128x512xbf16>, vector<128x512xbf16>, vector<128x128xf32> -> vector<128x128xf32>
    %19 = arith.addf %17, %18 : vector<128x128xf32>
    %c0_4 = arith.constant 0 : index
    %c0_5 = arith.constant 0 : index
    %20 = vector.load %arg9[%c0_4, %c0_5] : memref<128x128xf32, #tpu.memory_space<vmem>>, vector<128x128xf32>
    tpu.vector_store %arg9[%c0_4, %c0_5], %19 {strides = array<i32>} : memref<128x128xf32, #tpu.memory_space<vmem>>, vector<128x128xf32>,
    %c2_i32 = arith.constant 2 : i32
    %21 = arith.cmpi eq, %arg0, %c2_i32 : i32
    %22 = arith.extui %21 : i1 to i32
    %c0_i32_6 = arith.constant 0 : i32
    %23 = arith.cmpi ne, %22, %c0_i32_6 : i32
    scf.if %23 {
      %c0_7 = arith.constant 0 : index
      %c0_8 = arith.constant 0 : index
      %24 = vector.load %arg3[%c0_7, %c0_8] : memref<128x128xf32, #tpu.memory_space<vmem>>, vector<128x128xf32>
      %c0_9 = arith.constant 0 : index
      %c0_10 = arith.constant 0 : index
      %25 = vector.load %arg9[%c0_9, %c0_10] : memref<128x128xf32, #tpu.memory_space<vmem>>, vector<128x128xf32>
      %cst_11 = arith.constant dense<0.000000e+00> : vector<128x128xf32>
      %26 = tpu.matmul %25, %24, %cst_11 {dimension_numbers = #tpu.dot_dimension_numbers<[1], [0], [0], [1], [0, 0, 1, 1], [], []>} : vector<128x128xf32>, vector<128x128xf32>, vector<128x128xf32> -> vector<128x128xf32>
      %c0_12 = arith.constant 0 : index
      %27 = memref.load %arg2[%c0_12] : memref<2xf32, #tpu.memory_space<smem>>
      %cst_13 = arith.constant 1.000000e+00 : f32
      %28 = arith.addf %cst_13, %27 : f32
      %29 = vector.broadcast %28 : f32 to vector<128x128xf32>
      %30 = arith.mulf %29, %24 : vector<128x128xf32>
      %31 = arith.addf %30, %26 : vector<128x128xf32>
      %32 = arith.truncf %31 : vector<128x128xf32> to vector<128x128xbf16>
      %c0_14 = arith.constant 0 : index
      %c0_15 = arith.constant 0 : index
      %c0_16 = arith.constant 0 : index
      %33 = vector.load %arg4[%c0_14, %c0_15, %c0_16] : memref<2x128x128xbf16, #tpu.memory_space<vmem>>, vector<1x128x128xbf16>
      %34 = vector.shape_cast %33 : vector<1x128x128xbf16> to vector<128x128xbf16>
      %cst_17 = arith.constant dense<0.000000e+00> : vector<128x128xf32>
      %35 = tpu.matmul %32, %34, %cst_17 {dimension_numbers = #tpu.dot_dimension_numbers<[1], [0], [0], [1], [0, 0, 1, 1], [], []>} : vector<128x128xbf16>, vector<128x128xbf16>, vector<128x128xf32> -> vector<128x128xf32>
      %c0_18 = arith.constant 0 : index
      %c0_19 = arith.constant 0 : index
      %c0_20 = arith.constant 0 : index
      %36 = vector.load %arg5[%c0_18, %c0_19, %c0_20] : memref<2x1x128xf32, #tpu.memory_space<vmem>>, vector<1x1x128xf32>
      %37 = vector.shape_cast %36 : vector<1x1x128xf32> to vector<1x128xf32>
      %38 = vector.broadcast %37 : vector<1x128xf32> to vector<128x128xf32>
      %39 = arith.addf %35, %38 : vector<128x128xf32>
      %cst_21 = arith.constant 0.000000e+00 : f32
      %40 = vector.broadcast %cst_21 : f32 to vector<128x128xf32>
      %41 = arith.maximumf %39, %40 : vector<128x128xf32>
      %42 = arith.truncf %41 : vector<128x128xf32> to vector<128x128xbf16>
      %c0_22 = arith.constant 0 : index
      %c0_23 = arith.constant 0 : index
      %c0_24 = arith.constant 0 : index
      %43 = vector.load %arg6[%c0_22, %c0_23, %c0_24] : memref<2x128x128xbf16, #tpu.memory_space<vmem>>, vector<1x128x128xbf16>
      %44 = vector.shape_cast %43 : vector<1x128x128xbf16> to vector<128x128xbf16>
      %cst_25 = arith.constant dense<0.000000e+00> : vector<128x128xf32>
      %45 = tpu.matmul %42, %44, %cst_25 {dimension_numbers = #tpu.dot_dimension_numbers<[1], [0], [0], [1], [0, 0, 1, 1], [], []>} : vector<128x128xbf16>, vector<128x128xbf16>, vector<128x128xf32> -> vector<128x128xf32>
      %c0_26 = arith.constant 0 : index
      %c0_27 = arith.constant 0 : index
      %c0_28 = arith.constant 0 : index
      %46 = vector.load %arg7[%c0_26, %c0_27, %c0_28] : memref<2x1x128xf32, #tpu.memory_space<vmem>>, vector<1x1x128xf32>
      %47 = vector.shape_cast %46 : vector<1x1x128xf32> to vector<1x128xf32>
      %48 = vector.broadcast %47 : vector<1x128xf32> to vector<128x128xf32>
      %49 = arith.addf %45, %48 : vector<128x128xf32>
      %c0_29 = arith.constant 0 : index
      %c0_30 = arith.constant 0 : index
      %50 = vector.load %arg9[%c0_29, %c0_30] : memref<128x128xf32, #tpu.memory_space<vmem>>, vector<128x128xf32>
      %cst_31 = arith.constant dense<0.000000e+00> : vector<128x128xf32>
      %51 = tpu.matmul %50, %49, %cst_31 {dimension_numbers = #tpu.dot_dimension_numbers<[1], [0], [0], [1], [0, 0, 1, 1], [], []>} : vector<128x128xf32>, vector<128x128xf32>, vector<128x128xf32> -> vector<128x128xf32>
      %c1 = arith.constant 1 : index
      %52 = memref.load %arg2[%c1] : memref<2xf32, #tpu.memory_space<smem>>
      %cst_32 = arith.constant 1.000000e+00 : f32
      %53 = arith.addf %cst_32, %52 : f32
      %54 = vector.broadcast %53 : f32 to vector<128x128xf32>
      %55 = arith.mulf %54, %49 : vector<128x128xf32>
      %56 = arith.addf %55, %51 : vector<128x128xf32>
      %57 = arith.truncf %56 : vector<128x128xf32> to vector<128x128xbf16>
      %c1_33 = arith.constant 1 : index
      %c0_34 = arith.constant 0 : index
      %c0_35 = arith.constant 0 : index
      %58 = vector.load %arg4[%c1_33, %c0_34, %c0_35] : memref<2x128x128xbf16, #tpu.memory_space<vmem>>, vector<1x128x128xbf16>
      %59 = vector.shape_cast %58 : vector<1x128x128xbf16> to vector<128x128xbf16>
      %cst_36 = arith.constant dense<0.000000e+00> : vector<128x128xf32>
      %60 = tpu.matmul %57, %59, %cst_36 {dimension_numbers = #tpu.dot_dimension_numbers<[1], [0], [0], [1], [0, 0, 1, 1], [], []>} : vector<128x128xbf16>, vector<128x128xbf16>, vector<128x128xf32> -> vector<128x128xf32>
      %c1_37 = arith.constant 1 : index
      %c0_38 = arith.constant 0 : index
      %c0_39 = arith.constant 0 : index
      %61 = vector.load %arg5[%c1_37, %c0_38, %c0_39] : memref<2x1x128xf32, #tpu.memory_space<vmem>>, vector<1x1x128xf32>
      %62 = vector.shape_cast %61 : vector<1x1x128xf32> to vector<1x128xf32>
      %63 = vector.broadcast %62 : vector<1x128xf32> to vector<128x128xf32>
      %64 = arith.addf %60, %63 : vector<128x128xf32>
      %cst_40 = arith.constant 0.000000e+00 : f32
      %65 = vector.broadcast %cst_40 : f32 to vector<128x128xf32>
      %66 = arith.maximumf %64, %65 : vector<128x128xf32>
      %67 = arith.truncf %66 : vector<128x128xf32> to vector<128x128xbf16>
      %c1_41 = arith.constant 1 : index
      %c0_42 = arith.constant 0 : index
      %c0_43 = arith.constant 0 : index
      %68 = vector.load %arg6[%c1_41, %c0_42, %c0_43] : memref<2x128x128xbf16, #tpu.memory_space<vmem>>, vector<1x128x128xbf16>
      %69 = vector.shape_cast %68 : vector<1x128x128xbf16> to vector<128x128xbf16>
      %cst_44 = arith.constant dense<0.000000e+00> : vector<128x128xf32>
      %70 = tpu.matmul %67, %69, %cst_44 {dimension_numbers = #tpu.dot_dimension_numbers<[1], [0], [0], [1], [0, 0, 1, 1], [], []>} : vector<128x128xbf16>, vector<128x128xbf16>, vector<128x128xf32> -> vector<128x128xf32>
      %c1_45 = arith.constant 1 : index
      %c0_46 = arith.constant 0 : index
      %c0_47 = arith.constant 0 : index
      %71 = vector.load %arg7[%c1_45, %c0_46, %c0_47] : memref<2x1x128xf32, #tpu.memory_space<vmem>>, vector<1x1x128xf32>
      %72 = vector.shape_cast %71 : vector<1x1x128xf32> to vector<1x128xf32>
      %73 = vector.broadcast %72 : vector<1x128xf32> to vector<128x128xf32>
      %74 = arith.addf %70, %73 : vector<128x128xf32>
      %c0_48 = arith.constant 0 : index
      %c0_49 = arith.constant 0 : index
      %75 = vector.load %arg8[%c0_48, %c0_49] : memref<128x128xf32, #tpu.memory_space<vmem>>, vector<128x128xf32>
      tpu.vector_store %arg8[%c0_48, %c0_49], %74 {strides = array<i32>} : memref<128x128xf32, #tpu.memory_space<vmem>>, vector<128x128xf32>,
    } else {
    }
    return
  }
  func.func @transform_0(%arg0: i32) -> (i32, i32) {
    %c0_i32 = arith.constant 0 : i32
    %c0_i32_0 = arith.constant 0 : i32
    return %c0_i32, %arg0 : i32, i32
  }
  func.func @transform_1(%arg0: i32) -> i32 {
    %c0_i32 = arith.constant 0 : i32
    %c0_i32_0 = arith.constant 0 : i32
    return %c0_i32 : i32
  }
  func.func @transform_2(%arg0: i32) -> (i32, i32) {
    %c0_i32 = arith.constant 0 : i32
    %c0_i32_0 = arith.constant 0 : i32
    %c0_i32_1 = arith.constant 0 : i32
    return %c0_i32, %c0_i32_0 : i32, i32
  }
  func.func @transform_3(%arg0: i32) -> (i32, i32, i32) {
    %c0_i32 = arith.constant 0 : i32
    %c0_i32_0 = arith.constant 0 : i32
    %c0_i32_1 = arith.constant 0 : i32
    %c0_i32_2 = arith.constant 0 : i32
    return %c0_i32, %c0_i32_0, %c0_i32_1 : i32, i32, i32
  }
  func.func @transform_4(%arg0: i32) -> (i32, i32, i32) {
    %c0_i32 = arith.constant 0 : i32
    %c0_i32_0 = arith.constant 0 : i32
    %c0_i32_1 = arith.constant 0 : i32
    %c0_i32_2 = arith.constant 0 : i32
    return %c0_i32, %c0_i32_0, %c0_i32_1 : i32, i32, i32
  }
  func.func @transform_5(%arg0: i32) -> (i32, i32, i32) {
    %c0_i32 = arith.constant 0 : i32
    %c0_i32_0 = arith.constant 0 : i32
    %c0_i32_1 = arith.constant 0 : i32
    %c0_i32_2 = arith.constant 0 : i32
    return %c0_i32, %c0_i32_0, %c0_i32_1 : i32, i32, i32
  }
  func.func @transform_6(%arg0: i32) -> (i32, i32, i32) {
    %c0_i32 = arith.constant 0 : i32
    %c0_i32_0 = arith.constant 0 : i32
    %c0_i32_1 = arith.constant 0 : i32
    %c0_i32_2 = arith.constant 0 : i32
    return %c0_i32, %c0_i32_0, %c0_i32_1 : i32, i32, i32
  }
  func.func @transform_7(%arg0: i32) -> (i32, i32) {
    %c0_i32 = arith.constant 0 : i32
    %c0_i32_0 = arith.constant 0 : i32
    %c0_i32_1 = arith.constant 0 : i32
    return %c0_i32, %c0_i32_0 : i32, i32
  }
}

</mosaic_0001>

<llo_original>
// kernel: tpu_custom_call.1
$region0: #{tpu_custom_call.1}
  #allocation0 [shape = 'u32[]', space=smem, size = 0x4, offset = 0x4, fixed_abs, tag = 'smem constant byte address 0x4 - core index']
  #allocation1 [shape = 'u32[144,128]{1,0:T(1,128)}', space=vmem, size = 0x12000, scoped, tag = 'internal scratch']
  #allocation2 [shape = 'f32[128,128]{1,0:T(8,128)}', space=vmem, size = 0x10000, scoped, tag = 'scratch operand']
  %s0 = inlined_call_operand.hbm [shape: s32[2,1536], index: 0, kind: input, shape index: {}]
  %s1 = inlined_call_operand.vmem [shape: f32[2], index: 1, kind: input, shape index: {}]
  %s2 = inlined_call_operand.hbm [shape: f32[128,128], index: 2, kind: input, shape index: {}]
  %s3 = inlined_call_operand.hbm [shape: bf16[2,128,128], index: 3, kind: input, shape index: {}]
  %s4 = inlined_call_operand.vmem [shape: f32[2,1,128], index: 4, kind: input, shape index: {}]
  %s5 = inlined_call_operand.hbm [shape: bf16[2,128,128], index: 5, kind: input, shape index: {}]
  %s6 = inlined_call_operand.vmem [shape: f32[2,1,128], index: 6, kind: input, shape index: {}]
  %s7 = inlined_call_operand.hbm [shape: f32[128,128], index: 7, kind: output, shape index: {}]
  %s8 = sld [smem:[#allocation0]]
  $region89: #{tpu_custom_call.1} parent=0
    _
  %s10 = ssub.s32 1, %s8
  %s11 = scalar_select 0, %s10, %s8
  $region1: #{tpu_custom_call.1} parent=0
    #allocation3 [shape = 'u8[8192]{0}', space=vmem, size = 0x2000, scoped, tag = 'input window, operand 0']
    #allocation4 [shape = 's32[2]{0}', space=sflag, size = 0x8, scoped, tag = 'scoped memory for tpu_custom_call.1']
    #allocation5 [shape = 's32[2]{0}', space=sflag, size = 0x8, scoped, tag = 'scoped memory for tpu_custom_call.1']
    #allocation6 [shape = 's32[2]{0}', space=sflag, size = 0x8, scoped, tag = 'scoped memory for tpu_custom_call.1']
    #allocation7 [shape = 'u8[512]{0}', space=smem, size = 0x200, scoped, tag = 'input window, operand 1, single buffered']
    #allocation8 [shape = 'u8[65536]{0}', space=vmem, size = 0x10000, scoped, tag = 'input window, operand 2, single buffered']
    #allocation9 [shape = 's32[1]{0}', space=sflag, size = 0x4, scoped, tag = 'scoped memory for tpu_custom_call.1']
    #allocation10 [shape = 'u8[65536]{0}', space=vmem, size = 0x10000, scoped, tag = 'input window, operand 3, single buffered']
    #allocation11 [shape = 'u8[65536]{0}', space=vmem, size = 0x10000, scoped, tag = 'input window, operand 5, single buffered']
    #allocation12 [shape = 's32[1]{0}', space=sflag, size = 0x4, scoped, tag = 'scoped memory for tpu_custom_call.1']
    #allocation13 [shape = 'u8[65536]{0}', space=vmem, size = 0x10000, scoped, tag = 'output window, operand 0, single buffered']
    %12 = vsyncpa [#allocation4], 0
    %s13 = scalar_lea.sflag [#allocation4], 1
    %14 = vsyncpa %s13, 0
    %15 = vsyncpa [#allocation6], 0
    %16 = vsyncpa [#allocation9], 0
    %17 = vsyncpa [#allocation12], 0
    %18 = vsyncpa [#allocation5], 0
    loop: start=0, step=1, limit=5
    $region2: #{tpu_custom_call.1} parent=1 // loop_pre_header
      _
    $region3: #{tpu_custom_call.1} parent=1 // loop_header
      %s20 = sphi 0, %s24
      %p21 = scmp.ge.s32.totalorder %s20, 5
      %s30 = sphi 0, %s32
      %s33 = sphi 0, %s30
      %s34 = sphi 0, %s33
      %s50 = sphi 0, %s34
      %s54 = sphi 0, %s54
      %s56 = sphi 0, %s54
      %s57 = sphi 0, %s56
      %s71 = sphi 0, %s57
      %s75 = sphi 0, %s75
      %s77 = sphi 0, %s75
      %s78 = sphi 0, %s77
      %s92 = sphi 0, %s78
      %s96 = sphi 0, %s96
      %s98 = sphi 0, %s96
      %s99 = sphi 0, %s98
      %s113 = sphi 0, %s99
      %s117 = sphi 0, %s117
      %s119 = sphi 0, %s117
      %s120 = sphi 0, %s119
      %s134 = sphi 0, %s120
      %s138 = sphi 0, %s138
      %s140 = sphi 0, %s138
      %s141 = sphi 0, %s140
      %s155 = sphi 0, %s141
      %s159 = sphi 0, %s159
      %s161 = sphi 0, %s159
      %s162 = sphi 0, %s161
      %s176 = sphi 0, %s162
      %s180 = sphi 0, %s180
      %s182 = sphi 0, %s180
      %s183 = sphi 0, %s182
      %s197 = sphi 0, %s183
    $region4: #{tpu_custom_call.1} parent=1 // loop_header_branch
      %23 = sbr.rel (%p21) target = $region8
    $region5: #{tpu_custom_call.1} parent=1 // loop_body
      %s25 = ssub.s32 %s20, 1
      %s26 = ssub.s32 %s20, 2
      %s27 = sadd.s32 %s20, 1
      %s28 = ssub.s32 %s20, %s27
      %p29 = scmp.eq.s32.totalorder %s28, 0
      %s31 = sadd.s32 %s30, 1
      %s32 = scalar_select %p29, %s30, %s31
      %p35 = pneg %p29
      %p36 = scmp.eq.s32.totalorder %s20, 2
      %p37 = por %p35, %p36
      %p38 = scmp.ne.s32.totalorder %s30, %s33
      %p39 = scmp.eq.s32.totalorder %s20, 0
      %p40 = por %p38, %p39
      %p41 = scmp.ne.s32.totalorder %s30, %s33
      %p42 = scmp.eq.s32.totalorder %s25, 2
      %p43 = por %p41, %p42
      %p44 = scmp.ne.s32.totalorder %s33, %s34
      %p45 = scmp.eq.s32.totalorder %s25, 0
      %p46 = por %p44, %p45
      %p47 = scmp.ne.s32.totalorder %s33, %s34
      %p48 = scmp.eq.s32.totalorder %s26, 2
      %p49 = por %p47, %p48
      %p51 = scmp.ne.s32.totalorder %s34, %s50
      %p52 = scmp.eq.s32.totalorder %s26, 0
      %p53 = por %p51, %p52
      %s55 = sadd.s32 %s54, 1
      %p58 = scmp.eq.s32.totalorder %s20, 2
      %p59 = scmp.ne.s32.totalorder %s54, %s56
      %p60 = scmp.eq.s32.totalorder %s20, 0
      %p61 = por %p59, %p60
      %p62 = scmp.ne.s32.totalorder %s54, %s56
      %p63 = scmp.eq.s32.totalorder %s25, 2
      %p64 = por %p62, %p63
      %p65 = scmp.ne.s32.totalorder %s56, %s57
      %p66 = scmp.eq.s32.totalorder %s25, 0
      %p67 = por %p65, %p66
      %p68 = scmp.ne.s32.totalorder %s56, %s57
      %p69 = scmp.eq.s32.totalorder %s26, 2
      %p70 = por %p68, %p69
      %p72 = scmp.ne.s32.totalorder %s57, %s71
      %p73 = scmp.eq.s32.totalorder %s26, 0
      %p74 = por %p72, %p73
      %s76 = sadd.s32 %s75, 1
      %p79 = scmp.eq.s32.totalorder %s20, 2
      %p80 = scmp.ne.s32.totalorder %s75, %s77
      %p81 = scmp.eq.s32.totalorder %s20, 0
      %p82 = por %p80, %p81
      %p83 = scmp.ne.s32.totalorder %s75, %s77
      %p84 = scmp.eq.s32.totalorder %s25, 2
      %p85 = por %p83, %p84
      %p86 = scmp.ne.s32.totalorder %s77, %s78
      %p87 = scmp.eq.s32.totalorder %s25, 0
      %p88 = por %p86, %p87
      %p89 = scmp.ne.s32.totalorder %s77, %s78
      %p90 = scmp.eq.s32.totalorder %s26, 2
      %p91 = por %p89, %p90
      %p93 = scmp.ne.s32.totalorder %s78, %s92
      %p94 = scmp.eq.s32.totalorder %s26, 0
      %p95 = por %p93, %p94
      %s97 = sadd.s32 %s96, 1
      %p100 = scmp.eq.s32.totalorder %s20, 2
      %p101 = scmp.ne.s32.totalorder %s96, %s98
      %p102 = scmp.eq.s32.totalorder %s20, 0
      %p103 = por %p101, %p102
      %p104 = scmp.ne.s32.totalorder %s96, %s98
      %p105 = scmp.eq.s32.totalorder %s25, 2
      %p106 = por %p104, %p105
      %p107 = scmp.ne.s32.totalorder %s98, %s99
      %p108 = scmp.eq.s32.totalorder %s25, 0
      %p109 = por %p107, %p108
      %p110 = scmp.ne.s32.totalorder %s98, %s99
      %p111 = scmp.eq.s32.totalorder %s26, 2
      %p112 = por %p110, %p111
      %p114 = scmp.ne.s32.totalorder %s99, %s113
      %p115 = scmp.eq.s32.totalorder %s26, 0
      %p116 = por %p114, %p115
      %s118 = sadd.s32 %s117, 1
      %p121 = scmp.eq.s32.totalorder %s20, 2
      %p122 = scmp.ne.s32.totalorder %s117, %s119
      %p123 = scmp.eq.s32.totalorder %s20, 0
      %p124 = por %p122, %p123
      %p125 = scmp.ne.s32.totalorder %s117, %s119
      %p126 = scmp.eq.s32.totalorder %s25, 2
      %p127 = por %p125, %p126
      %p128 = scmp.ne.s32.totalorder %s119, %s120
      %p129 = scmp.eq.s32.totalorder %s25, 0
      %p130 = por %p128, %p129
      %p131 = scmp.ne.s32.totalorder %s119, %s120
      %p132 = scmp.eq.s32.totalorder %s26, 2
      %p133 = por %p131, %p132
      %p135 = scmp.ne.s32.totalorder %s120, %s134
      %p136 = scmp.eq.s32.totalorder %s26, 0
      %p137 = por %p135, %p136
      %s139 = sadd.s32 %s138, 1
      %p142 = scmp.eq.s32.totalorder %s20, 2
      %p143 = scmp.ne.s32.totalorder %s138, %s140
      %p144 = scmp.eq.s32.totalorder %s20, 0
      %p145 = por %p143, %p144
      %p146 = scmp.ne.s32.totalorder %s138, %s140
      %p147 = scmp.eq.s32.totalorder %s25, 2
      %p148 = por %p146, %p147
      %p149 = scmp.ne.s32.totalorder %s140, %s141
      %p150 = scmp.eq.s32.totalorder %s25, 0
      %p151 = por %p149, %p150
      %p152 = scmp.ne.s32.totalorder %s140, %s141
      %p153 = scmp.eq.s32.totalorder %s26, 2
      %p154 = por %p152, %p153
      %p156 = scmp.ne.s32.totalorder %s141, %s155
      %p157 = scmp.eq.s32.totalorder %s26, 0
      %p158 = por %p156, %p157
      %s160 = sadd.s32 %s159, 1
      %p163 = scmp.eq.s32.totalorder %s20, 2
      %p164 = scmp.ne.s32.totalorder %s159, %s161
      %p165 = scmp.eq.s32.totalorder %s20, 0
      %p166 = por %p164, %p165
      %p167 = scmp.ne.s32.totalorder %s159, %s161
      %p168 = scmp.eq.s32.totalorder %s25, 2
      %p169 = por %p167, %p168
      %p170 = scmp.ne.s32.totalorder %s161, %s162
      %p171 = scmp.eq.s32.totalorder %s25, 0
      %p172 = por %p170, %p171
      %p173 = scmp.ne.s32.totalorder %s161, %s162
      %p174 = scmp.eq.s32.totalorder %s26, 2
      %p175 = por %p173, %p174
      %p177 = scmp.ne.s32.totalorder %s162, %s176
      %p178 = scmp.eq.s32.totalorder %s26, 0
      %p179 = por %p177, %p178
      %s181 = sadd.s32 %s180, 1
      %p184 = scmp.eq.s32.totalorder %s20, 2
      %p185 = scmp.ne.s32.totalorder %s180, %s182
      %p186 = scmp.eq.s32.totalorder %s20, 0
      %p187 = por %p185, %p186
      %p188 = scmp.ne.s32.totalorder %s180, %s182
      %p189 = scmp.eq.s32.totalorder %s25, 2
      %p190 = por %p188, %p189
      %p191 = scmp.ne.s32.totalorder %s182, %s183
      %p192 = scmp.eq.s32.totalorder %s25, 0
      %p193 = por %p191, %p192
      %p194 = scmp.ne.s32.totalorder %s182, %s183
      %p195 = scmp.eq.s32.totalorder %s26, 2
      %p196 = por %p194, %p195
      %p198 = scmp.ne.s32.totalorder %s183, %s197
      %p199 = scmp.eq.s32.totalorder %s26, 0
      %p200 = por %p198, %p199
      %p201 = scmp.le.s32.totalorder 1, %s20
      %p202 = scmp.lt.s32.totalorder %s20, 4
      %p203 = pnand %p201, %p202
      %p204 = pneg %p203
      // Predicated region
      $region9: #{tpu_custom_call.1} parent=5 // pred_check
        _
      $region10: #{tpu_custom_call.1} parent=5 // pred_check_branch
        %206 = sbr.rel (%p203) target = $region12
      $region11: #{tpu_custom_call.1} parent=5 // pred_region
        %s207 = ssub.s32 %s20, 1
        // Predicated region
        $region13: #{tpu_custom_call.1} parent=11 // pred_check
          %p208 = pneg %p67
        $region14: #{tpu_custom_call.1} parent=11 // pred_check_branch
          %210 = sbr.rel (%p208) target = $region16
        $region15: #{tpu_custom_call.1} parent=11 // pred_region
          %s212 = ssub.s32 16, 16
          %213 = vsyncadd [#allocation6], %s212
          %s215 = sshll.u32 %s1, 4
          %s216 = int_to_ptr.vmem [resolvable:$true] %s215
          %218 = dma.vmem_to_smem %s216, 16, [#allocation7], [#allocation6]
        $region16: #{tpu_custom_call.1} parent=11 // pred_fallthru
          _
        // Predicated region
        $region17: #{tpu_custom_call.1} parent=11 // pred_check
          %p219 = pneg %p88
        $region18: #{tpu_custom_call.1} parent=11 // pred_check_branch
          %221 = sbr.rel (%p219) target = $region20
        $region19: #{tpu_custom_call.1} parent=11 // pred_region
          %s223 = ssub.s32 2048, 2048
          %224 = vsyncadd [#allocation9], %s223
          %s225 = sshll.u32 [#allocation8], 4
          %s226 = int_to_ptr.vmem [resolvable:$true] %s225
          %231 = dma.hbm_to_vmem [thread:$0]  %s2, 2048, %s226, [#allocation9], 128, 128, 8
        $region20: #{tpu_custom_call.1} parent=11 // pred_fallthru
          _
        // Predicated region
        $region21: #{tpu_custom_call.1} parent=11 // pred_check
          %p232 = pneg %p109
        $region22: #{tpu_custom_call.1} parent=11 // pred_check_branch
          %234 = sbr.rel (%p232) target = $region24
        $region23: #{tpu_custom_call.1} parent=11 // pred_region
          %s236 = ssub.s32 2048, 2048
          %237 = vsyncadd [#allocation9], %s236
          %s238 = sshll.u32 [#allocation10], 4
          %s239 = int_to_ptr.vmem [resolvable:$true] %s238
          %244 = dma.hbm_to_vmem [thread:$0]  %s3, 2048, %s239, [#allocation9], 64, 64, 4
        $region24: #{tpu_custom_call.1} parent=11 // pred_fallthru
          _
        // Predicated region
        $region25: #{tpu_custom_call.1} parent=11 // pred_check
          %p245 = pneg %p130
        $region26: #{tpu_custom_call.1} parent=11 // pred_check_branch
          %247 = sbr.rel (%p245) target = $region28
        $region27: #{tpu_custom_call.1} parent=11 // pred_region
          _
        $region28: #{tpu_custom_call.1} parent=11 // pred_fallthru
          _
        // Predicated region
        $region29: #{tpu_custom_call.1} parent=11 // pred_check
          %p248 = pneg %p151
        $region30: #{tpu_custom_call.1} parent=11 // pred_check_branch
          %250 = sbr.rel (%p248) target = $region32
        $region31: #{tpu_custom_call.1} parent=11 // pred_region
          %s252 = ssub.s32 2048, 2048
          %253 = vsyncadd [#allocation12], %s252
          %s254 = sshll.u32 [#allocation11], 4
          %s255 = int_to_ptr.vmem [resolvable:$true] %s254
          %260 = dma.hbm_to_vmem [thread:$0]  %s5, 2048, %s255, [#allocation12], 64, 64, 4
        $region32: #{tpu_custom_call.1} parent=11 // pred_fallthru
          _
        // Predicated region
        $region33: #{tpu_custom_call.1} parent=11 // pred_check
          %p261 = pneg %p172
        $region34: #{tpu_custom_call.1} parent=11 // pred_check_branch
          %263 = sbr.rel (%p261) target = $region36
        $region35: #{tpu_custom_call.1} parent=11 // pred_region
          _
        $region36: #{tpu_custom_call.1} parent=11 // pred_fallthru
          _
      $region12: #{tpu_custom_call.1} parent=5 // pred_fallthru
        _
      %p264 = scmp.lt.s32.totalorder %s20, 3
      // Predicated region
      $region37: #{tpu_custom_call.1} parent=5 // pred_check
        %p265 = pneg %p264
      $region38: #{tpu_custom_call.1} parent=5 // pred_check_branch
        %267 = sbr.rel (%p265) target = $region40
      $region39: #{tpu_custom_call.1} parent=5 // pred_region
        // Predicated region
        $region41: #{tpu_custom_call.1} parent=39 // pred_check
          %p268 = pneg %p40
        $region42: #{tpu_custom_call.1} parent=39 // pred_check_branch
          %270 = sbr.rel (%p268) target = $region44
        $region43: #{tpu_custom_call.1} parent=39 // pred_region
          %s271 = sand.u32 %s30, 1
          %s272 = scalar_lea.sflag [#allocation4], %s271
          %s273 = sand.u32 %s30, 1
          %s274 = smul.addr %s273, 8
          %s275 = scalar_lea.vmem [#allocation3], %s274
          %s276 = smul.u32 4, %s20
          %s278 = ssub.s32 128, 128
          %279 = vsyncadd %s272, %s278
          %s280 = smul.addr %s276, 32
          %s281 = scalar_lea.hbm %s0, %s280
          %s283 = sshll.u32 %s275, 4
          %s284 = int_to_ptr.vmem [resolvable:$true] %s283
          %286 = dma.hbm_to_vmem [thread:$0]  %s281, 128, %s284, %s272
        $region44: #{tpu_custom_call.1} parent=39 // pred_fallthru
          _
      $region40: #{tpu_custom_call.1} parent=5 // pred_fallthru
        _
      %p287 = scmp.le.s32.totalorder 1, %s20
      %p288 = scmp.lt.s32.totalorder %s20, 4
      %p289 = pnand %p287, %p288
      %p290 = pneg %p289
      // Predicated region
      $region45: #{tpu_custom_call.1} parent=5 // pred_check
        _
      $region46: #{tpu_custom_call.1} parent=5 // pred_check_branch
        %292 = sbr.rel (%p289) target = $region48
      $region47: #{tpu_custom_call.1} parent=5 // pred_region
        %s293 = ssub.s32 %s20, 1
        %s294 = sand.u32 %s33, 1
        %s295 = scalar_lea.sflag [#allocation4], %s294
        %s296 = sand.u32 %s33, 1
        %s297 = smul.addr %s296, 8
        %s298 = scalar_lea.vmem [#allocation3], %s297
        // Predicated region
        $region49: #{tpu_custom_call.1} parent=47 // pred_check
          %p299 = pneg %p46
        $region50: #{tpu_custom_call.1} parent=47 // pred_check_branch
          %301 = sbr.rel (%p299) target = $region52
        $region51: #{tpu_custom_call.1} parent=47 // pred_region
          %302 = dma.done %s295, 128
        $region52: #{tpu_custom_call.1} parent=47 // pred_fallthru
          _
        // Predicated region
        $region53: #{tpu_custom_call.1} parent=47 // pred_check
          %p303 = pneg %p67
        $region54: #{tpu_custom_call.1} parent=47 // pred_check_branch
          %305 = sbr.rel (%p303) target = $region56
        $region55: #{tpu_custom_call.1} parent=47 // pred_region
          %306 = dma.done [#allocation6], 16
        $region56: #{tpu_custom_call.1} parent=47 // pred_fallthru
          _
        // Predicated region
        $region57: #{tpu_custom_call.1} parent=47 // pred_check
          %p307 = pneg %p88
        $region58: #{tpu_custom_call.1} parent=47 // pred_check_branch
          %309 = sbr.rel (%p307) target = $region60
        $region59: #{tpu_custom_call.1} parent=47 // pred_region
          %310 = dma.done [#allocation9], 2048
        $region60: #{tpu_custom_call.1} parent=47 // pred_fallthru
          _
        // Predicated region
        $region61: #{tpu_custom_call.1} parent=47 // pred_check
          %p311 = pneg %p109
        $region62: #{tpu_custom_call.1} parent=47 // pred_check_branch
          %313 = sbr.rel (%p311) target = $region64
        $region63: #{tpu_custom_call.1} parent=47 // pred_region
          %314 = dma.done [#allocation9], 2048
        $region64: #{tpu_custom_call.1} parent=47 // pred_fallthru
          _
        // Predicated region
        $region65: #{tpu_custom_call.1} parent=47 // pred_check
          %p315 = pneg %p151
        $region66: #{tpu_custom_call.1} parent=47 // pred_check_branch
          %317 = sbr.rel (%p315) target = $region68
        $region67: #{tpu_custom_call.1} parent=47 // pred_region
          %318 = dma.done [#allocation12], 2048
        $region68: #{tpu_custom_call.1} parent=47 // pred_fallthru
          _
        %319 = sfence
        %s320 = sand.u32 %s33, 1
        %s321 = scalar_lea.sflag [#allocation4], %s320
        %s322 = sand.u32 %s33, 1
        %s323 = smul.addr %s322, 8
        %s324 = scalar_lea.vmem [#allocation3], %s323
        %p325 = pneg %p46
        %p326 = pneg %p43
        %p327 = pneg %p67
        %p328 = pneg %p64
        %p329 = pneg %p88
        %p330 = pneg %p85
        %p331 = pneg %p109
        %p332 = pneg %p106
        %p333 = pneg %p130
        %p334 = pneg %p127
        %p335 = pneg %p151
        %p336 = pneg %p148
        %p337 = pneg %p172
        %p338 = pneg %p169
        %p339 = pneg %p193
        %p340 = pneg %p190
        %s341 = smul.u32 4, %s25
        %p343 = scmp.eq.s32.totalorder %s25, 0
        // Predicated region
        $region69: #{tpu_custom_call.1} parent=47 // pred_check
          %p344 = pneg %p343
        $region70: #{tpu_custom_call.1} parent=47 // pred_check_branch
          %346 = sbr.rel (%p344) target = $region72
        $region71: #{tpu_custom_call.1} parent=47 // pred_region
          %347 = vst [vmem:[#allocation2] sm:$0xff] 0.0
          %348 = vst [vmem:[#allocation2 + $0x8] sm:$0xff] 0.0
          %349 = vst [vmem:[#allocation2 + $0x10] sm:$0xff] 0.0
          %350 = vst [vmem:[#allocation2 + $0x18] sm:$0xff] 0.0
          %351 = vst [vmem:[#allocation2 + $0x20] sm:$0xff] 0.0
          %352 = vst [vmem:[#allocation2 + $0x28] sm:$0xff] 0.0
          %353 = vst [vmem:[#allocation2 + $0x30] sm:$0xff] 0.0
          %354 = vst [vmem:[#allocation2 + $0x38] sm:$0xff] 0.0
          %355 = vst [vmem:[#allocation2 + $0x40] sm:$0xff] 0.0
          %356 = vst [vmem:[#allocation2 + $0x48] sm:$0xff] 0.0
          %357 = vst [vmem:[#allocation2 + $0x50] sm:$0xff] 0.0
          %358 = vst [vmem:[#allocation2 + $0x58] sm:$0xff] 0.0
          %359 = vst [vmem:[#allocation2 + $0x60] sm:$0xff] 0.0
          %360 = vst [vmem:[#allocation2 + $0x68] sm:$0xff] 0.0
          %361 = vst [vmem:[#allocation2 + $0x70] sm:$0xff] 0.0
          %362 = vst [vmem:[#allocation2 + $0x78] sm:$0xff] 0.0
        $region72: #{tpu_custom_call.1} parent=47 // pred_fallthru
          _
        %v363 = vld [vmem:[%s298] sm:$0xff]
        %v364 = vlaneseq
        %v365 = vshrl.u32 %v364, 7
        %v366 = vadd.s32 %v365, 8
        %v367 = vadd.s32 %v365, 16
        %v368 = vadd.s32 %v365, 24
        %v369 = vadd.s32 %v365, 32
        %v370 = vadd.s32 %v365, 40
        %v371 = vadd.s32 %v365, 48
        %v372 = vadd.s32 %v365, 56
        %v373 = vadd.s32 %v365, 64
        %v374 = vadd.s32 %v365, 72
        %v375 = vadd.s32 %v365, 80
        %v376 = vadd.s32 %v365, 88
        %v377 = vadd.s32 %v365, 96
        %v378 = vadd.s32 %v365, 104
        %v379 = vadd.s32 %v365, 112
        %v380 = vadd.s32 %v365, 120
        %v381 = vlaneseq
        %v382 = vshrl.u32 %v381, 7
        %v383 = vsub.s32 0, %v382
        %v384 = vrot.slane %v363, %v383
        %v385 = vlaneseq
        %v386 = vshrl.u32 %v385, 7
        %v387 = vsub.s32 2, %v386
        %v388 = vrot.slane %v363, %v387
        %v389 = vlaneseq
        %v390 = vshrl.u32 %v389, 7
        %v391 = vsub.s32 4, %v390
        %v392 = vrot.slane %v363, %v391
        %v393 = vlaneseq
        %v394 = vshrl.u32 %v393, 7
        %v395 = vsub.s32 6, %v394
        %v396 = vrot.slane %v363, %v395
        %v397 = vlaneseq
        %v398 = vshrl.u32 %v397, 7
        %v399 = vsub.s32 0, %v398
        %v400 = vrot.slane %v384, %v399
        %v401 = vlaneseq
        %v402 = vshrl.u32 %v401, 7
        %v403 = vsub.s32 0, %v402
        %v404 = vrot.slane %v388, %v403
        %v405 = vlaneseq
        %v406 = vshrl.u32 %v405, 7
        %v407 = vsub.s32 0, %v406
        %v408 = vrot.slane %v392, %v407
        %v409 = vlaneseq
        %v410 = vshrl.u32 %v409, 7
        %v411 = vsub.s32 0, %v410
        %v412 = vrot.slane %v396, %v411
        %vm413 = vcmp.eq.s32.totalorder %v400, %v365
        %vm414 = vcmp.eq.s32.totalorder %v404, %v365
        %vm415 = vcmp.eq.s32.totalorder %v408, %v365
        %vm416 = vcmp.eq.s32.totalorder %v412, %v365
        %vm417 = vcmp.eq.s32.totalorder %v400, %v366
        %vm418 = vcmp.eq.s32.totalorder %v404, %v366
        %vm419 = vcmp.eq.s32.totalorder %v408, %v366
        %vm420 = vcmp.eq.s32.totalorder %v412, %v366
        %vm421 = vcmp.eq.s32.totalorder %v400, %v367
        %vm422 = vcmp.eq.s32.totalorder %v404, %v367
        %vm423 = vcmp.eq.s32.totalorder %v408, %v367
        %vm424 = vcmp.eq.s32.totalorder %v412, %v367
        %vm425 = vcmp.eq.s32.totalorder %v400, %v368
        %vm426 = vcmp.eq.s32.totalorder %v404, %v368
        %vm427 = vcmp.eq.s32.totalorder %v408, %v368
        %vm428 = vcmp.eq.s32.totalorder %v412, %v368
        %vm429 = vcmp.eq.s32.totalorder %v400, %v369
        %vm430 = vcmp.eq.s32.totalorder %v404, %v369
        %vm431 = vcmp.eq.s32.totalorder %v408, %v369
        %vm432 = vcmp.eq.s32.totalorder %v412, %v369
        %vm433 = vcmp.eq.s32.totalorder %v400, %v370
        %vm434 = vcmp.eq.s32.totalorder %v404, %v370
        %vm435 = vcmp.eq.s32.totalorder %v408, %v370
        %vm436 = vcmp.eq.s32.totalorder %v412, %v370
        %vm437 = vcmp.eq.s32.totalorder %v400, %v371
        %vm438 = vcmp.eq.s32.totalorder %v404, %v371
        %vm439 = vcmp.eq.s32.totalorder %v408, %v371
        %vm440 = vcmp.eq.s32.totalorder %v412, %v371
        %vm441 = vcmp.eq.s32.totalorder %v400, %v372
        %vm442 = vcmp.eq.s32.totalorder %v404, %v372
        %vm443 = vcmp.eq.s32.totalorder %v408, %v372
        %vm444 = vcmp.eq.s32.totalorder %v412, %v372
        %vm445 = vcmp.eq.s32.totalorder %v400, %v373
        %vm446 = vcmp.eq.s32.totalorder %v404, %v373
        %vm447 = vcmp.eq.s32.totalorder %v408, %v373
        %vm448 = vcmp.eq.s32.totalorder %v412, %v373
        %vm449 = vcmp.eq.s32.totalorder %v400, %v374
        %vm450 = vcmp.eq.s32.totalorder %v404, %v374
        %vm451 = vcmp.eq.s32.totalorder %v408, %v374
        %vm452 = vcmp.eq.s32.totalorder %v412, %v374
        %vm453 = vcmp.eq.s32.totalorder %v400, %v375
        %vm454 = vcmp.eq.s32.totalorder %v404, %v375
        %vm455 = vcmp.eq.s32.totalorder %v408, %v375
        %vm456 = vcmp.eq.s32.totalorder %v412, %v375
        %vm457 = vcmp.eq.s32.totalorder %v400, %v376
        %vm458 = vcmp.eq.s32.totalorder %v404, %v376
        %vm459 = vcmp.eq.s32.totalorder %v408, %v376
        %vm460 = vcmp.eq.s32.totalorder %v412, %v376
        %vm461 = vcmp.eq.s32.totalorder %v400, %v377
        %vm462 = vcmp.eq.s32.totalorder %v404, %v377
        %vm463 = vcmp.eq.s32.totalorder %v408, %v377
        %vm464 = vcmp.eq.s32.totalorder %v412, %v377
        %vm465 = vcmp.eq.s32.totalorder %v400, %v378
        %vm466 = vcmp.eq.s32.totalorder %v404, %v378
        %vm467 = vcmp.eq.s32.totalorder %v408, %v378
        %vm468 = vcmp.eq.s32.totalorder %v412, %v378
        %vm469 = vcmp.eq.s32.totalorder %v400, %v379
        %vm470 = vcmp.eq.s32.totalorder %v404, %v379
        %vm471 = vcmp.eq.s32.totalorder %v408, %v379
        %vm472 = vcmp.eq.s32.totalorder %v412, %v379
        %vm473 = vcmp.eq.s32.totalorder %v400, %v380
        %vm474 = vcmp.eq.s32.totalorder %v404, %v380
        %vm475 = vcmp.eq.s32.totalorder %v408, %v380
        %vm476 = vcmp.eq.s32.totalorder %v412, %v380
        %v477 = vsel %vm413, 1, 0
        %v478 = vsel %vm414, 1, 0
        %v479 = vsel %vm415, 1, 0
        %v480 = vsel %vm416, 1, 0
        %v481 = vsel %vm417, 1, 0
        %v482 = vsel %vm418, 1, 0
        %v483 = vsel %vm419, 1, 0
        %v484 = vsel %vm420, 1, 0
        %v485 = vsel %vm421, 1, 0
        %v486 = vsel %vm422, 1, 0
        %v487 = vsel %vm423, 1, 0
        %v488 = vsel %vm424, 1, 0
        %v489 = vsel %vm425, 1, 0
        %v490 = vsel %vm426, 1, 0
        %v491 = vsel %vm427, 1, 0
        %v492 = vsel %vm428, 1, 0
        %v493 = vsel %vm429, 1, 0
        %v494 = vsel %vm430, 1, 0
        %v495 = vsel %vm431, 1, 0
        %v496 = vsel %vm432, 1, 0
        %v497 = vsel %vm433, 1, 0
        %v498 = vsel %vm434, 1, 0
        %v499 = vsel %vm435, 1, 0
        %v500 = vsel %vm436, 1, 0
        %v501 = vsel %vm437, 1, 0
        %v502 = vsel %vm438, 1, 0
        %v503 = vsel %vm439, 1, 0
        %v504 = vsel %vm440, 1, 0
        %v505 = vsel %vm441, 1, 0
        %v506 = vsel %vm442, 1, 0
        %v507 = vsel %vm443, 1, 0
        %v508 = vsel %vm444, 1, 0
        %v509 = vsel %vm445, 1, 0
        %v510 = vsel %vm446, 1, 0
        %v511 = vsel %vm447, 1, 0
        %v512 = vsel %vm448, 1, 0
        %v513 = vsel %vm449, 1, 0
        %v514 = vsel %vm450, 1, 0
        %v515 = vsel %vm451, 1, 0
        %v516 = vsel %vm452, 1, 0
        %v517 = vsel %vm453, 1, 0
        %v518 = vsel %vm454, 1, 0
        %v519 = vsel %vm455, 1, 0
        %v520 = vsel %vm456, 1, 0
        %v521 = vsel %vm457, 1, 0
        %v522 = vsel %vm458, 1, 0
        %v523 = vsel %vm459, 1, 0
        %v524 = vsel %vm460, 1, 0
        %v525 = vsel %vm461, 1, 0
        %v526 = vsel %vm462, 1, 0
        %v527 = vsel %vm463, 1, 0
        %v528 = vsel %vm464, 1, 0
        %v529 = vsel %vm465, 1, 0
        %v530 = vsel %vm466, 1, 0
        %v531 = vsel %vm467, 1, 0
        %v532 = vsel %vm468, 1, 0
        %v533 = vsel %vm469, 1, 0
        %v534 = vsel %vm470, 1, 0
        %v535 = vsel %vm471, 1, 0
        %v536 = vsel %vm472, 1, 0
        %v537 = vsel %vm473, 1, 0
        %v538 = vsel %vm474, 1, 0
        %v539 = vsel %vm475, 1, 0
        %v540 = vsel %vm476, 1, 0
        %v541 = vcvt.s32.f32 %v477
        %v542 = vcvt.s32.f32 %v478
        %v543 = vcvt.s32.f32 %v479
        %v544 = vcvt.s32.f32 %v480
        %v545 = vcvt.s32.f32 %v481
        %v546 = vcvt.s32.f32 %v482
        %v547 = vcvt.s32.f32 %v483
        %v548 = vcvt.s32.f32 %v484
        %v549 = vcvt.s32.f32 %v485
        %v550 = vcvt.s32.f32 %v486
        %v551 = vcvt.s32.f32 %v487
        %v552 = vcvt.s32.f32 %v488
        %v553 = vcvt.s32.f32 %v489
        %v554 = vcvt.s32.f32 %v490
        %v555 = vcvt.s32.f32 %v491
        %v556 = vcvt.s32.f32 %v492
        %v557 = vcvt.s32.f32 %v493
        %v558 = vcvt.s32.f32 %v494
        %v559 = vcvt.s32.f32 %v495
        %v560 = vcvt.s32.f32 %v496
        %v561 = vcvt.s32.f32 %v497
        %v562 = vcvt.s32.f32 %v498
        %v563 = vcvt.s32.f32 %v499
        %v564 = vcvt.s32.f32 %v500
        %v565 = vcvt.s32.f32 %v501
        %v566 = vcvt.s32.f32 %v502
        %v567 = vcvt.s32.f32 %v503
        %v568 = vcvt.s32.f32 %v504
        %v569 = vcvt.s32.f32 %v505
        %v570 = vcvt.s32.f32 %v506
        %v571 = vcvt.s32.f32 %v507
        %v572 = vcvt.s32.f32 %v508
        %v573 = vcvt.s32.f32 %v509
        %v574 = vcvt.s32.f32 %v510
        %v575 = vcvt.s32.f32 %v511
        %v576 = vcvt.s32.f32 %v512
        %v577 = vcvt.s32.f32 %v513
        %v578 = vcvt.s32.f32 %v514
        %v579 = vcvt.s32.f32 %v515
        %v580 = vcvt.s32.f32 %v516
        %v581 = vcvt.s32.f32 %v517
        %v582 = vcvt.s32.f32 %v518
        %v583 = vcvt.s32.f32 %v519
        %v584 = vcvt.s32.f32 %v520
        %v585 = vcvt.s32.f32 %v521
        %v586 = vcvt.s32.f32 %v522
        %v587 = vcvt.s32.f32 %v523
        %v588 = vcvt.s32.f32 %v524
        %v589 = vcvt.s32.f32 %v525
        %v590 = vcvt.s32.f32 %v526
        %v591 = vcvt.s32.f32 %v527
        %v592 = vcvt.s32.f32 %v528
        %v593 = vcvt.s32.f32 %v529
        %v594 = vcvt.s32.f32 %v530
        %v595 = vcvt.s32.f32 %v531
        %v596 = vcvt.s32.f32 %v532
        %v597 = vcvt.s32.f32 %v533
        %v598 = vcvt.s32.f32 %v534
        %v599 = vcvt.s32.f32 %v535
        %v600 = vcvt.s32.f32 %v536
        %v601 = vcvt.s32.f32 %v537
        %v602 = vcvt.s32.f32 %v538
        %v603 = vcvt.s32.f32 %v539
        %v604 = vcvt.s32.f32 %v540
        %v605 = vpack.c.bf16 %v545, %v541
        %v606 = vpack.c.bf16 %v546, %v542
        %v607 = vpack.c.bf16 %v547, %v543
        %v608 = vpack.c.bf16 %v548, %v544
        %v609 = vpack.c.bf16 %v553, %v549
        %v610 = vpack.c.bf16 %v554, %v550
        %v611 = vpack.c.bf16 %v555, %v551
        %v612 = vpack.c.bf16 %v556, %v552
        %v613 = vpack.c.bf16 %v561, %v557
        %v614 = vpack.c.bf16 %v562, %v558
        %v615 = vpack.c.bf16 %v563, %v559
        %v616 = vpack.c.bf16 %v564, %v560
        %v617 = vpack.c.bf16 %v569, %v565
        %v618 = vpack.c.bf16 %v570, %v566
        %v619 = vpack.c.bf16 %v571, %v567
        %v620 = vpack.c.bf16 %v572, %v568
        %v621 = vpack.c.bf16 %v577, %v573
        %v622 = vpack.c.bf16 %v578, %v574
        %v623 = vpack.c.bf16 %v579, %v575
        %v624 = vpack.c.bf16 %v580, %v576
        %v625 = vpack.c.bf16 %v585, %v581
        %v626 = vpack.c.bf16 %v586, %v582
        %v627 = vpack.c.bf16 %v587, %v583
        %v628 = vpack.c.bf16 %v588, %v584
        %v629 = vpack.c.bf16 %v593, %v589
        %v630 = vpack.c.bf16 %v594, %v590
        %v631 = vpack.c.bf16 %v595, %v591
        %v632 = vpack.c.bf16 %v596, %v592
        %v633 = vpack.c.bf16 %v601, %v597
        %v634 = vpack.c.bf16 %v602, %v598
        %v635 = vpack.c.bf16 %v603, %v599
        %v636 = vpack.c.bf16 %v604, %v600
        %v637 = vlaneseq
        %v638 = vshrl.u32 %v637, 7
        %v639 = vsub.s32 1, %v638
        %v640 = vrot.slane %v363, %v639
        %v641 = vlaneseq
        %v642 = vshrl.u32 %v641, 7
        %v643 = vsub.s32 3, %v642
        %v644 = vrot.slane %v363, %v643
        %v645 = vlaneseq
        %v646 = vshrl.u32 %v645, 7
        %v647 = vsub.s32 5, %v646
        %v648 = vrot.slane %v363, %v647
        %v649 = vlaneseq
        %v650 = vshrl.u32 %v649, 7
        %v651 = vsub.s32 7, %v650
        %v652 = vrot.slane %v363, %v651
        %v653 = vlaneseq
        %v654 = vshrl.u32 %v653, 7
        %v655 = vsub.s32 1, %v654
        %v656 = vrot.slane %v640, %v655
        %v657 = vlaneseq
        %v658 = vshrl.u32 %v657, 7
        %v659 = vsub.s32 1, %v658
        %v660 = vrot.slane %v644, %v659
        %v661 = vlaneseq
        %v662 = vshrl.u32 %v661, 7
        %v663 = vsub.s32 1, %v662
        %v664 = vrot.slane %v648, %v663
        %v665 = vlaneseq
        %v666 = vshrl.u32 %v665, 7
        %v667 = vsub.s32 1, %v666
        %v668 = vrot.slane %v652, %v667
        %vm669 = vcmp.eq.s32.totalorder %v656, %v365
        %vm670 = vcmp.eq.s32.totalorder %v660, %v365
        %vm671 = vcmp.eq.s32.totalorder %v664, %v365
        %vm672 = vcmp.eq.s32.totalorder %v668, %v365
        %vm673 = vcmp.eq.s32.totalorder %v656, %v366
        %vm674 = vcmp.eq.s32.totalorder %v660, %v366
        %vm675 = vcmp.eq.s32.totalorder %v664, %v366
        %vm676 = vcmp.eq.s32.totalorder %v668, %v366
        %vm677 = vcmp.eq.s32.totalorder %v656, %v367
        %vm678 = vcmp.eq.s32.totalorder %v660, %v367
        %vm679 = vcmp.eq.s32.totalorder %v664, %v367
        %vm680 = vcmp.eq.s32.totalorder %v668, %v367
        %vm681 = vcmp.eq.s32.totalorder %v656, %v368
        %vm682 = vcmp.eq.s32.totalorder %v660, %v368
        %vm683 = vcmp.eq.s32.totalorder %v664, %v368
        %vm684 = vcmp.eq.s32.totalorder %v668, %v368
        %vm685 = vcmp.eq.s32.totalorder %v656, %v369
        %vm686 = vcmp.eq.s32.totalorder %v660, %v369
        %vm687 = vcmp.eq.s32.totalorder %v664, %v369
        %vm688 = vcmp.eq.s32.totalorder %v668, %v369
        %vm689 = vcmp.eq.s32.totalorder %v656, %v370
        %vm690 = vcmp.eq.s32.totalorder %v660, %v370
        %vm691 = vcmp.eq.s32.totalorder %v664, %v370
        %vm692 = vcmp.eq.s32.totalorder %v668, %v370
        %vm693 = vcmp.eq.s32.totalorder %v656, %v371
        %vm694 = vcmp.eq.s32.totalorder %v660, %v371
        %vm695 = vcmp.eq.s32.totalorder %v664, %v371
        %vm696 = vcmp.eq.s32.totalorder %v668, %v371
        %vm697 = vcmp.eq.s32.totalorder %v656, %v372
        %vm698 = vcmp.eq.s32.totalorder %v660, %v372
        %vm699 = vcmp.eq.s32.totalorder %v664, %v372
        %vm700 = vcmp.eq.s32.totalorder %v668, %v372
        %vm701 = vcmp.eq.s32.totalorder %v656, %v373
        %vm702 = vcmp.eq.s32.totalorder %v660, %v373
        %vm703 = vcmp.eq.s32.totalorder %v664, %v373
        %vm704 = vcmp.eq.s32.totalorder %v668, %v373
        %vm705 = vcmp.eq.s32.totalorder %v656, %v374
        %vm706 = vcmp.eq.s32.totalorder %v660, %v374
        %vm707 = vcmp.eq.s32.totalorder %v664, %v374
        %vm708 = vcmp.eq.s32.totalorder %v668, %v374
        %vm709 = vcmp.eq.s32.totalorder %v656, %v375
        %vm710 = vcmp.eq.s32.totalorder %v660, %v375
        %vm711 = vcmp.eq.s32.totalorder %v664, %v375
        %vm712 = vcmp.eq.s32.totalorder %v668, %v375
        %vm713 = vcmp.eq.s32.totalorder %v656, %v376
        %vm714 = vcmp.eq.s32.totalorder %v660, %v376
        %vm715 = vcmp.eq.s32.totalorder %v664, %v376
        %vm716 = vcmp.eq.s32.totalorder %v668, %v376
        %vm717 = vcmp.eq.s32.totalorder %v656, %v377
        %vm718 = vcmp.eq.s32.totalorder %v660, %v377
        %vm719 = vcmp.eq.s32.totalorder %v664, %v377
        %vm720 = vcmp.eq.s32.totalorder %v668, %v377
        %vm721 = vcmp.eq.s32.totalorder %v656, %v378
        %vm722 = vcmp.eq.s32.totalorder %v660, %v378
        %vm723 = vcmp.eq.s32.totalorder %v664, %v378
        %vm724 = vcmp.eq.s32.totalorder %v668, %v378
        %vm725 = vcmp.eq.s32.totalorder %v656, %v379
        %vm726 = vcmp.eq.s32.totalorder %v660, %v379
        %vm727 = vcmp.eq.s32.totalorder %v664, %v379
        %vm728 = vcmp.eq.s32.totalorder %v668, %v379
        %vm729 = vcmp.eq.s32.totalorder %v656, %v380
        %vm730 = vcmp.eq.s32.totalorder %v660, %v380
        %vm731 = vcmp.eq.s32.totalorder %v664, %v380
        %vm732 = vcmp.eq.s32.totalorder %v668, %v380
        %v733 = vsel %vm669, 1, 0
        %v734 = vsel %vm670, 1, 0
        %v735 = vsel %vm671, 1, 0
        %v736 = vsel %vm672, 1, 0
        %v737 = vsel %vm673, 1, 0
        %v738 = vsel %vm674, 1, 0
        %v739 = vsel %vm675, 1, 0
        %v740 = vsel %vm676, 1, 0
        %v741 = vsel %vm677, 1, 0
        %v742 = vsel %vm678, 1, 0
        %v743 = vsel %vm679, 1, 0
        %v744 = vsel %vm680, 1, 0
        %v745 = vsel %vm681, 1, 0
        %v746 = vsel %vm682, 1, 0
        %v747 = vsel %vm683, 1, 0
        %v748 = vsel %vm684, 1, 0
        %v749 = vsel %vm685, 1, 0
        %v750 = vsel %vm686, 1, 0
        %v751 = vsel %vm687, 1, 0
        %v752 = vsel %vm688, 1, 0
        %v753 = vsel %vm689, 1, 0
        %v754 = vsel %vm690, 1, 0
        %v755 = vsel %vm691, 1, 0
        %v756 = vsel %vm692, 1, 0
        %v757 = vsel %vm693, 1, 0
        %v758 = vsel %vm694, 1, 0
        %v759 = vsel %vm695, 1, 0
        %v760 = vsel %vm696, 1, 0
        %v761 = vsel %vm697, 1, 0
        %v762 = vsel %vm698, 1, 0
        %v763 = vsel %vm699, 1, 0
        %v764 = vsel %vm700, 1, 0
        %v765 = vsel %vm701, 1, 0
        %v766 = vsel %vm702, 1, 0
        %v767 = vsel %vm703, 1, 0
        %v768 = vsel %vm704, 1, 0
        %v769 = vsel %vm705, 1, 0
        %v770 = vsel %vm706, 1, 0
        %v771 = vsel %vm707, 1, 0
        %v772 = vsel %vm708, 1, 0
        %v773 = vsel %vm709, 1, 0
        %v774 = vsel %vm710, 1, 0
        %v775 = vsel %vm711, 1, 0
        %v776 = vsel %vm712, 1, 0
        %v777 = vsel %vm713, 1, 0
        %v778 = vsel %vm714, 1, 0
        %v779 = vsel %vm715, 1, 0
        %v780 = vsel %vm716, 1, 0
        %v781 = vsel %vm717, 1, 0
        %v782 = vsel %vm718, 1, 0
        %v783 = vsel %vm719, 1, 0
        %v784 = vsel %vm720, 1, 0
        %v785 = vsel %vm721, 1, 0
        %v786 = vsel %vm722, 1, 0
        %v787 = vsel %vm723, 1, 0
        %v788 = vsel %vm724, 1, 0
        %v789 = vsel %vm725, 1, 0
        %v790 = vsel %vm726, 1, 0
        %v791 = vsel %vm727, 1, 0
        %v792 = vsel %vm728, 1, 0
        %v793 = vsel %vm729, 1, 0
        %v794 = vsel %vm730, 1, 0
        %v795 = vsel %vm731, 1, 0
        %v796 = vsel %vm732, 1, 0
        %v797 = vcvt.s32.f32 %v733
        %v798 = vcvt.s32.f32 %v734
        %v799 = vcvt.s32.f32 %v735
        %v800 = vcvt.s32.f32 %v736
        %v801 = vcvt.s32.f32 %v737
        %v802 = vcvt.s32.f32 %v738
        %v803 = vcvt.s32.f32 %v739
        %v804 = vcvt.s32.f32 %v740
        %v805 = vcvt.s32.f32 %v741
        %v806 = vcvt.s32.f32 %v742
        %v807 = vcvt.s32.f32 %v743
        %v808 = vcvt.s32.f32 %v744
        %v809 = vcvt.s32.f32 %v745
        %v810 = vcvt.s32.f32 %v746
        %v811 = vcvt.s32.f32 %v747
        %v812 = vcvt.s32.f32 %v748
        %v813 = vcvt.s32.f32 %v749
        %v814 = vcvt.s32.f32 %v750
        %v815 = vcvt.s32.f32 %v751
        %v816 = vcvt.s32.f32 %v752
        %v817 = vcvt.s32.f32 %v753
        %v818 = vcvt.s32.f32 %v754
        %v819 = vcvt.s32.f32 %v755
        %v820 = vcvt.s32.f32 %v756
        %v821 = vcvt.s32.f32 %v757
        %v822 = vcvt.s32.f32 %v758
        %v823 = vcvt.s32.f32 %v759
        %v824 = vcvt.s32.f32 %v760
        %v825 = vcvt.s32.f32 %v761
        %v826 = vcvt.s32.f32 %v762
        %v827 = vcvt.s32.f32 %v763
        %v828 = vcvt.s32.f32 %v764
        %v829 = vcvt.s32.f32 %v765
        %v830 = vcvt.s32.f32 %v766
        %v831 = vcvt.s32.f32 %v767
        %v832 = vcvt.s32.f32 %v768
        %v833 = vcvt.s32.f32 %v769
        %v834 = vcvt.s32.f32 %v770
        %v835 = vcvt.s32.f32 %v771
        %v836 = vcvt.s32.f32 %v772
        %v837 = vcvt.s32.f32 %v773
        %v838 = vcvt.s32.f32 %v774
        %v839 = vcvt.s32.f32 %v775
        %v840 = vcvt.s32.f32 %v776
        %v841 = vcvt.s32.f32 %v777
        %v842 = vcvt.s32.f32 %v778
        %v843 = vcvt.s32.f32 %v779
        %v844 = vcvt.s32.f32 %v780
        %v845 = vcvt.s32.f32 %v781
        %v846 = vcvt.s32.f32 %v782
        %v847 = vcvt.s32.f32 %v783
        %v848 = vcvt.s32.f32 %v784
        %v849 = vcvt.s32.f32 %v785
        %v850 = vcvt.s32.f32 %v786
        %v851 = vcvt.s32.f32 %v787
        %v852 = vcvt.s32.f32 %v788
        %v853 = vcvt.s32.f32 %v789
        %v854 = vcvt.s32.f32 %v790
        %v855 = vcvt.s32.f32 %v791
        %v856 = vcvt.s32.f32 %v792
        %v857 = vcvt.s32.f32 %v793
        %v858 = vcvt.s32.f32 %v794
        %v859 = vcvt.s32.f32 %v795
        %v860 = vcvt.s32.f32 %v796
        %v861 = vpack.c.bf16 %v801, %v797
        %v862 = vpack.c.bf16 %v802, %v798
        %v863 = vpack.c.bf16 %v803, %v799
        %v864 = vpack.c.bf16 %v804, %v800
        %v865 = vpack.c.bf16 %v809, %v805
        %v866 = vpack.c.bf16 %v810, %v806
        %v867 = vpack.c.bf16 %v811, %v807
        %v868 = vpack.c.bf16 %v812, %v808
        %v869 = vpack.c.bf16 %v817, %v813
        %v870 = vpack.c.bf16 %v818, %v814
        %v871 = vpack.c.bf16 %v819, %v815
        %v872 = vpack.c.bf16 %v820, %v816
        %v873 = vpack.c.bf16 %v825, %v821
        %v874 = vpack.c.bf16 %v826, %v822
        %v875 = vpack.c.bf16 %v827, %v823
        %v876 = vpack.c.bf16 %v828, %v824
        %v877 = vpack.c.bf16 %v833, %v829
        %v878 = vpack.c.bf16 %v834, %v830
        %v879 = vpack.c.bf16 %v835, %v831
        %v880 = vpack.c.bf16 %v836, %v832
        %v881 = vpack.c.bf16 %v841, %v837
        %v882 = vpack.c.bf16 %v842, %v838
        %v883 = vpack.c.bf16 %v843, %v839
        %v884 = vpack.c.bf16 %v844, %v840
        %v885 = vpack.c.bf16 %v849, %v845
        %v886 = vpack.c.bf16 %v850, %v846
        %v887 = vpack.c.bf16 %v851, %v847
        %v888 = vpack.c.bf16 %v852, %v848
        %v889 = vpack.c.bf16 %v857, %v853
        %v890 = vpack.c.bf16 %v858, %v854
        %v891 = vpack.c.bf16 %v859, %v855
        %v892 = vpack.c.bf16 %v860, %v856
        %v893 = vld [vmem:[#allocation2] sm:$0xff]
        %v894 = vld [vmem:[#allocation2 + $0x8] sm:$0xff]
        %v895 = vld [vmem:[#allocation2 + $0x10] sm:$0xff]
        %v896 = vld [vmem:[#allocation2 + $0x18] sm:$0xff]
        %v897 = vld [vmem:[#allocation2 + $0x20] sm:$0xff]
        %v898 = vld [vmem:[#allocation2 + $0x28] sm:$0xff]
        %v899 = vld [vmem:[#allocation2 + $0x30] sm:$0xff]
        %v900 = vld [vmem:[#allocation2 + $0x38] sm:$0xff]
        %v901 = vld [vmem:[#allocation2 + $0x40] sm:$0xff]
        %v902 = vld [vmem:[#allocation2 + $0x48] sm:$0xff]
        %v903 = vld [vmem:[#allocation2 + $0x50] sm:$0xff]
        %v904 = vld [vmem:[#allocation2 + $0x58] sm:$0xff]
        %v905 = vld [vmem:[#allocation2 + $0x60] sm:$0xff]
        %v906 = vld [vmem:[#allocation2 + $0x68] sm:$0xff]
        %v907 = vld [vmem:[#allocation2 + $0x70] sm:$0xff]
        %v908 = vld [vmem:[#allocation2 + $0x78] sm:$0xff]
        %909 = vmatprep.subr.bf16.mxu0 %v634
        %910 = vmatpush1.bf16.xpose.msra.mxu0 %v633
        %911 = vmatprep.subr.bf16.mxu0 %v630
        %912 = vmatpush1.bf16.xpose.msra.mxu0 %v629
        %913 = vmatprep.subr.bf16.mxu0 %v626
        %914 = vmatpush1.bf16.xpose.msra.mxu0 %v625
        %915 = vmatprep.subr.bf16.mxu0 %v622
        %916 = vmatpush1.bf16.xpose.msra.mxu0 %v621
        %917 = vmatprep.subr.bf16.mxu0 %v618
        %918 = vmatpush1.bf16.xpose.msra.mxu0 %v617
        %919 = vmatprep.subr.bf16.mxu0 %v614
        %920 = vmatpush1.bf16.xpose.msra.mxu0 %v613
        %921 = vmatprep.subr.bf16.mxu0 %v610
        %922 = vmatpush1.bf16.xpose.msra.mxu0 %v609
        %923 = vmatprep.subr.bf16.mxu0 %v606
        %924 = vmatpush1.bf16.xpose.msra.mxu0 %v605
        %925 = vmatprep.subr.bf16.mxu0 0
        %926 = vmatpush2.bf16.xpose.msra.mxu0 0
        %927 = vmatprep.subr.bf16.mxu0 0
        %928 = vmatpush2.bf16.xpose.msra.mxu0 0
        %929 = vmatprep.subr.bf16.mxu0 0
        %930 = vmatpush2.bf16.xpose.msra.mxu0 0
        %931 = vmatprep.subr.bf16.mxu0 0
        %932 = vmatpush2.bf16.xpose.msra.mxu0 0
        %933 = vmatprep.subr.bf16.mxu0 0
        %934 = vmatpush2.bf16.xpose.msra.mxu0 0
        %935 = vmatprep.subr.bf16.mxu0 0
        %936 = vmatpush2.bf16.xpose.msra.mxu0 0
        %937 = vmatprep.subr.bf16.mxu0 0
        %938 = vmatpush2.bf16.xpose.msra.mxu0 0
        %939 = vmatprep.subr.bf16.mxu0 0
        %940 = vmatpush2.bf16.xpose.msra.mxu0 0
        %941 = vmatprep.mubr.bf16.mxu0 %v862
        %942 = vmatmul.mubr.bf16.gmra.mxu0 %v861
        %v943 = vpop.f32.mrf.mxu0
        %v944 = vadd.f32 0.0, %v943
        %v945 = vpop.f32.mrf.mxu0
        %v946 = vpop.f32.mrf.mxu0
        %v947 = vadd.f32 0.0, %v946
        %v948 = vpop.f32.mrf.mxu0
        %949 = vmatprep.mubr.bf16.mxu0 %v866
        %950 = vmatmul.mubr.bf16.gmra.mxu0 %v865
        %v951 = vpop.f32.mrf.mxu0
        %v952 = vadd.f32 0.0, %v951
        %v953 = vpop.f32.mrf.mxu0
        %v954 = vpop.f32.mrf.mxu0
        %v955 = vadd.f32 0.0, %v954
        %v956 = vpop.f32.mrf.mxu0
        %957 = vmatprep.mubr.bf16.mxu0 %v870
        %958 = vmatmul.mubr.bf16.gmra.mxu0 %v869
        %v959 = vpop.f32.mrf.mxu0
        %v960 = vadd.f32 0.0, %v959
        %v961 = vpop.f32.mrf.mxu0
        %v962 = vpop.f32.mrf.mxu0
        %v963 = vadd.f32 0.0, %v962
        %v964 = vpop.f32.mrf.mxu0
        %965 = vmatprep.mubr.bf16.mxu0 %v874
        %966 = vmatmul.mubr.bf16.gmra.mxu0 %v873
        %v967 = vpop.f32.mrf.mxu0
        %v968 = vadd.f32 0.0, %v967
        %v969 = vpop.f32.mrf.mxu0
        %v970 = vpop.f32.mrf.mxu0
        %v971 = vadd.f32 0.0, %v970
        %v972 = vpop.f32.mrf.mxu0
        %973 = vmatprep.mubr.bf16.mxu0 %v878
        %974 = vmatmul.mubr.bf16.gmra.mxu0 %v877
        %v975 = vpop.f32.mrf.mxu0
        %v976 = vadd.f32 0.0, %v975
        %v977 = vpop.f32.mrf.mxu0
        %v978 = vpop.f32.mrf.mxu0
        %v979 = vadd.f32 0.0, %v978
        %v980 = vpop.f32.mrf.mxu0
        %981 = vmatprep.mubr.bf16.mxu0 %v882
        %982 = vmatmul.mubr.bf16.gmra.mxu0 %v881
        %v983 = vpop.f32.mrf.mxu0
        %v984 = vadd.f32 0.0, %v983
        %v985 = vpop.f32.mrf.mxu0
        %v986 = vpop.f32.mrf.mxu0
        %v987 = vadd.f32 0.0, %v986
        %v988 = vpop.f32.mrf.mxu0
        %989 = vmatprep.mubr.bf16.mxu0 %v886
        %990 = vmatmul.mubr.bf16.gmra.mxu0 %v885
        %v991 = vpop.f32.mrf.mxu0
        %v992 = vadd.f32 0.0, %v991
        %v993 = vpop.f32.mrf.mxu0
        %v994 = vpop.f32.mrf.mxu0
        %v995 = vadd.f32 0.0, %v994
        %v996 = vpop.f32.mrf.mxu0
        %997 = vmatprep.mubr.bf16.mxu0 %v890
        %998 = vmatmul.mubr.bf16.gmra.mxu0 %v889
        %v999 = vpop.f32.mrf.mxu0
        %v1000 = vadd.f32 0.0, %v999
        %v1001 = vpop.f32.mrf.mxu0
        %v1002 = vpop.f32.mrf.mxu0
        %v1003 = vadd.f32 0.0, %v1002
        %v1004 = vpop.f32.mrf.mxu0
        %1005 = vdwg.mxu0
        %1006 = vmatprep.subr.bf16.mxu0 %v636
        %1007 = vmatpush1.bf16.xpose.msra.mxu0 %v635
        %1008 = vmatprep.subr.bf16.mxu0 %v632
        %1009 = vmatpush1.bf16.xpose.msra.mxu0 %v631
        %1010 = vmatprep.subr.bf16.mxu0 %v628
        %1011 = vmatpush1.bf16.xpose.msra.mxu0 %v627
        %1012 = vmatprep.subr.bf16.mxu0 %v624
        %1013 = vmatpush1.bf16.xpose.msra.mxu0 %v623
        %1014 = vmatprep.subr.bf16.mxu0 %v620
        %1015 = vmatpush1.bf16.xpose.msra.mxu0 %v619
        %1016 = vmatprep.subr.bf16.mxu0 %v616
        %1017 = vmatpush1.bf16.xpose.msra.mxu0 %v615
        %1018 = vmatprep.subr.bf16.mxu0 %v612
        %1019 = vmatpush1.bf16.xpose.msra.mxu0 %v611
        %1020 = vmatprep.subr.bf16.mxu0 %v608
        %1021 = vmatpush1.bf16.xpose.msra.mxu0 %v607
        %1022 = vmatprep.subr.bf16.mxu0 0
        %1023 = vmatpush2.bf16.xpose.msra.mxu0 0
        %1024 = vmatprep.subr.bf16.mxu0 0
        %1025 = vmatpush2.bf16.xpose.msra.mxu0 0
        %1026 = vmatprep.subr.bf16.mxu0 0
        %1027 = vmatpush2.bf16.xpose.msra.mxu0 0
        %1028 = vmatprep.subr.bf16.mxu0 0
        %1029 = vmatpush2.bf16.xpose.msra.mxu0 0
        %1030 = vmatprep.subr.bf16.mxu0 0
        %1031 = vmatpush2.bf16.xpose.msra.mxu0 0
        %1032 = vmatprep.subr.bf16.mxu0 0
        %1033 = vmatpush2.bf16.xpose.msra.mxu0 0
        %1034 = vmatprep.subr.bf16.mxu0 0
        %1035 = vmatpush2.bf16.xpose.msra.mxu0 0
        %1036 = vmatprep.subr.bf16.mxu0 0
        %1037 = vmatpush2.bf16.xpose.msra.mxu0 0
        %1038 = vmatprep.mubr.bf16.mxu0 %v864
        %1039 = vmatmul.mubr.bf16.gmra.mxu0 %v863
        %v1040 = vpop.f32.mrf.mxu0
        %v1041 = vadd.f32 %v944, %v1040
        %v1042 = vpop.f32.mrf.mxu0
        %v1043 = vpop.f32.mrf.mxu0
        %v1044 = vadd.f32 %v947, %v1043
        %v1045 = vpop.f32.mrf.mxu0
        %1046 = vmatprep.mubr.bf16.mxu0 %v868
        %1047 = vmatmul.mubr.bf16.gmra.mxu0 %v867
        %v1048 = vpop.f32.mrf.mxu0
        %v1049 = vadd.f32 %v952, %v1048
        %v1050 = vpop.f32.mrf.mxu0
        %v1051 = vpop.f32.mrf.mxu0
        %v1052 = vadd.f32 %v955, %v1051
        %v1053 = vpop.f32.mrf.mxu0
        %1054 = vmatprep.mubr.bf16.mxu0 %v872
        %1055 = vmatmul.mubr.bf16.gmra.mxu0 %v871
        %v1056 = vpop.f32.mrf.mxu0
        %v1057 = vadd.f32 %v960, %v1056
        %v1058 = vpop.f32.mrf.mxu0
        %v1059 = vpop.f32.mrf.mxu0
        %v1060 = vadd.f32 %v963, %v1059
        %v1061 = vpop.f32.mrf.mxu0
        %1062 = vmatprep.mubr.bf16.mxu0 %v876
        %1063 = vmatmul.mubr.bf16.gmra.mxu0 %v875
        %v1064 = vpop.f32.mrf.mxu0
        %v1065 = vadd.f32 %v968, %v1064
        %v1066 = vpop.f32.mrf.mxu0
        %v1067 = vpop.f32.mrf.mxu0
        %v1068 = vadd.f32 %v971, %v1067
        %v1069 = vpop.f32.mrf.mxu0
        %1070 = vmatprep.mubr.bf16.mxu0 %v880
        %1071 = vmatmul.mubr.bf16.gmra.mxu0 %v879
        %v1072 = vpop.f32.mrf.mxu0
        %v1073 = vadd.f32 %v976, %v1072
        %v1074 = vpop.f32.mrf.mxu0
        %v1075 = vpop.f32.mrf.mxu0
        %v1076 = vadd.f32 %v979, %v1075
        %v1077 = vpop.f32.mrf.mxu0
        %1078 = vmatprep.mubr.bf16.mxu0 %v884
        %1079 = vmatmul.mubr.bf16.gmra.mxu0 %v883
        %v1080 = vpop.f32.mrf.mxu0
        %v1081 = vadd.f32 %v984, %v1080
        %v1082 = vpop.f32.mrf.mxu0
        %v1083 = vpop.f32.mrf.mxu0
        %v1084 = vadd.f32 %v987, %v1083
        %v1085 = vpop.f32.mrf.mxu0
        %1086 = vmatprep.mubr.bf16.mxu0 %v888
        %1087 = vmatmul.mubr.bf16.gmra.mxu0 %v887
        %v1088 = vpop.f32.mrf.mxu0
        %v1089 = vadd.f32 %v992, %v1088
        %v1090 = vpop.f32.mrf.mxu0
        %v1091 = vpop.f32.mrf.mxu0
        %v1092 = vadd.f32 %v995, %v1091
        %v1093 = vpop.f32.mrf.mxu0
        %1094 = vmatprep.mubr.bf16.mxu0 %v892
        %1095 = vmatmul.mubr.bf16.gmra.mxu0 %v891
        %v1096 = vpop.f32.mrf.mxu0
        %v1097 = vadd.f32 %v1000, %v1096
        %v1098 = vpop.f32.mrf.mxu0
        %v1099 = vpop.f32.mrf.mxu0
        %v1100 = vadd.f32 %v1003, %v1099
        %v1101 = vpop.f32.mrf.mxu0
        %1102 = vdwg.mxu0
        %v1103 = vadd.f32 %v893, %v1041
        %v1104 = vadd.f32 %v894, %v1044
        %v1105 = vadd.f32 %v895, %v1049
        %v1106 = vadd.f32 %v896, %v1052
        %v1107 = vadd.f32 %v897, %v1057
        %v1108 = vadd.f32 %v898, %v1060
        %v1109 = vadd.f32 %v899, %v1065
        %v1110 = vadd.f32 %v900, %v1068
        %v1111 = vadd.f32 %v901, %v1073
        %v1112 = vadd.f32 %v902, %v1076
        %v1113 = vadd.f32 %v903, %v1081
        %v1114 = vadd.f32 %v904, %v1084
        %v1115 = vadd.f32 %v905, %v1089
        %v1116 = vadd.f32 %v906, %v1092
        %v1117 = vadd.f32 %v907, %v1097
        %v1118 = vadd.f32 %v908, %v1100
        %1119 = vst [vmem:[#allocation2] sm:$0xff] %v1103
        %1120 = vst [vmem:[#allocation2 + $0x8] sm:$0xff] %v1104
        %1121 = vst [vmem:[#allocation2 + $0x10] sm:$0xff] %v1105
        %1122 = vst [vmem:[#allocation2 + $0x18] sm:$0xff] %v1106
        %1123 = vst [vmem:[#allocation2 + $0x20] sm:$0xff] %v1107
        %1124 = vst [vmem:[#allocation2 + $0x28] sm:$0xff] %v1108
        %1125 = vst [vmem:[#allocation2 + $0x30] sm:$0xff] %v1109
        %1126 = vst [vmem:[#allocation2 + $0x38] sm:$0xff] %v1110
        %1127 = vst [vmem:[#allocation2 + $0x40] sm:$0xff] %v1111
        %1128 = vst [vmem:[#allocation2 + $0x48] sm:$0xff] %v1112
        %1129 = vst [vmem:[#allocation2 + $0x50] sm:$0xff] %v1113
        %1130 = vst [vmem:[#allocation2 + $0x58] sm:$0xff] %v1114
        %1131 = vst [vmem:[#allocation2 + $0x60] sm:$0xff] %v1115
        %1132 = vst [vmem:[#allocation2 + $0x68] sm:$0xff] %v1116
        %1133 = vst [vmem:[#allocation2 + $0x70] sm:$0xff] %v1117
        %1134 = vst [vmem:[#allocation2 + $0x78] sm:$0xff] %v1118
        %p1135 = scmp.eq.s32.totalorder %s25, 2
        // Predicated region
        $region73: #{tpu_custom_call.1} parent=47 // pred_check
          %p1136 = pneg %p1135
        $region74: #{tpu_custom_call.1} parent=47 // pred_check_branch
          %1138 = sbr.rel (%p1136) target = $region76
        $region75: #{tpu_custom_call.1} parent=47 // pred_region
          %v1139 = vld [vmem:[#allocation8] sm:$0xff]
          %v1140 = vld [vmem:[#allocation8 + $0x8] sm:$0xff]
          %v1141 = vld [vmem:[#allocation8 + $0x10] sm:$0xff]
          %v1142 = vld [vmem:[#allocation8 + $0x18] sm:$0xff]
          %v1143 = vld [vmem:[#allocation8 + $0x20] sm:$0xff]
          %v1144 = vld [vmem:[#allocation8 + $0x28] sm:$0xff]
          %v1145 = vld [vmem:[#allocation8 + $0x30] sm:$0xff]
          %v1146 = vld [vmem:[#allocation8 + $0x38] sm:$0xff]
          %v1147 = vld [vmem:[#allocation8 + $0x40] sm:$0xff]
          %v1148 = vld [vmem:[#allocation8 + $0x48] sm:$0xff]
          %v1149 = vld [vmem:[#allocation8 + $0x50] sm:$0xff]
          %v1150 = vld [vmem:[#allocation8 + $0x58] sm:$0xff]
          %v1151 = vld [vmem:[#allocation8 + $0x60] sm:$0xff]
          %v1152 = vld [vmem:[#allocation8 + $0x68] sm:$0xff]
          %v1153 = vld [vmem:[#allocation8 + $0x70] sm:$0xff]
          %v1154 = vld [vmem:[#allocation8 + $0x78] sm:$0xff]
          %v1155 = vld [vmem:[#allocation2] sm:$0xff]
          %v1156 = vld [vmem:[#allocation2 + $0x8] sm:$0xff]
          %v1157 = vld [vmem:[#allocation2 + $0x10] sm:$0xff]
          %v1158 = vld [vmem:[#allocation2 + $0x18] sm:$0xff]
          %v1159 = vld [vmem:[#allocation2 + $0x20] sm:$0xff]
          %v1160 = vld [vmem:[#allocation2 + $0x28] sm:$0xff]
          %v1161 = vld [vmem:[#allocation2 + $0x30] sm:$0xff]
          %v1162 = vld [vmem:[#allocation2 + $0x38] sm:$0xff]
          %v1163 = vld [vmem:[#allocation2 + $0x40] sm:$0xff]
          %v1164 = vld [vmem:[#allocation2 + $0x48] sm:$0xff]
          %v1165 = vld [vmem:[#allocation2 + $0x50] sm:$0xff]
          %v1166 = vld [vmem:[#allocation2 + $0x58] sm:$0xff]
          %v1167 = vld [vmem:[#allocation2 + $0x60] sm:$0xff]
          %v1168 = vld [vmem:[#allocation2 + $0x68] sm:$0xff]
          %v1169 = vld [vmem:[#allocation2 + $0x70] sm:$0xff]
          %v1170 = vld [vmem:[#allocation2 + $0x78] sm:$0xff]
          %1171 = vmatprep.subr.mxu0 0.0
          %1172 = vmatpush1.msra.mxu0 %v1154
          %1173 = vmatprep.subr.mxu0 0.0
          %1174 = vmatpush1.msra.mxu0 %v1153
          %1175 = vmatprep.subr.mxu0 0.0
          %1176 = vmatpush1.msra.mxu0 %v1152
          %1177 = vmatprep.subr.mxu0 0.0
          %1178 = vmatpush1.msra.mxu0 %v1151
          %1179 = vmatprep.subr.mxu0 0.0
          %1180 = vmatpush1.msra.mxu0 %v1150
          %1181 = vmatprep.subr.mxu0 0.0
          %1182 = vmatpush1.msra.mxu0 %v1149
          %1183 = vmatprep.subr.mxu0 0.0
          %1184 = vmatpush1.msra.mxu0 %v1148
          %1185 = vmatprep.subr.mxu0 0.0
          %1186 = vmatpush1.msra.mxu0 %v1147
          %1187 = vmatprep.subr.mxu0 0.0
          %1188 = vmatpush1.msra.mxu0 %v1146
          %1189 = vmatprep.subr.mxu0 0.0
          %1190 = vmatpush1.msra.mxu0 %v1145
          %1191 = vmatprep.subr.mxu0 0.0
          %1192 = vmatpush1.msra.mxu0 %v1144
          %1193 = vmatprep.subr.mxu0 0.0
          %1194 = vmatpush1.msra.mxu0 %v1143
          %1195 = vmatprep.subr.mxu0 0.0
          %1196 = vmatpush1.msra.mxu0 %v1142
          %1197 = vmatprep.subr.mxu0 0.0
          %1198 = vmatpush1.msra.mxu0 %v1141
          %1199 = vmatprep.subr.mxu0 0.0
          %1200 = vmatpush1.msra.mxu0 %v1140
          %1201 = vmatprep.subr.mxu0 0.0
          %1202 = vmatpush1.msra.mxu0 %v1139
          %1203 = vmatprep.subr.mxu0 0.0
          %1204 = vmatpush2.msra.mxu0 0.0
          %1205 = vmatprep.subr.mxu0 0.0
          %1206 = vmatpush2.msra.mxu0 0.0
          %1207 = vmatprep.subr.mxu0 0.0
          %1208 = vmatpush2.msra.mxu0 0.0
          %1209 = vmatprep.subr.mxu0 0.0
          %1210 = vmatpush2.msra.mxu0 0.0
          %1211 = vmatprep.subr.mxu0 0.0
          %1212 = vmatpush2.msra.mxu0 0.0
          %1213 = vmatprep.subr.mxu0 0.0
          %1214 = vmatpush2.msra.mxu0 0.0
          %1215 = vmatprep.subr.mxu0 0.0
          %1216 = vmatpush2.msra.mxu0 0.0
          %1217 = vmatprep.subr.mxu0 0.0
          %1218 = vmatpush2.msra.mxu0 0.0
          %1219 = vmatprep.subr.mxu0 0.0
          %1220 = vmatpush2.msra.mxu0 0.0
          %1221 = vmatprep.subr.mxu0 0.0
          %1222 = vmatpush2.msra.mxu0 0.0
          %1223 = vmatprep.subr.mxu0 0.0
          %1224 = vmatpush2.msra.mxu0 0.0
          %1225 = vmatprep.subr.mxu0 0.0
          %1226 = vmatpush2.msra.mxu0 0.0
          %1227 = vmatprep.subr.mxu0 0.0
          %1228 = vmatpush2.msra.mxu0 0.0
          %1229 = vmatprep.subr.mxu0 0.0
          %1230 = vmatpush2.msra.mxu0 0.0
          %1231 = vmatprep.subr.mxu0 0.0
          %1232 = vmatpush2.msra.mxu0 0.0
          %1233 = vmatprep.subr.mxu0 0.0
          %1234 = vmatpush2.msra.mxu0 0.0
          %1235 = vmatprep.mubr.f32.mxu0 0.0
          %1236 = vmatmul.mubr.f32.gmra.mxu0 %v1155
          %v1237 = vpop.f32.mrf.mxu0
          %v1238 = vadd.f32 0.0, %v1237
          %v1239 = vpop.f32.mrf.mxu0
          %1240 = vmatprep.mubr.f32.mxu0 0.0
          %1241 = vmatmul.mubr.f32.gmra.mxu0 %v1156
          %v1242 = vpop.f32.mrf.mxu0
          %v1243 = vadd.f32 0.0, %v1242
          %v1244 = vpop.f32.mrf.mxu0
          %1245 = vmatprep.mubr.f32.mxu0 0.0
          %1246 = vmatmul.mubr.f32.gmra.mxu0 %v1157
          %v1247 = vpop.f32.mrf.mxu0
          %v1248 = vadd.f32 0.0, %v1247
          %v1249 = vpop.f32.mrf.mxu0
          %1250 = vmatprep.mubr.f32.mxu0 0.0
          %1251 = vmatmul.mubr.f32.gmra.mxu0 %v1158
          %v1252 = vpop.f32.mrf.mxu0
          %v1253 = vadd.f32 0.0, %v1252
          %v1254 = vpop.f32.mrf.mxu0
          %1255 = vmatprep.mubr.f32.mxu0 0.0
          %1256 = vmatmul.mubr.f32.gmra.mxu0 %v1159
          %v1257 = vpop.f32.mrf.mxu0
          %v1258 = vadd.f32 0.0, %v1257
          %v1259 = vpop.f32.mrf.mxu0
          %1260 = vmatprep.mubr.f32.mxu0 0.0
          %1261 = vmatmul.mubr.f32.gmra.mxu0 %v1160
          %v1262 = vpop.f32.mrf.mxu0
          %v1263 = vadd.f32 0.0, %v1262
          %v1264 = vpop.f32.mrf.mxu0
          %1265 = vmatprep.mubr.f32.mxu0 0.0
          %1266 = vmatmul.mubr.f32.gmra.mxu0 %v1161
          %v1267 = vpop.f32.mrf.mxu0
          %v1268 = vadd.f32 0.0, %v1267
          %v1269 = vpop.f32.mrf.mxu0
          %1270 = vmatprep.mubr.f32.mxu0 0.0
          %1271 = vmatmul.mubr.f32.gmra.mxu0 %v1162
          %v1272 = vpop.f32.mrf.mxu0
          %v1273 = vadd.f32 0.0, %v1272
          %v1274 = vpop.f32.mrf.mxu0
          %1275 = vmatprep.mubr.f32.mxu0 0.0
          %1276 = vmatmul.mubr.f32.gmra.mxu0 %v1163
          %v1277 = vpop.f32.mrf.mxu0
          %v1278 = vadd.f32 0.0, %v1277
          %v1279 = vpop.f32.mrf.mxu0
          %1280 = vmatprep.mubr.f32.mxu0 0.0
          %1281 = vmatmul.mubr.f32.gmra.mxu0 %v1164
          %v1282 = vpop.f32.mrf.mxu0
          %v1283 = vadd.f32 0.0, %v1282
          %v1284 = vpop.f32.mrf.mxu0
          %1285 = vmatprep.mubr.f32.mxu0 0.0
          %1286 = vmatmul.mubr.f32.gmra.mxu0 %v1165
          %v1287 = vpop.f32.mrf.mxu0
          %v1288 = vadd.f32 0.0, %v1287
          %v1289 = vpop.f32.mrf.mxu0
          %1290 = vmatprep.mubr.f32.mxu0 0.0
          %1291 = vmatmul.mubr.f32.gmra.mxu0 %v1166
          %v1292 = vpop.f32.mrf.mxu0
          %v1293 = vadd.f32 0.0, %v1292
          %v1294 = vpop.f32.mrf.mxu0
          %1295 = vmatprep.mubr.f32.mxu0 0.0
          %1296 = vmatmul.mubr.f32.gmra.mxu0 %v1167
          %v1297 = vpop.f32.mrf.mxu0
          %v1298 = vadd.f32 0.0, %v1297
          %v1299 = vpop.f32.mrf.mxu0
          %1300 = vmatprep.mubr.f32.mxu0 0.0
          %1301 = vmatmul.mubr.f32.gmra.mxu0 %v1168
          %v1302 = vpop.f32.mrf.mxu0
          %v1303 = vadd.f32 0.0, %v1302
          %v1304 = vpop.f32.mrf.mxu0
          %1305 = vmatprep.mubr.f32.mxu0 0.0
          %1306 = vmatmul.mubr.f32.gmra.mxu0 %v1169
          %v1307 = vpop.f32.mrf.mxu0
          %v1308 = vadd.f32 0.0, %v1307
          %v1309 = vpop.f32.mrf.mxu0
          %1310 = vmatprep.mubr.f32.mxu0 0.0
          %1311 = vmatmul.mubr.f32.gmra.mxu0 %v1170
          %v1312 = vpop.f32.mrf.mxu0
          %v1313 = vadd.f32 0.0, %v1312
          %v1314 = vpop.f32.mrf.mxu0
          %1315 = vdwg.mxu0
          %s1316 = sld [smem:[#allocation7]]
          %s1317 = sadd.f32 %s1316, 1.0
          %v1318 = vstv %s1317
          %v1319 = vmul.f32 %v1318, %v1139
          %v1320 = vmul.f32 %v1318, %v1140
          %v1321 = vmul.f32 %v1318, %v1141
          %v1322 = vmul.f32 %v1318, %v1142
          %v1323 = vmul.f32 %v1318, %v1143
          %v1324 = vmul.f32 %v1318, %v1144
          %v1325 = vmul.f32 %v1318, %v1145
          %v1326 = vmul.f32 %v1318, %v1146
          %v1327 = vmul.f32 %v1318, %v1147
          %v1328 = vmul.f32 %v1318, %v1148
          %v1329 = vmul.f32 %v1318, %v1149
          %v1330 = vmul.f32 %v1318, %v1150
          %v1331 = vmul.f32 %v1318, %v1151
          %v1332 = vmul.f32 %v1318, %v1152
          %v1333 = vmul.f32 %v1318, %v1153
          %v1334 = vmul.f32 %v1318, %v1154
          %v1335 = vadd.f32 %v1319, %v1238
          %v1336 = vadd.f32 %v1320, %v1243
          %v1337 = vadd.f32 %v1321, %v1248
          %v1338 = vadd.f32 %v1322, %v1253
          %v1339 = vadd.f32 %v1323, %v1258
          %v1340 = vadd.f32 %v1324, %v1263
          %v1341 = vadd.f32 %v1325, %v1268
          %v1342 = vadd.f32 %v1326, %v1273
          %v1343 = vadd.f32 %v1327, %v1278
          %v1344 = vadd.f32 %v1328, %v1283
          %v1345 = vadd.f32 %v1329, %v1288
          %v1346 = vadd.f32 %v1330, %v1293
          %v1347 = vadd.f32 %v1331, %v1298
          %v1348 = vadd.f32 %v1332, %v1303
          %v1349 = vadd.f32 %v1333, %v1308
          %v1350 = vadd.f32 %v1334, %v1313
          %v1351 = vpack.c.bf16 %v1336, %v1335
          %v1352 = vpack.c.bf16 %v1338, %v1337
          %v1353 = vpack.c.bf16 %v1340, %v1339
          %v1354 = vpack.c.bf16 %v1342, %v1341
          %v1355 = vpack.c.bf16 %v1344, %v1343
          %v1356 = vpack.c.bf16 %v1346, %v1345
          %v1357 = vpack.c.bf16 %v1348, %v1347
          %v1358 = vpack.c.bf16 %v1350, %v1349
          %v1359 = vld [vmem:[#allocation10] sm:$0xf]
          %v1360 = vld [vmem:[#allocation10 + $0x4] sm:$0xf]
          %v1361 = vld [vmem:[#allocation10 + $0x8] sm:$0xf]
          %v1362 = vld [vmem:[#allocation10 + $0xc] sm:$0xf]
          %v1363 = vld [vmem:[#allocation10 + $0x10] sm:$0xf]
          %v1364 = vld [vmem:[#allocation10 + $0x14] sm:$0xf]
          %v1365 = vld [vmem:[#allocation10 + $0x18] sm:$0xf]
          %v1366 = vld [vmem:[#allocation10 + $0x1c] sm:$0xf]
          %v1367 = vld [vmem:[#allocation10 + $0x20] sm:$0xf]
          %v1368 = vld [vmem:[#allocation10 + $0x24] sm:$0xf]
          %v1369 = vld [vmem:[#allocation10 + $0x28] sm:$0xf]
          %v1370 = vld [vmem:[#allocation10 + $0x2c] sm:$0xf]
          %v1371 = vld [vmem:[#allocation10 + $0x30] sm:$0xf]
          %v1372 = vld [vmem:[#allocation10 + $0x34] sm:$0xf]
          %v1373 = vld [vmem:[#allocation10 + $0x38] sm:$0xf]
          %v1374 = vld [vmem:[#allocation10 + $0x3c] sm:$0xf]
          %v1375 = vld [vmem:[%s4] sm:$0x1]
          %v1377 = vlaneseq
          %v1378 = vshrl.u32 %v1377, 7
          %v1379 = vsub.s32 0, %v1378
          %v1380 = vrot.slane %v1375, %v1379
          %v1398 = vunpack.c.l.b16 %v1359
          %v1399 = vunpack.c.l.b16 %v1360
          %v1400 = vunpack.c.l.b16 %v1361
          %v1401 = vunpack.c.l.b16 %v1362
          %v1402 = vunpack.c.l.b16 %v1363
          %v1403 = vunpack.c.l.b16 %v1364
          %v1404 = vunpack.c.l.b16 %v1365
          %v1405 = vunpack.c.l.b16 %v1366
          %v1406 = vunpack.c.l.b16 %v1367
          %v1407 = vunpack.c.l.b16 %v1368
          %v1408 = vunpack.c.l.b16 %v1369
          %v1409 = vunpack.c.l.b16 %v1370
          %v1410 = vunpack.c.l.b16 %v1371
          %v1411 = vunpack.c.l.b16 %v1372
          %v1412 = vunpack.c.l.b16 %v1373
          %v1413 = vunpack.c.l.b16 %v1374
          %v1414 = vpack.c.b16 %v1399, %v1398
          %v1415 = vpack.c.b16 %v1401, %v1400
          %v1416 = vpack.c.b16 %v1403, %v1402
          %v1417 = vpack.c.b16 %v1405, %v1404
          %v1418 = vpack.c.b16 %v1407, %v1406
          %v1419 = vpack.c.b16 %v1409, %v1408
          %v1420 = vpack.c.b16 %v1411, %v1410
          %v1421 = vpack.c.b16 %v1413, %v1412
          %1430 = vmatprep.subr.bf16.mxu0 0
          %1431 = vmatpush1.bf16.msra.mxu0 %v1421
          %1432 = vmatprep.subr.bf16.mxu0 0
          %1433 = vmatpush1.bf16.msra.mxu0 %v1420
          %1434 = vmatprep.subr.bf16.mxu0 0
          %1435 = vmatpush1.bf16.msra.mxu0 %v1419
          %1436 = vmatprep.subr.bf16.mxu0 0
          %1437 = vmatpush1.bf16.msra.mxu0 %v1418
          %1438 = vmatprep.subr.bf16.mxu0 0
          %1439 = vmatpush1.bf16.msra.mxu0 %v1417
          %1440 = vmatprep.subr.bf16.mxu0 0
          %1441 = vmatpush1.bf16.msra.mxu0 %v1416
          %1442 = vmatprep.subr.bf16.mxu0 0
          %1443 = vmatpush1.bf16.msra.mxu0 %v1415
          %1444 = vmatprep.subr.bf16.mxu0 0
          %1445 = vmatpush1.bf16.msra.mxu0 %v1414
          %1446 = vmatprep.subr.bf16.mxu0 0
          %1447 = vmatpush2.bf16.msra.mxu0 0
          %1448 = vmatprep.subr.bf16.mxu0 0
          %1449 = vmatpush2.bf16.msra.mxu0 0
          %1450 = vmatprep.subr.bf16.mxu0 0
          %1451 = vmatpush2.bf16.msra.mxu0 0
          %1452 = vmatprep.subr.bf16.mxu0 0
          %1453 = vmatpush2.bf16.msra.mxu0 0
          %1454 = vmatprep.subr.bf16.mxu0 0
          %1455 = vmatpush2.bf16.msra.mxu0 0
          %1456 = vmatprep.subr.bf16.mxu0 0
          %1457 = vmatpush2.bf16.msra.mxu0 0
          %1458 = vmatprep.subr.bf16.mxu0 0
          %1459 = vmatpush2.bf16.msra.mxu0 0
          %1460 = vmatprep.subr.bf16.mxu0 0
          %1461 = vmatpush2.bf16.msra.mxu0 0
          %1462 = vmatprep.mubr.bf16.mxu0 0
          %1463 = vmatmul.mubr.bf16.gmra.mxu0 %v1351
          %v1464 = vpop.f32.mrf.mxu0
          %v1465 = vadd.f32 %v1380, %v1464
          %v1466 = vpop.f32.mrf.mxu0
          %v1467 = vpop.f32.mrf.mxu0
          %v1468 = vadd.f32 %v1380, %v1467
          %v1469 = vpop.f32.mrf.mxu0
          %1470 = vmatprep.mubr.bf16.mxu0 0
          %1471 = vmatmul.mubr.bf16.gmra.mxu0 %v1352
          %v1472 = vpop.f32.mrf.mxu0
          %v1473 = vadd.f32 %v1380, %v1472
          %v1474 = vpop.f32.mrf.mxu0
          %v1475 = vpop.f32.mrf.mxu0
          %v1476 = vadd.f32 %v1380, %v1475
          %v1477 = vpop.f32.mrf.mxu0
          %1478 = vmatprep.mubr.bf16.mxu0 0
          %1479 = vmatmul.mubr.bf16.gmra.mxu0 %v1353
          %v1480 = vpop.f32.mrf.mxu0
          %v1481 = vadd.f32 %v1380, %v1480
          %v1482 = vpop.f32.mrf.mxu0
          %v1483 = vpop.f32.mrf.mxu0
          %v1484 = vadd.f32 %v1380, %v1483
          %v1485 = vpop.f32.mrf.mxu0
          %1486 = vmatprep.mubr.bf16.mxu0 0
          %1487 = vmatmul.mubr.bf16.gmra.mxu0 %v1354
          %v1488 = vpop.f32.mrf.mxu0
          %v1489 = vadd.f32 %v1380, %v1488
          %v1490 = vpop.f32.mrf.mxu0
          %v1491 = vpop.f32.mrf.mxu0
          %v1492 = vadd.f32 %v1380, %v1491
          %v1493 = vpop.f32.mrf.mxu0
          %1494 = vmatprep.mubr.bf16.mxu0 0
          %1495 = vmatmul.mubr.bf16.gmra.mxu0 %v1355
          %v1496 = vpop.f32.mrf.mxu0
          %v1497 = vadd.f32 %v1380, %v1496
          %v1498 = vpop.f32.mrf.mxu0
          %v1499 = vpop.f32.mrf.mxu0
          %v1500 = vadd.f32 %v1380, %v1499
          %v1501 = vpop.f32.mrf.mxu0
          %1502 = vmatprep.mubr.bf16.mxu0 0
          %1503 = vmatmul.mubr.bf16.gmra.mxu0 %v1356
          %v1504 = vpop.f32.mrf.mxu0
          %v1505 = vadd.f32 %v1380, %v1504
          %v1506 = vpop.f32.mrf.mxu0
          %v1507 = vpop.f32.mrf.mxu0
          %v1508 = vadd.f32 %v1380, %v1507
          %v1509 = vpop.f32.mrf.mxu0
          %1510 = vmatprep.mubr.bf16.mxu0 0
          %1511 = vmatmul.mubr.bf16.gmra.mxu0 %v1357
          %v1512 = vpop.f32.mrf.mxu0
          %v1513 = vadd.f32 %v1380, %v1512
          %v1514 = vpop.f32.mrf.mxu0
          %v1515 = vpop.f32.mrf.mxu0
          %v1516 = vadd.f32 %v1380, %v1515
          %v1517 = vpop.f32.mrf.mxu0
          %1518 = vmatprep.mubr.bf16.mxu0 0
          %1519 = vmatmul.mubr.bf16.gmra.mxu0 %v1358
          %v1520 = vpop.f32.mrf.mxu0
          %v1521 = vadd.f32 %v1380, %v1520
          %v1522 = vpop.f32.mrf.mxu0
          %v1523 = vpop.f32.mrf.mxu0
          %v1524 = vadd.f32 %v1380, %v1523
          %v1525 = vpop.f32.mrf.mxu0
          %1526 = vdwg.mxu0
          %v1527 = vmax.f32 %v1465, 0.0
          %v1528 = vmax.f32 %v1468, 0.0
          %v1529 = vmax.f32 %v1473, 0.0
          %v1530 = vmax.f32 %v1476, 0.0
          %v1531 = vmax.f32 %v1481, 0.0
          %v1532 = vmax.f32 %v1484, 0.0
          %v1533 = vmax.f32 %v1489, 0.0
          %v1534 = vmax.f32 %v1492, 0.0
          %v1535 = vmax.f32 %v1497, 0.0
          %v1536 = vmax.f32 %v1500, 0.0
          %v1537 = vmax.f32 %v1505, 0.0
          %v1538 = vmax.f32 %v1508, 0.0
          %v1539 = vmax.f32 %v1513, 0.0
          %v1540 = vmax.f32 %v1516, 0.0
          %v1541 = vmax.f32 %v1521, 0.0
          %v1542 = vmax.f32 %v1524, 0.0
          %v1543 = vpack.c.bf16 %v1528, %v1527
          %v1544 = vpack.c.bf16 %v1530, %v1529
          %v1545 = vpack.c.bf16 %v1532, %v1531
          %v1546 = vpack.c.bf16 %v1534, %v1533
          %v1547 = vpack.c.bf16 %v1536, %v1535
          %v1548 = vpack.c.bf16 %v1538, %v1537
          %v1549 = vpack.c.bf16 %v1540, %v1539
          %v1550 = vpack.c.bf16 %v1542, %v1541
          %v1551 = vld [vmem:[#allocation11] sm:$0xf]
          %v1552 = vld [vmem:[#allocation11 + $0x4] sm:$0xf]
          %v1553 = vld [vmem:[#allocation11 + $0x8] sm:$0xf]
          %v1554 = vld [vmem:[#allocation11 + $0xc] sm:$0xf]
          %v1555 = vld [vmem:[#allocation11 + $0x10] sm:$0xf]
          %v1556 = vld [vmem:[#allocation11 + $0x14] sm:$0xf]
          %v1557 = vld [vmem:[#allocation11 + $0x18] sm:$0xf]
          %v1558 = vld [vmem:[#allocation11 + $0x1c] sm:$0xf]
          %v1559 = vld [vmem:[#allocation11 + $0x20] sm:$0xf]
          %v1560 = vld [vmem:[#allocation11 + $0x24] sm:$0xf]
          %v1561 = vld [vmem:[#allocation11 + $0x28] sm:$0xf]
          %v1562 = vld [vmem:[#allocation11 + $0x2c] sm:$0xf]
          %v1563 = vld [vmem:[#allocation11 + $0x30] sm:$0xf]
          %v1564 = vld [vmem:[#allocation11 + $0x34] sm:$0xf]
          %v1565 = vld [vmem:[#allocation11 + $0x38] sm:$0xf]
          %v1566 = vld [vmem:[#allocation11 + $0x3c] sm:$0xf]
          %v1567 = vld [vmem:[%s6] sm:$0x1]
          %v1569 = vlaneseq
          %v1570 = vshrl.u32 %v1569, 7
          %v1571 = vsub.s32 0, %v1570
          %v1572 = vrot.slane %v1567, %v1571
          %v1590 = vunpack.c.l.b16 %v1551
          %v1591 = vunpack.c.l.b16 %v1552
          %v1592 = vunpack.c.l.b16 %v1553
          %v1593 = vunpack.c.l.b16 %v1554
          %v1594 = vunpack.c.l.b16 %v1555
          %v1595 = vunpack.c.l.b16 %v1556
          %v1596 = vunpack.c.l.b16 %v1557
          %v1597 = vunpack.c.l.b16 %v1558
          %v1598 = vunpack.c.l.b16 %v1559
          %v1599 = vunpack.c.l.b16 %v1560
          %v1600 = vunpack.c.l.b16 %v1561
          %v1601 = vunpack.c.l.b16 %v1562
          %v1602 = vunpack.c.l.b16 %v1563
          %v1603 = vunpack.c.l.b16 %v1564
          %v1604 = vunpack.c.l.b16 %v1565
          %v1605 = vunpack.c.l.b16 %v1566
          %v1606 = vpack.c.b16 %v1591, %v1590
          %v1607 = vpack.c.b16 %v1593, %v1592
          %v1608 = vpack.c.b16 %v1595, %v1594
          %v1609 = vpack.c.b16 %v1597, %v1596
          %v1610 = vpack.c.b16 %v1599, %v1598
          %v1611 = vpack.c.b16 %v1601, %v1600
          %v1612 = vpack.c.b16 %v1603, %v1602
          %v1613 = vpack.c.b16 %v1605, %v1604
          %1622 = vmatprep.subr.bf16.mxu0 0
          %1623 = vmatpush1.bf16.msra.mxu0 %v1613
          %1624 = vmatprep.subr.bf16.mxu0 0
          %1625 = vmatpush1.bf16.msra.mxu0 %v1612
          %1626 = vmatprep.subr.bf16.mxu0 0
          %1627 = vmatpush1.bf16.msra.mxu0 %v1611
          %1628 = vmatprep.subr.bf16.mxu0 0
          %1629 = vmatpush1.bf16.msra.mxu0 %v1610
          %1630 = vmatprep.subr.bf16.mxu0 0
          %1631 = vmatpush1.bf16.msra.mxu0 %v1609
          %1632 = vmatprep.subr.bf16.mxu0 0
          %1633 = vmatpush1.bf16.msra.mxu0 %v1608
          %1634 = vmatprep.subr.bf16.mxu0 0
          %1635 = vmatpush1.bf16.msra.mxu0 %v1607
          %1636 = vmatprep.subr.bf16.mxu0 0
          %1637 = vmatpush1.bf16.msra.mxu0 %v1606
          %1638 = vmatprep.subr.bf16.mxu0 0
          %1639 = vmatpush2.bf16.msra.mxu0 0
          %1640 = vmatprep.subr.bf16.mxu0 0
          %1641 = vmatpush2.bf16.msra.mxu0 0
          %1642 = vmatprep.subr.bf16.mxu0 0
          %1643 = vmatpush2.bf16.msra.mxu0 0
          %1644 = vmatprep.subr.bf16.mxu0 0
          %1645 = vmatpush2.bf16.msra.mxu0 0
          %1646 = vmatprep.subr.bf16.mxu0 0
          %1647 = vmatpush2.bf16.msra.mxu0 0
          %1648 = vmatprep.subr.bf16.mxu0 0
          %1649 = vmatpush2.bf16.msra.mxu0 0
          %1650 = vmatprep.subr.bf16.mxu0 0
          %1651 = vmatpush2.bf16.msra.mxu0 0
          %1652 = vmatprep.subr.bf16.mxu0 0
          %1653 = vmatpush2.bf16.msra.mxu0 0
          %1654 = vmatprep.mubr.bf16.mxu0 0
          %1655 = vmatmul.mubr.bf16.gmra.mxu0 %v1543
          %v1656 = vpop.f32.mrf.mxu0
          %v1657 = vadd.f32 %v1572, %v1656
          %v1658 = vpop.f32.mrf.mxu0
          %v1659 = vpop.f32.mrf.mxu0
          %v1660 = vadd.f32 %v1572, %v1659
          %v1661 = vpop.f32.mrf.mxu0
          %1662 = vmatprep.mubr.bf16.mxu0 0
          %1663 = vmatmul.mubr.bf16.gmra.mxu0 %v1544
          %v1664 = vpop.f32.mrf.mxu0
          %v1665 = vadd.f32 %v1572, %v1664
          %v1666 = vpop.f32.mrf.mxu0
          %v1667 = vpop.f32.mrf.mxu0
          %v1668 = vadd.f32 %v1572, %v1667
          %v1669 = vpop.f32.mrf.mxu0
          %1670 = vmatprep.mubr.bf16.mxu0 0
          %1671 = vmatmul.mubr.bf16.gmra.mxu0 %v1545
          %v1672 = vpop.f32.mrf.mxu0
          %v1673 = vadd.f32 %v1572, %v1672
          %v1674 = vpop.f32.mrf.mxu0
          %v1675 = vpop.f32.mrf.mxu0
          %v1676 = vadd.f32 %v1572, %v1675
          %v1677 = vpop.f32.mrf.mxu0
          %1678 = vmatprep.mubr.bf16.mxu0 0
          %1679 = vmatmul.mubr.bf16.gmra.mxu0 %v1546
          %v1680 = vpop.f32.mrf.mxu0
          %v1681 = vadd.f32 %v1572, %v1680
          %v1682 = vpop.f32.mrf.mxu0
          %v1683 = vpop.f32.mrf.mxu0
          %v1684 = vadd.f32 %v1572, %v1683
          %v1685 = vpop.f32.mrf.mxu0
          %1686 = vmatprep.mubr.bf16.mxu0 0
          %1687 = vmatmul.mubr.bf16.gmra.mxu0 %v1547
          %v1688 = vpop.f32.mrf.mxu0
          %v1689 = vadd.f32 %v1572, %v1688
          %v1690 = vpop.f32.mrf.mxu0
          %v1691 = vpop.f32.mrf.mxu0
          %v1692 = vadd.f32 %v1572, %v1691
          %v1693 = vpop.f32.mrf.mxu0
          %1694 = vmatprep.mubr.bf16.mxu0 0
          %1695 = vmatmul.mubr.bf16.gmra.mxu0 %v1548
          %v1696 = vpop.f32.mrf.mxu0
          %v1697 = vadd.f32 %v1572, %v1696
          %v1698 = vpop.f32.mrf.mxu0
          %v1699 = vpop.f32.mrf.mxu0
          %v1700 = vadd.f32 %v1572, %v1699
          %v1701 = vpop.f32.mrf.mxu0
          %1702 = vmatprep.mubr.bf16.mxu0 0
          %1703 = vmatmul.mubr.bf16.gmra.mxu0 %v1549
          %v1704 = vpop.f32.mrf.mxu0
          %v1705 = vadd.f32 %v1572, %v1704
          %v1706 = vpop.f32.mrf.mxu0
          %v1707 = vpop.f32.mrf.mxu0
          %v1708 = vadd.f32 %v1572, %v1707
          %v1709 = vpop.f32.mrf.mxu0
          %1710 = vmatprep.mubr.bf16.mxu0 0
          %1711 = vmatmul.mubr.bf16.gmra.mxu0 %v1550
          %v1712 = vpop.f32.mrf.mxu0
          %v1713 = vadd.f32 %v1572, %v1712
          %v1714 = vpop.f32.mrf.mxu0
          %v1715 = vpop.f32.mrf.mxu0
          %v1716 = vadd.f32 %v1572, %v1715
          %v1717 = vpop.f32.mrf.mxu0
          %1718 = vdwg.mxu0
          %1719 = vmatprep.subr.mxu0 0.0
          %1720 = vmatpush1.msra.mxu0 %v1716
          %1721 = vmatprep.subr.mxu0 0.0
          %1722 = vmatpush1.msra.mxu0 %v1713
          %1723 = vmatprep.subr.mxu0 0.0
          %1724 = vmatpush1.msra.mxu0 %v1708
          %1725 = vmatprep.subr.mxu0 0.0
          %1726 = vmatpush1.msra.mxu0 %v1705
          %1727 = vmatprep.subr.mxu0 0.0
          %1728 = vmatpush1.msra.mxu0 %v1700
          %1729 = vmatprep.subr.mxu0 0.0
          %1730 = vmatpush1.msra.mxu0 %v1697
          %1731 = vmatprep.subr.mxu0 0.0
          %1732 = vmatpush1.msra.mxu0 %v1692
          %1733 = vmatprep.subr.mxu0 0.0
          %1734 = vmatpush1.msra.mxu0 %v1689
          %1735 = vmatprep.subr.mxu0 0.0
          %1736 = vmatpush1.msra.mxu0 %v1684
          %1737 = vmatprep.subr.mxu0 0.0
          %1738 = vmatpush1.msra.mxu0 %v1681
          %1739 = vmatprep.subr.mxu0 0.0
          %1740 = vmatpush1.msra.mxu0 %v1676
          %1741 = vmatprep.subr.mxu0 0.0
          %1742 = vmatpush1.msra.mxu0 %v1673
          %1743 = vmatprep.subr.mxu0 0.0
          %1744 = vmatpush1.msra.mxu0 %v1668
          %1745 = vmatprep.subr.mxu0 0.0
          %1746 = vmatpush1.msra.mxu0 %v1665
          %1747 = vmatprep.subr.mxu0 0.0
          %1748 = vmatpush1.msra.mxu0 %v1660
          %1749 = vmatprep.subr.mxu0 0.0
          %1750 = vmatpush1.msra.mxu0 %v1657
          %1751 = vmatprep.subr.mxu0 0.0
          %1752 = vmatpush2.msra.mxu0 0.0
          %1753 = vmatprep.subr.mxu0 0.0
          %1754 = vmatpush2.msra.mxu0 0.0
          %1755 = vmatprep.subr.mxu0 0.0
          %1756 = vmatpush2.msra.mxu0 0.0
          %1757 = vmatprep.subr.mxu0 0.0
          %1758 = vmatpush2.msra.mxu0 0.0
          %1759 = vmatprep.subr.mxu0 0.0
          %1760 = vmatpush2.msra.mxu0 0.0
          %1761 = vmatprep.subr.mxu0 0.0
          %1762 = vmatpush2.msra.mxu0 0.0
          %1763 = vmatprep.subr.mxu0 0.0
          %1764 = vmatpush2.msra.mxu0 0.0
          %1765 = vmatprep.subr.mxu0 0.0
          %1766 = vmatpush2.msra.mxu0 0.0
          %1767 = vmatprep.subr.mxu0 0.0
          %1768 = vmatpush2.msra.mxu0 0.0
          %1769 = vmatprep.subr.mxu0 0.0
          %1770 = vmatpush2.msra.mxu0 0.0
          %1771 = vmatprep.subr.mxu0 0.0
          %1772 = vmatpush2.msra.mxu0 0.0
          %1773 = vmatprep.subr.mxu0 0.0
          %1774 = vmatpush2.msra.mxu0 0.0
          %1775 = vmatprep.subr.mxu0 0.0
          %1776 = vmatpush2.msra.mxu0 0.0
          %1777 = vmatprep.subr.mxu0 0.0
          %1778 = vmatpush2.msra.mxu0 0.0
          %1779 = vmatprep.subr.mxu0 0.0
          %1780 = vmatpush2.msra.mxu0 0.0
          %1781 = vmatprep.subr.mxu0 0.0
          %1782 = vmatpush2.msra.mxu0 0.0
          %1783 = vmatprep.mubr.f32.mxu0 0.0
          %1784 = vmatmul.mubr.f32.gmra.mxu0 %v1155
          %v1785 = vpop.f32.mrf.mxu0
          %v1786 = vadd.f32 0.0, %v1785
          %v1787 = vpop.f32.mrf.mxu0
          %1788 = vmatprep.mubr.f32.mxu0 0.0
          %1789 = vmatmul.mubr.f32.gmra.mxu0 %v1156
          %v1790 = vpop.f32.mrf.mxu0
          %v1791 = vadd.f32 0.0, %v1790
          %v1792 = vpop.f32.mrf.mxu0
          %1793 = vmatprep.mubr.f32.mxu0 0.0
          %1794 = vmatmul.mubr.f32.gmra.mxu0 %v1157
          %v1795 = vpop.f32.mrf.mxu0
          %v1796 = vadd.f32 0.0, %v1795
          %v1797 = vpop.f32.mrf.mxu0
          %1798 = vmatprep.mubr.f32.mxu0 0.0
          %1799 = vmatmul.mubr.f32.gmra.mxu0 %v1158
          %v1800 = vpop.f32.mrf.mxu0
          %v1801 = vadd.f32 0.0, %v1800
          %v1802 = vpop.f32.mrf.mxu0
          %1803 = vmatprep.mubr.f32.mxu0 0.0
          %1804 = vmatmul.mubr.f32.gmra.mxu0 %v1159
          %v1805 = vpop.f32.mrf.mxu0
          %v1806 = vadd.f32 0.0, %v1805
          %v1807 = vpop.f32.mrf.mxu0
          %1808 = vmatprep.mubr.f32.mxu0 0.0
          %1809 = vmatmul.mubr.f32.gmra.mxu0 %v1160
          %v1810 = vpop.f32.mrf.mxu0
          %v1811 = vadd.f32 0.0, %v1810
          %v1812 = vpop.f32.mrf.mxu0
          %1813 = vmatprep.mubr.f32.mxu0 0.0
          %1814 = vmatmul.mubr.f32.gmra.mxu0 %v1161
          %v1815 = vpop.f32.mrf.mxu0
          %v1816 = vadd.f32 0.0, %v1815
          %v1817 = vpop.f32.mrf.mxu0
          %1818 = vmatprep.mubr.f32.mxu0 0.0
          %1819 = vmatmul.mubr.f32.gmra.mxu0 %v1162
          %v1820 = vpop.f32.mrf.mxu0
          %v1821 = vadd.f32 0.0, %v1820
          %v1822 = vpop.f32.mrf.mxu0
          %1823 = vmatprep.mubr.f32.mxu0 0.0
          %1824 = vmatmul.mubr.f32.gmra.mxu0 %v1163
          %v1825 = vpop.f32.mrf.mxu0
          %v1826 = vadd.f32 0.0, %v1825
          %v1827 = vpop.f32.mrf.mxu0
          %1828 = vmatprep.mubr.f32.mxu0 0.0
          %1829 = vmatmul.mubr.f32.gmra.mxu0 %v1164
          %v1830 = vpop.f32.mrf.mxu0
          %v1831 = vadd.f32 0.0, %v1830
          %v1832 = vpop.f32.mrf.mxu0
          %1833 = vmatprep.mubr.f32.mxu0 0.0
          %1834 = vmatmul.mubr.f32.gmra.mxu0 %v1165
          %v1835 = vpop.f32.mrf.mxu0
          %v1836 = vadd.f32 0.0, %v1835
          %v1837 = vpop.f32.mrf.mxu0
          %1838 = vmatprep.mubr.f32.mxu0 0.0
          %1839 = vmatmul.mubr.f32.gmra.mxu0 %v1166
          %v1840 = vpop.f32.mrf.mxu0
          %v1841 = vadd.f32 0.0, %v1840
          %v1842 = vpop.f32.mrf.mxu0
          %1843 = vmatprep.mubr.f32.mxu0 0.0
          %1844 = vmatmul.mubr.f32.gmra.mxu0 %v1167
          %v1845 = vpop.f32.mrf.mxu0
          %v1846 = vadd.f32 0.0, %v1845
          %v1847 = vpop.f32.mrf.mxu0
          %1848 = vmatprep.mubr.f32.mxu0 0.0
          %1849 = vmatmul.mubr.f32.gmra.mxu0 %v1168
          %v1850 = vpop.f32.mrf.mxu0
          %v1851 = vadd.f32 0.0, %v1850
          %v1852 = vpop.f32.mrf.mxu0
          %1853 = vmatprep.mubr.f32.mxu0 0.0
          %1854 = vmatmul.mubr.f32.gmra.mxu0 %v1169
          %v1855 = vpop.f32.mrf.mxu0
          %v1856 = vadd.f32 0.0, %v1855
          %v1857 = vpop.f32.mrf.mxu0
          %1858 = vmatprep.mubr.f32.mxu0 0.0
          %1859 = vmatmul.mubr.f32.gmra.mxu0 %v1170
          %v1860 = vpop.f32.mrf.mxu0
          %v1861 = vadd.f32 0.0, %v1860
          %v1862 = vpop.f32.mrf.mxu0
          %1863 = vdwg.mxu0
          %s1864 = sld [smem:[#allocation7 + $0x1]]
          %s1865 = sadd.f32 %s1864, 1.0
          %v1866 = vstv %s1865
          %v1867 = vmul.f32 %v1866, %v1657
          %v1868 = vmul.f32 %v1866, %v1660
          %v1869 = vmul.f32 %v1866, %v1665
          %v1870 = vmul.f32 %v1866, %v1668
          %v1871 = vmul.f32 %v1866, %v1673
          %v1872 = vmul.f32 %v1866, %v1676
          %v1873 = vmul.f32 %v1866, %v1681
          %v1874 = vmul.f32 %v1866, %v1684
          %v1875 = vmul.f32 %v1866, %v1689
          %v1876 = vmul.f32 %v1866, %v1692
          %v1877 = vmul.f32 %v1866, %v1697
          %v1878 = vmul.f32 %v1866, %v1700
          %v1879 = vmul.f32 %v1866, %v1705
          %v1880 = vmul.f32 %v1866, %v1708
          %v1881 = vmul.f32 %v1866, %v1713
          %v1882 = vmul.f32 %v1866, %v1716
          %v1883 = vadd.f32 %v1867, %v1786
          %v1884 = vadd.f32 %v1868, %v1791
          %v1885 = vadd.f32 %v1869, %v1796
          %v1886 = vadd.f32 %v1870, %v1801
          %v1887 = vadd.f32 %v1871, %v1806
          %v1888 = vadd.f32 %v1872, %v1811
          %v1889 = vadd.f32 %v1873, %v1816
          %v1890 = vadd.f32 %v1874, %v1821
          %v1891 = vadd.f32 %v1875, %v1826
          %v1892 = vadd.f32 %v1876, %v1831
          %v1893 = vadd.f32 %v1877, %v1836
          %v1894 = vadd.f32 %v1878, %v1841
          %v1895 = vadd.f32 %v1879, %v1846
          %v1896 = vadd.f32 %v1880, %v1851
          %v1897 = vadd.f32 %v1881, %v1856
          %v1898 = vadd.f32 %v1882, %v1861
          %v1899 = vpack.c.bf16 %v1884, %v1883
          %v1900 = vpack.c.bf16 %v1886, %v1885
          %v1901 = vpack.c.bf16 %v1888, %v1887
          %v1902 = vpack.c.bf16 %v1890, %v1889
          %v1903 = vpack.c.bf16 %v1892, %v1891
          %v1904 = vpack.c.bf16 %v1894, %v1893
          %v1905 = vpack.c.bf16 %v1896, %v1895
          %v1906 = vpack.c.bf16 %v1898, %v1897
          %s1907 = scalar_lea.vmem [#allocation10], 64
          %v1908 = vld [vmem:[%s1907] sm:$0xf]
          %v1909 = vld [vmem:[%s1907 + $0x4] sm:$0xf]
          %v1910 = vld [vmem:[%s1907 + $0x8] sm:$0xf]
          %v1911 = vld [vmem:[%s1907 + $0xc] sm:$0xf]
          %v1912 = vld [vmem:[%s1907 + $0x10] sm:$0xf]
          %v1913 = vld [vmem:[%s1907 + $0x14] sm:$0xf]
          %v1914 = vld [vmem:[%s1907 + $0x18] sm:$0xf]
          %v1915 = vld [vmem:[%s1907 + $0x1c] sm:$0xf]
          %v1916 = vld [vmem:[%s1907 + $0x20] sm:$0xf]
          %v1917 = vld [vmem:[%s1907 + $0x24] sm:$0xf]
          %v1918 = vld [vmem:[%s1907 + $0x28] sm:$0xf]
          %v1919 = vld [vmem:[%s1907 + $0x2c] sm:$0xf]
          %v1920 = vld [vmem:[%s1907 + $0x30] sm:$0xf]
          %v1921 = vld [vmem:[%s1907 + $0x34] sm:$0xf]
          %v1922 = vld [vmem:[%s1907 + $0x38] sm:$0xf]
          %v1923 = vld [vmem:[%s1907 + $0x3c] sm:$0xf]
          %s1924 = scalar_lea.vmem %s4, 1
          %v1925 = vld [vmem:[%s1924] sm:$0x1]
          %v1927 = vlaneseq
          %v1928 = vshrl.u32 %v1927, 7
          %v1929 = vsub.s32 0, %v1928
          %v1930 = vrot.slane %v1925, %v1929
          %v1948 = vunpack.c.l.b16 %v1908
          %v1949 = vunpack.c.l.b16 %v1909
          %v1950 = vunpack.c.l.b16 %v1910
          %v1951 = vunpack.c.l.b16 %v1911
          %v1952 = vunpack.c.l.b16 %v1912
          %v1953 = vunpack.c.l.b16 %v1913
          %v1954 = vunpack.c.l.b16 %v1914
          %v1955 = vunpack.c.l.b16 %v1915
          %v1956 = vunpack.c.l.b16 %v1916
          %v1957 = vunpack.c.l.b16 %v1917
          %v1958 = vunpack.c.l.b16 %v1918
          %v1959 = vunpack.c.l.b16 %v1919
          %v1960 = vunpack.c.l.b16 %v1920
          %v1961 = vunpack.c.l.b16 %v1921
          %v1962 = vunpack.c.l.b16 %v1922
          %v1963 = vunpack.c.l.b16 %v1923
          %v1964 = vpack.c.b16 %v1949, %v1948
          %v1965 = vpack.c.b16 %v1951, %v1950
          %v1966 = vpack.c.b16 %v1953, %v1952
          %v1967 = vpack.c.b16 %v1955, %v1954
          %v1968 = vpack.c.b16 %v1957, %v1956
          %v1969 = vpack.c.b16 %v1959, %v1958
          %v1970 = vpack.c.b16 %v1961, %v1960
          %v1971 = vpack.c.b16 %v1963, %v1962
          %1980 = vmatprep.subr.bf16.mxu0 0
          %1981 = vmatpush1.bf16.msra.mxu0 %v1971
          %1982 = vmatprep.subr.bf16.mxu0 0
          %1983 = vmatpush1.bf16.msra.mxu0 %v1970
          %1984 = vmatprep.subr.bf16.mxu0 0
          %1985 = vmatpush1.bf16.msra.mxu0 %v1969
          %1986 = vmatprep.subr.bf16.mxu0 0
          %1987 = vmatpush1.bf16.msra.mxu0 %v1968
          %1988 = vmatprep.subr.bf16.mxu0 0
          %1989 = vmatpush1.bf16.msra.mxu0 %v1967
          %1990 = vmatprep.subr.bf16.mxu0 0
          %1991 = vmatpush1.bf16.msra.mxu0 %v1966
          %1992 = vmatprep.subr.bf16.mxu0 0
          %1993 = vmatpush1.bf16.msra.mxu0 %v1965
          %1994 = vmatprep.subr.bf16.mxu0 0
          %1995 = vmatpush1.bf16.msra.mxu0 %v1964
          %1996 = vmatprep.subr.bf16.mxu0 0
          %1997 = vmatpush2.bf16.msra.mxu0 0
          %1998 = vmatprep.subr.bf16.mxu0 0
          %1999 = vmatpush2.bf16.msra.mxu0 0
          %2000 = vmatprep.subr.bf16.mxu0 0
          %2001 = vmatpush2.bf16.msra.mxu0 0
          %2002 = vmatprep.subr.bf16.mxu0 0
          %2003 = vmatpush2.bf16.msra.mxu0 0
          %2004 = vmatprep.subr.bf16.mxu0 0
          %2005 = vmatpush2.bf16.msra.mxu0 0
          %2006 = vmatprep.subr.bf16.mxu0 0
          %2007 = vmatpush2.bf16.msra.mxu0 0
          %2008 = vmatprep.subr.bf16.mxu0 0
          %2009 = vmatpush2.bf16.msra.mxu0 0
          %2010 = vmatprep.subr.bf16.mxu0 0
          %2011 = vmatpush2.bf16.msra.mxu0 0
          %2012 = vmatprep.mubr.bf16.mxu0 0
          %2013 = vmatmul.mubr.bf16.gmra.mxu0 %v1899
          %v2014 = vpop.f32.mrf.mxu0
          %v2015 = vadd.f32 %v1930, %v2014
          %v2016 = vpop.f32.mrf.mxu0
          %v2017 = vpop.f32.mrf.mxu0
          %v2018 = vadd.f32 %v1930, %v2017
          %v2019 = vpop.f32.mrf.mxu0
          %2020 = vmatprep.mubr.bf16.mxu0 0
          %2021 = vmatmul.mubr.bf16.gmra.mxu0 %v1900
          %v2022 = vpop.f32.mrf.mxu0
          %v2023 = vadd.f32 %v1930, %v2022
          %v2024 = vpop.f32.mrf.mxu0
          %v2025 = vpop.f32.mrf.mxu0
          %v2026 = vadd.f32 %v1930, %v2025
          %v2027 = vpop.f32.mrf.mxu0
          %2028 = vmatprep.mubr.bf16.mxu0 0
          %2029 = vmatmul.mubr.bf16.gmra.mxu0 %v1901
          %v2030 = vpop.f32.mrf.mxu0
          %v2031 = vadd.f32 %v1930, %v2030
          %v2032 = vpop.f32.mrf.mxu0
          %v2033 = vpop.f32.mrf.mxu0
          %v2034 = vadd.f32 %v1930, %v2033
          %v2035 = vpop.f32.mrf.mxu0
          %2036 = vmatprep.mubr.bf16.mxu0 0
          %2037 = vmatmul.mubr.bf16.gmra.mxu0 %v1902
          %v2038 = vpop.f32.mrf.mxu0
          %v2039 = vadd.f32 %v1930, %v2038
          %v2040 = vpop.f32.mrf.mxu0
          %v2041 = vpop.f32.mrf.mxu0
          %v2042 = vadd.f32 %v1930, %v2041
          %v2043 = vpop.f32.mrf.mxu0
          %2044 = vmatprep.mubr.bf16.mxu0 0
          %2045 = vmatmul.mubr.bf16.gmra.mxu0 %v1903
          %v2046 = vpop.f32.mrf.mxu0
          %v2047 = vadd.f32 %v1930, %v2046
          %v2048 = vpop.f32.mrf.mxu0
          %v2049 = vpop.f32.mrf.mxu0
          %v2050 = vadd.f32 %v1930, %v2049
          %v2051 = vpop.f32.mrf.mxu0
          %2052 = vmatprep.mubr.bf16.mxu0 0
          %2053 = vmatmul.mubr.bf16.gmra.mxu0 %v1904
          %v2054 = vpop.f32.mrf.mxu0
          %v2055 = vadd.f32 %v1930, %v2054
          %v2056 = vpop.f32.mrf.mxu0
          %v2057 = vpop.f32.mrf.mxu0
          %v2058 = vadd.f32 %v1930, %v2057
          %v2059 = vpop.f32.mrf.mxu0
          %2060 = vmatprep.mubr.bf16.mxu0 0
          %2061 = vmatmul.mubr.bf16.gmra.mxu0 %v1905
          %v2062 = vpop.f32.mrf.mxu0
          %v2063 = vadd.f32 %v1930, %v2062
          %v2064 = vpop.f32.mrf.mxu0
          %v2065 = vpop.f32.mrf.mxu0
          %v2066 = vadd.f32 %v1930, %v2065
          %v2067 = vpop.f32.mrf.mxu0
          %2068 = vmatprep.mubr.bf16.mxu0 0
          %2069 = vmatmul.mubr.bf16.gmra.mxu0 %v1906
          %v2070 = vpop.f32.mrf.mxu0
          %v2071 = vadd.f32 %v1930, %v2070
          %v2072 = vpop.f32.mrf.mxu0
          %v2073 = vpop.f32.mrf.mxu0
          %v2074 = vadd.f32 %v1930, %v2073
          %v2075 = vpop.f32.mrf.mxu0
          %2076 = vdwg.mxu0
          %v2077 = vmax.f32 %v2015, 0.0
          %v2078 = vmax.f32 %v2018, 0.0
          %v2079 = vmax.f32 %v2023, 0.0
          %v2080 = vmax.f32 %v2026, 0.0
          %v2081 = vmax.f32 %v2031, 0.0
          %v2082 = vmax.f32 %v2034, 0.0
          %v2083 = vmax.f32 %v2039, 0.0
          %v2084 = vmax.f32 %v2042, 0.0
          %v2085 = vmax.f32 %v2047, 0.0
          %v2086 = vmax.f32 %v2050, 0.0
          %v2087 = vmax.f32 %v2055, 0.0
          %v2088 = vmax.f32 %v2058, 0.0
          %v2089 = vmax.f32 %v2063, 0.0
          %v2090 = vmax.f32 %v2066, 0.0
          %v2091 = vmax.f32 %v2071, 0.0
          %v2092 = vmax.f32 %v2074, 0.0
          %v2093 = vpack.c.bf16 %v2078, %v2077
          %v2094 = vpack.c.bf16 %v2080, %v2079
          %v2095 = vpack.c.bf16 %v2082, %v2081
          %v2096 = vpack.c.bf16 %v2084, %v2083
          %v2097 = vpack.c.bf16 %v2086, %v2085
          %v2098 = vpack.c.bf16 %v2088, %v2087
          %v2099 = vpack.c.bf16 %v2090, %v2089
          %v2100 = vpack.c.bf16 %v2092, %v2091
          %s2101 = scalar_lea.vmem [#allocation11], 64
          %v2102 = vld [vmem:[%s2101] sm:$0xf]
          %v2103 = vld [vmem:[%s2101 + $0x4] sm:$0xf]
          %v2104 = vld [vmem:[%s2101 + $0x8] sm:$0xf]
          %v2105 = vld [vmem:[%s2101 + $0xc] sm:$0xf]
          %v2106 = vld [vmem:[%s2101 + $0x10] sm:$0xf]
          %v2107 = vld [vmem:[%s2101 + $0x14] sm:$0xf]
          %v2108 = vld [vmem:[%s2101 + $0x18] sm:$0xf]
          %v2109 = vld [vmem:[%s2101 + $0x1c] sm:$0xf]
          %v2110 = vld [vmem:[%s2101 + $0x20] sm:$0xf]
          %v2111 = vld [vmem:[%s2101 + $0x24] sm:$0xf]
          %v2112 = vld [vmem:[%s2101 + $0x28] sm:$0xf]
          %v2113 = vld [vmem:[%s2101 + $0x2c] sm:$0xf]
          %v2114 = vld [vmem:[%s2101 + $0x30] sm:$0xf]
          %v2115 = vld [vmem:[%s2101 + $0x34] sm:$0xf]
          %v2116 = vld [vmem:[%s2101 + $0x38] sm:$0xf]
          %v2117 = vld [vmem:[%s2101 + $0x3c] sm:$0xf]
          %s2118 = scalar_lea.vmem %s6, 1
          %v2119 = vld [vmem:[%s2118] sm:$0x1]
          %v2121 = vlaneseq
          %v2122 = vshrl.u32 %v2121, 7
          %v2123 = vsub.s32 0, %v2122
          %v2124 = vrot.slane %v2119, %v2123
          %v2142 = vunpack.c.l.b16 %v2102
          %v2143 = vunpack.c.l.b16 %v2103
          %v2144 = vunpack.c.l.b16 %v2104
          %v2145 = vunpack.c.l.b16 %v2105
          %v2146 = vunpack.c.l.b16 %v2106
          %v2147 = vunpack.c.l.b16 %v2107
          %v2148 = vunpack.c.l.b16 %v2108
          %v2149 = vunpack.c.l.b16 %v2109
          %v2150 = vunpack.c.l.b16 %v2110
          %v2151 = vunpack.c.l.b16 %v2111
          %v2152 = vunpack.c.l.b16 %v2112
          %v2153 = vunpack.c.l.b16 %v2113
          %v2154 = vunpack.c.l.b16 %v2114
          %v2155 = vunpack.c.l.b16 %v2115
          %v2156 = vunpack.c.l.b16 %v2116
          %v2157 = vunpack.c.l.b16 %v2117
          %v2158 = vpack.c.b16 %v2143, %v2142
          %v2159 = vpack.c.b16 %v2145, %v2144
          %v2160 = vpack.c.b16 %v2147, %v2146
          %v2161 = vpack.c.b16 %v2149, %v2148
          %v2162 = vpack.c.b16 %v2151, %v2150
          %v2163 = vpack.c.b16 %v2153, %v2152
          %v2164 = vpack.c.b16 %v2155, %v2154
          %v2165 = vpack.c.b16 %v2157, %v2156
          %2174 = vmatprep.subr.bf16.mxu0 0
          %2175 = vmatpush1.bf16.msra.mxu0 %v2165
          %2176 = vmatprep.subr.bf16.mxu0 0
          %2177 = vmatpush1.bf16.msra.mxu0 %v2164
          %2178 = vmatprep.subr.bf16.mxu0 0
          %2179 = vmatpush1.bf16.msra.mxu0 %v2163
          %2180 = vmatprep.subr.bf16.mxu0 0
          %2181 = vmatpush1.bf16.msra.mxu0 %v2162
          %2182 = vmatprep.subr.bf16.mxu0 0
          %2183 = vmatpush1.bf16.msra.mxu0 %v2161
          %2184 = vmatprep.subr.bf16.mxu0 0
          %2185 = vmatpush1.bf16.msra.mxu0 %v2160
          %2186 = vmatprep.subr.bf16.mxu0 0
          %2187 = vmatpush1.bf16.msra.mxu0 %v2159
          %2188 = vmatprep.subr.bf16.mxu0 0
          %2189 = vmatpush1.bf16.msra.mxu0 %v2158
          %2190 = vmatprep.subr.bf16.mxu0 0
          %2191 = vmatpush2.bf16.msra.mxu0 0
          %2192 = vmatprep.subr.bf16.mxu0 0
          %2193 = vmatpush2.bf16.msra.mxu0 0
          %2194 = vmatprep.subr.bf16.mxu0 0
          %2195 = vmatpush2.bf16.msra.mxu0 0
          %2196 = vmatprep.subr.bf16.mxu0 0
          %2197 = vmatpush2.bf16.msra.mxu0 0
          %2198 = vmatprep.subr.bf16.mxu0 0
          %2199 = vmatpush2.bf16.msra.mxu0 0
          %2200 = vmatprep.subr.bf16.mxu0 0
          %2201 = vmatpush2.bf16.msra.mxu0 0
          %2202 = vmatprep.subr.bf16.mxu0 0
          %2203 = vmatpush2.bf16.msra.mxu0 0
          %2204 = vmatprep.subr.bf16.mxu0 0
          %2205 = vmatpush2.bf16.msra.mxu0 0
          %2206 = vmatprep.mubr.bf16.mxu0 0
          %2207 = vmatmul.mubr.bf16.gmra.mxu0 %v2093
          %v2208 = vpop.f32.mrf.mxu0
          %v2209 = vadd.f32 %v2124, %v2208
          %v2210 = vpop.f32.mrf.mxu0
          %v2211 = vpop.f32.mrf.mxu0
          %v2212 = vadd.f32 %v2124, %v2211
          %v2213 = vpop.f32.mrf.mxu0
          %2214 = vmatprep.mubr.bf16.mxu0 0
          %2215 = vmatmul.mubr.bf16.gmra.mxu0 %v2094
          %v2216 = vpop.f32.mrf.mxu0
          %v2217 = vadd.f32 %v2124, %v2216
          %v2218 = vpop.f32.mrf.mxu0
          %v2219 = vpop.f32.mrf.mxu0
          %v2220 = vadd.f32 %v2124, %v2219
          %v2221 = vpop.f32.mrf.mxu0
          %2222 = vmatprep.mubr.bf16.mxu0 0
          %2223 = vmatmul.mubr.bf16.gmra.mxu0 %v2095
          %v2224 = vpop.f32.mrf.mxu0
          %v2225 = vadd.f32 %v2124, %v2224
          %v2226 = vpop.f32.mrf.mxu0
          %v2227 = vpop.f32.mrf.mxu0
          %v2228 = vadd.f32 %v2124, %v2227
          %v2229 = vpop.f32.mrf.mxu0
          %2230 = vmatprep.mubr.bf16.mxu0 0
          %2231 = vmatmul.mubr.bf16.gmra.mxu0 %v2096
          %v2232 = vpop.f32.mrf.mxu0
          %v2233 = vadd.f32 %v2124, %v2232
          %v2234 = vpop.f32.mrf.mxu0
          %v2235 = vpop.f32.mrf.mxu0
          %v2236 = vadd.f32 %v2124, %v2235
          %v2237 = vpop.f32.mrf.mxu0
          %2238 = vmatprep.mubr.bf16.mxu0 0
          %2239 = vmatmul.mubr.bf16.gmra.mxu0 %v2097
          %v2240 = vpop.f32.mrf.mxu0
          %v2241 = vadd.f32 %v2124, %v2240
          %v2242 = vpop.f32.mrf.mxu0
          %v2243 = vpop.f32.mrf.mxu0
          %v2244 = vadd.f32 %v2124, %v2243
          %v2245 = vpop.f32.mrf.mxu0
          %2246 = vmatprep.mubr.bf16.mxu0 0
          %2247 = vmatmul.mubr.bf16.gmra.mxu0 %v2098
          %v2248 = vpop.f32.mrf.mxu0
          %v2249 = vadd.f32 %v2124, %v2248
          %v2250 = vpop.f32.mrf.mxu0
          %v2251 = vpop.f32.mrf.mxu0
          %v2252 = vadd.f32 %v2124, %v2251
          %v2253 = vpop.f32.mrf.mxu0
          %2254 = vmatprep.mubr.bf16.mxu0 0
          %2255 = vmatmul.mubr.bf16.gmra.mxu0 %v2099
          %v2256 = vpop.f32.mrf.mxu0
          %v2257 = vadd.f32 %v2124, %v2256
          %v2258 = vpop.f32.mrf.mxu0
          %v2259 = vpop.f32.mrf.mxu0
          %v2260 = vadd.f32 %v2124, %v2259
          %v2261 = vpop.f32.mrf.mxu0
          %2262 = vmatprep.mubr.bf16.mxu0 0
          %2263 = vmatmul.mubr.bf16.gmra.mxu0 %v2100
          %v2264 = vpop.f32.mrf.mxu0
          %v2265 = vadd.f32 %v2124, %v2264
          %v2266 = vpop.f32.mrf.mxu0
          %v2267 = vpop.f32.mrf.mxu0
          %v2268 = vadd.f32 %v2124, %v2267
          %v2269 = vpop.f32.mrf.mxu0
          %2270 = vdwg.mxu0
          %2271 = vst [vmem:[#allocation13] sm:$0xff] %v2209
          %2272 = vst [vmem:[#allocation13 + $0x8] sm:$0xff] %v2212
          %2273 = vst [vmem:[#allocation13 + $0x10] sm:$0xff] %v2217
          %2274 = vst [vmem:[#allocation13 + $0x18] sm:$0xff] %v2220
          %2275 = vst [vmem:[#allocation13 + $0x20] sm:$0xff] %v2225
          %2276 = vst [vmem:[#allocation13 + $0x28] sm:$0xff] %v2228
          %2277 = vst [vmem:[#allocation13 + $0x30] sm:$0xff] %v2233
          %2278 = vst [vmem:[#allocation13 + $0x38] sm:$0xff] %v2236
          %2279 = vst [vmem:[#allocation13 + $0x40] sm:$0xff] %v2241
          %2280 = vst [vmem:[#allocation13 + $0x48] sm:$0xff] %v2244
          %2281 = vst [vmem:[#allocation13 + $0x50] sm:$0xff] %v2249
          %2282 = vst [vmem:[#allocation13 + $0x58] sm:$0xff] %v2252
          %2283 = vst [vmem:[#allocation13 + $0x60] sm:$0xff] %v2257
          %2284 = vst [vmem:[#allocation13 + $0x68] sm:$0xff] %v2260
          %2285 = vst [vmem:[#allocation13 + $0x70] sm:$0xff] %v2265
          %2286 = vst [vmem:[#allocation13 + $0x78] sm:$0xff] %v2268
        $region76: #{tpu_custom_call.1} parent=47 // pred_fallthru
          _
        // Predicated region
        $region77: #{tpu_custom_call.1} parent=47 // pred_check
          %p2287 = pneg %p190
        $region78: #{tpu_custom_call.1} parent=47 // pred_check_branch
          %2289 = sbr.rel (%p2287) target = $region80
        $region79: #{tpu_custom_call.1} parent=47 // pred_region
          %s2291 = ssub.s32 2048, 2048
          %2292 = vsyncadd [#allocation5], %s2291
          %s2293 = sshll.u32 [#allocation13], 4
          %s2294 = int_to_ptr.vmem [resolvable:$true] %s2293
          %2299 = dma.vmem_to_hbm [thread:$0]  %s2294, 2048, %s7, [#allocation5], 128, 128, 8
        $region80: #{tpu_custom_call.1} parent=47 // pred_fallthru
          _
        // Predicated region
        $region81: #{tpu_custom_call.1} parent=47 // pred_check
          %p2300 = pneg %p190
        $region82: #{tpu_custom_call.1} parent=47 // pred_check_branch
          %2302 = sbr.rel (%p2300) target = $region84
        $region83: #{tpu_custom_call.1} parent=47 // pred_region
          %2303 = dma.done [#allocation5], 2048
        $region84: #{tpu_custom_call.1} parent=47 // pred_fallthru
          _
      $region48: #{tpu_custom_call.1} parent=5 // pred_fallthru
        _
      %p2304 = scmp.le.s32.totalorder 2, %s20
      // Predicated region
      $region85: #{tpu_custom_call.1} parent=5 // pred_check
        %p2305 = pneg %p2304
      $region86: #{tpu_custom_call.1} parent=5 // pred_check_branch
        %2307 = sbr.rel (%p2305) target = $region88
      $region87: #{tpu_custom_call.1} parent=5 // pred_region
        %s2308 = ssub.s32 %s20, 2
      $region88: #{tpu_custom_call.1} parent=5 // pred_fallthru
        _
    $region6: #{tpu_custom_call.1} parent=1 // loop_footer
      %s24 = sadd.s32 1, %s20
    $region7: #{tpu_custom_call.1} parent=1 // loop_footer_branch
      %19 = sbr.rel target = $region3
    $region8: #{tpu_custom_call.1} parent=1 // loop_exit
      _
    %2309 = vsyncpa [#allocation4], 1
    %s2310 = scalar_lea.sflag [#allocation4], 1
    %2311 = vsyncpa %s2310, 1
    %2312 = vsyncpa [#allocation9], 1
    %2313 = vsyncpa [#allocation12], 1
    %2314 = vsyncpa [#allocation5], 1
    %s2315 = scalar_lea.sflag [#allocation5], 1
    %2316 = vsyncpa %s2315, 1
    %2317 = vsyncpa [#allocation6], 1
    %s2318 = scalar_lea.sflag [#allocation6], 1
    %2319 = vsyncpa %s2318, 1

// kernel: tpu_custom_call.1
$region0: #{tpu_custom_call.1}
  #allocation0 [shape = 'u32[]', space=smem, size = 0x4, offset = 0x4, fixed_abs, tag = 'smem constant byte address 0x4 - core index']
  #allocation1 [shape = 'u32[144,128]{1,0:T(1,128)}', space=vmem, size = 0x12000, scoped, tag = 'internal scratch']
  #allocation2 [shape = 'f32[128,128]{1,0:T(8,128)}', space=vmem, size = 0x10000, scoped, tag = 'scratch operand']
  %s0 = inlined_call_operand.hbm [shape: s32[2,1536], index: 0, kind: input, shape index: {}]
  %s1 = inlined_call_operand.vmem [shape: f32[2], index: 1, kind: input, shape index: {}]
  %s2 = inlined_call_operand.hbm [shape: f32[128,128], index: 2, kind: input, shape index: {}]
  %s3 = inlined_call_operand.hbm [shape: bf16[2,128,128], index: 3, kind: input, shape index: {}]
  %s4 = inlined_call_operand.vmem [shape: f32[2,1,128], index: 4, kind: input, shape index: {}]
  %s5 = inlined_call_operand.hbm [shape: bf16[2,128,128], index: 5, kind: input, shape index: {}]
  %s6 = inlined_call_operand.vmem [shape: f32[2,1,128], index: 6, kind: input, shape index: {}]
  %s7 = inlined_call_operand.hbm [shape: f32[128,128], index: 7, kind: output, shape index: {}]
  %s8 = sld [smem:[#allocation0]]
  $region89: #{tpu_custom_call.1} parent=0
    _
  %s10 = ssub.s32 1, %s8
  %s11 = scalar_select 0, %s10, %s8
  $region1: #{tpu_custom_call.1} parent=0
    #allocation3 [shape = 'u8[8192]{0}', space=vmem, size = 0x2000, scoped, tag = 'input window, operand 0']
    #allocation4 [shape = 's32[2]{0}', space=sflag, size = 0x8, scoped, tag = 'scoped memory for tpu_custom_call.1']
    #allocation5 [shape = 's32[2]{0}', space=sflag, size = 0x8, scoped, tag = 'scoped memory for tpu_custom_call.1']
    #allocation6 [shape = 's32[2]{0}', space=sflag, size = 0x8, scoped, tag = 'scoped memory for tpu_custom_call.1']
    #allocation7 [shape = 'u8[512]{0}', space=smem, size = 0x200, scoped, tag = 'input window, operand 1, single buffered']
    #allocation8 [shape = 'u8[65536]{0}', space=vmem, size = 0x10000, scoped, tag = 'input window, operand 2, single buffered']
    #allocation9 [shape = 's32[1]{0}', space=sflag, size = 0x4, scoped, tag = 'scoped memory for tpu_custom_call.1']
    #allocation10 [shape = 'u8[65536]{0}', space=vmem, size = 0x10000, scoped, tag = 'input window, operand 3, single buffered']
    #allocation11 [shape = 'u8[65536]{0}', space=vmem, size = 0x10000, scoped, tag = 'input window, operand 5, single buffered']
    #allocation12 [shape = 's32[1]{0}', space=sflag, size = 0x4, scoped, tag = 'scoped memory for tpu_custom_call.1']
    #allocation13 [shape = 'u8[65536]{0}', space=vmem, size = 0x10000, scoped, tag = 'output window, operand 0, single buffered']
    %12 = vsyncpa [#allocation4], 0
    %s13 = scalar_lea.sflag [#allocation4], 1
    %14 = vsyncpa %s13, 0
    %15 = vsyncpa [#allocation6], 0
    %16 = vsyncpa [#allocation9], 0
    %17 = vsyncpa [#allocation12], 0
    %18 = vsyncpa [#allocation5], 0
    loop: start=0, step=1, limit=5
    $region2: #{tpu_custom_call.1} parent=1 // loop_pre_header
      _
    $region3: #{tpu_custom_call.1} parent=1 // loop_header
      %s20 = sphi 0, %s24
      %p21 = scmp.ge.s32.totalorder %s20, 5
      %s30 = sphi 0, %s32
      %s33 = sphi 0, %s30
      %s34 = sphi 0, %s33
      %s50 = sphi 0, %s34
      %s54 = sphi 0, %s54
      %s56 = sphi 0, %s54
      %s57 = sphi 0, %s56
      %s71 = sphi 0, %s57
      %s75 = sphi 0, %s75
      %s77 = sphi 0, %s75
      %s78 = sphi 0, %s77
      %s92 = sphi 0, %s78
      %s96 = sphi 0, %s96
      %s98 = sphi 0, %s96
      %s99 = sphi 0, %s98
      %s113 = sphi 0, %s99
      %s117 = sphi 0, %s117
      %s119 = sphi 0, %s117
      %s120 = sphi 0, %s119
      %s134 = sphi 0, %s120
      %s138 = sphi 0, %s138
      %s140 = sphi 0, %s138
      %s141 = sphi 0, %s140
      %s155 = sphi 0, %s141
      %s159 = sphi 0, %s159
      %s161 = sphi 0, %s159
      %s162 = sphi 0, %s161
      %s176 = sphi 0, %s162
      %s180 = sphi 0, %s180
      %s182 = sphi 0, %s180
      %s183 = sphi 0, %s182
      %s197 = sphi 0, %s183
    $region4: #{tpu_custom_call.1} parent=1 // loop_header_branch
      %23 = sbr.rel (%p21) target = $region8
    $region5: #{tpu_custom_call.1} parent=1 // loop_body
      %s25 = ssub.s32 %s20, 1
      %s26 = ssub.s32 %s20, 2
      %s27 = sadd.s32 %s20, 1
      %s28 = ssub.s32 %s20, %s27
      %p29 = scmp.eq.s32.totalorder %s28, 0
      %s31 = sadd.s32 %s30, 1
      %s32 = scalar_select %p29, %s30, %s31
      %p35 = pneg %p29
      %p36 = scmp.eq.s32.totalorder %s20, 2
      %p37 = por %p35, %p36
      %p38 = scmp.ne.s32.totalorder %s30, %s33
      %p39 = scmp.eq.s32.totalorder %s20, 0
      %p40 = por %p38, %p39
      %p41 = scmp.ne.s32.totalorder %s30, %s33
      %p42 = scmp.eq.s32.totalorder %s25, 2
      %p43 = por %p41, %p42
      %p44 = scmp.ne.s32.totalorder %s33, %s34
      %p45 = scmp.eq.s32.totalorder %s25, 0
      %p46 = por %p44, %p45
      %p47 = scmp.ne.s32.totalorder %s33, %s34
      %p48 = scmp.eq.s32.totalorder %s26, 2
      %p49 = por %p47, %p48
      %p51 = scmp.ne.s32.totalorder %s34, %s50
      %p52 = scmp.eq.s32.totalorder %s26, 0
      %p53 = por %p51, %p52
      %s55 = sadd.s32 %s54, 1
      %p58 = scmp.eq.s32.totalorder %s20, 2
      %p59 = scmp.ne.s32.totalorder %s54, %s56
      %p60 = scmp.eq.s32.totalorder %s20, 0
      %p61 = por %p59, %p60
      %p62 = scmp.ne.s32.totalorder %s54, %s56
      %p63 = scmp.eq.s32.totalorder %s25, 2
      %p64 = por %p62, %p63
      %p65 = scmp.ne.s32.totalorder %s56, %s57
      %p66 = scmp.eq.s32.totalorder %s25, 0
      %p67 = por %p65, %p66
      %p68 = scmp.ne.s32.totalorder %s56, %s57
      %p69 = scmp.eq.s32.totalorder %s26, 2
      %p70 = por %p68, %p69
      %p72 = scmp.ne.s32.totalorder %s57, %s71
      %p73 = scmp.eq.s32.totalorder %s26, 0
      %p74 = por %p72, %p73
      %s76 = sadd.s32 %s75, 1
      %p79 = scmp.eq.s32.totalorder %s20, 2
      %p80 = scmp.ne.s32.totalorder %s75, %s77
      %p81 = scmp.eq.s32.totalorder %s20, 0
      %p82 = por %p80, %p81
      %p83 = scmp.ne.s32.totalorder %s75, %s77
      %p84 = scmp.eq.s32.totalorder %s25, 2
      %p85 = por %p83, %p84
      %p86 = scmp.ne.s32.totalorder %s77, %s78
      %p87 = scmp.eq.s32.totalorder %s25, 0
      %p88 = por %p86, %p87
      %p89 = scmp.ne.s32.totalorder %s77, %s78
      %p90 = scmp.eq.s32.totalorder %s26, 2
      %p91 = por %p89, %p90
      %p93 = scmp.ne.s32.totalorder %s78, %s92
      %p94 = scmp.eq.s32.totalorder %s26, 0
      %p95 = por %p93, %p94
      %s97 = sadd.s32 %s96, 1
      %p100 = scmp.eq.s32.totalorder %s20, 2
      %p101 = scmp.ne.s32.totalorder %s96, %s98
      %p102 = scmp.eq.s32.totalorder %s20, 0
      %p103 = por %p101, %p102
      %p104 = scmp.ne.s32.totalorder %s96, %s98
      %p105 = scmp.eq.s32.totalorder %s25, 2
      %p106 = por %p104, %p105
      %p107 = scmp.ne.s32.totalorder %s98, %s99
      %p108 = scmp.eq.s32.totalorder %s25, 0
      %p109 = por %p107, %p108
      %p110 = scmp.ne.s32.totalorder %s98, %s99
      %p111 = scmp.eq.s32.totalorder %s26, 2
      %p112 = por %p110, %p111
      %p114 = scmp.ne.s32.totalorder %s99, %s113
      %p115 = scmp.eq.s32.totalorder %s26, 0
      %p116 = por %p114, %p115
      %s118 = sadd.s32 %s117, 1
      %p121 = scmp.eq.s32.totalorder %s20, 2
      %p122 = scmp.ne.s32.totalorder %s117, %s119
      %p123 = scmp.eq.s32.totalorder %s20, 0
      %p124 = por %p122, %p123
      %p125 = scmp.ne.s32.totalorder %s117, %s119
      %p126 = scmp.eq.s32.totalorder %s25, 2
      %p127 = por %p125, %p126
      %p128 = scmp.ne.s32.totalorder %s119, %s120
      %p129 = scmp.eq.s32.totalorder %s25, 0
      %p130 = por %p128, %p129
      %p131 = scmp.ne.s32.totalorder %s119, %s120
      %p132 = scmp.eq.s32.totalorder %s26, 2
      %p133 = por %p131, %p132
      %p135 = scmp.ne.s32.totalorder %s120, %s134
      %p136 = scmp.eq.s32.totalorder %s26, 0
      %p137 = por %p135, %p136
      %s139 = sadd.s32 %s138, 1
      %p142 = scmp.eq.s32.totalorder %s20, 2
      %p143 = scmp.ne.s32.totalorder %s138, %s140
      %p144 = scmp.eq.s32.totalorder %s20, 0
      %p145 = por %p143, %p144
      %p146 = scmp.ne.s32.totalorder %s138, %s140
      %p147 = scmp.eq.s32.totalorder %s25, 2
      %p148 = por %p146, %p147
      %p149 = scmp.ne.s32.totalorder %s140, %s141
      %p150 = scmp.eq.s32.totalorder %s25, 0
      %p151 = por %p149, %p150
      %p152 = scmp.ne.s32.totalorder %s140, %s141
      %p153 = scmp.eq.s32.totalorder %s26, 2
      %p154 = por %p152, %p153
      %p156 = scmp.ne.s32.totalorder %s141, %s155
      %p157 = scmp.eq.s32.totalorder %s26, 0
      %p158 = por %p156, %p157
      %s160 = sadd.s32 %s159, 1
      %p163 = scmp.eq.s32.totalorder %s20, 2
      %p164 = scmp.ne.s32.totalorder %s159, %s161
      %p165 = scmp.eq.s32.totalorder %s20, 0
      %p166 = por %p164, %p165
      %p167 = scmp.ne.s32.totalorder %s159, %s161
      %p168 = scmp.eq.s32.totalorder %s25, 2
      %p169 = por %p167, %p168
      %p170 = scmp.ne.s32.totalorder %s161, %s162
      %p171 = scmp.eq.s32.totalorder %s25, 0
      %p172 = por %p170, %p171
      %p173 = scmp.ne.s32.totalorder %s161, %s162
      %p174 = scmp.eq.s32.totalorder %s26, 2
      %p175 = por %p173, %p174
      %p177 = scmp.ne.s32.totalorder %s162, %s176
      %p178 = scmp.eq.s32.totalorder %s26, 0
      %p179 = por %p177, %p178
      %s181 = sadd.s32 %s180, 1
      %p184 = scmp.eq.s32.totalorder %s20, 2
      %p185 = scmp.ne.s32.totalorder %s180, %s182
      %p186 = scmp.eq.s32.totalorder %s20, 0
      %p187 = por %p185, %p186
      %p188 = scmp.ne.s32.totalorder %s180, %s182
      %p189 = scmp.eq.s32.totalorder %s25, 2
      %p190 = por %p188, %p189
      %p191 = scmp.ne.s32.totalorder %s182, %s183
      %p192 = scmp.eq.s32.totalorder %s25, 0
      %p193 = por %p191, %p192
      %p194 = scmp.ne.s32.totalorder %s182, %s183
      %p195 = scmp.eq.s32.totalorder %s26, 2
      %p196 = por %p194, %p195
      %p198 = scmp.ne.s32.totalorder %s183, %s197
      %p199 = scmp.eq.s32.totalorder %s26, 0
      %p200 = por %p198, %p199
      %p201 = scmp.le.s32.totalorder 1, %s20
      %p202 = scmp.lt.s32.totalorder %s20, 4
      %p203 = pnand %p201, %p202
      %p204 = pneg %p203
      // Predicated region
      $region9: #{tpu_custom_call.1} parent=5 // pred_check
        _
      $region10: #{tpu_custom_call.1} parent=5 // pred_check_branch
        %206 = sbr.rel (%p203) target = $region12
      $region11: #{tpu_custom_call.1} parent=5 // pred_region
        %s207 = ssub.s32 %s20, 1
        // Predicated region
        $region13: #{tpu_custom_call.1} parent=11 // pred_check
          %p208 = pneg %p67
        $region14: #{tpu_custom_call.1} parent=11 // pred_check_branch
          %210 = sbr.rel (%p208) target = $region16
        $region15: #{tpu_custom_call.1} parent=11 // pred_region
          %s212 = ssub.s32 16, 16
          %213 = vsyncadd [#allocation6], %s212
          %s215 = sshll.u32 %s1, 4
          %s216 = int_to_ptr.vmem [resolvable:$true] %s215
          %218 = dma.vmem_to_smem %s216, 16, [#allocation7], [#allocation6]
        $region16: #{tpu_custom_call.1} parent=11 // pred_fallthru
          _
        // Predicated region
        $region17: #{tpu_custom_call.1} parent=11 // pred_check
          %p219 = pneg %p88
        $region18: #{tpu_custom_call.1} parent=11 // pred_check_branch
          %221 = sbr.rel (%p219) target = $region20
        $region19: #{tpu_custom_call.1} parent=11 // pred_region
          %s223 = ssub.s32 2048, 2048
          %224 = vsyncadd [#allocation9], %s223
          %s225 = sshll.u32 [#allocation8], 4
          %s226 = int_to_ptr.vmem [resolvable:$true] %s225
          %231 = dma.hbm_to_vmem [thread:$0]  %s2, 2048, %s226, [#allocation9], 128, 128, 8
        $region20: #{tpu_custom_call.1} parent=11 // pred_fallthru
          _
        // Predicated region
        $region21: #{tpu_custom_call.1} parent=11 // pred_check
          %p232 = pneg %p109
        $region22: #{tpu_custom_call.1} parent=11 // pred_check_branch
          %234 = sbr.rel (%p232) target = $region24
        $region23: #{tpu_custom_call.1} parent=11 // pred_region
          %s236 = ssub.s32 2048, 2048
          %237 = vsyncadd [#allocation9], %s236
          %s238 = sshll.u32 [#allocation10], 4
          %s239 = int_to_ptr.vmem [resolvable:$true] %s238
          %244 = dma.hbm_to_vmem [thread:$0]  %s3, 2048, %s239, [#allocation9], 64, 64, 4
        $region24: #{tpu_custom_call.1} parent=11 // pred_fallthru
          _
        // Predicated region
        $region25: #{tpu_custom_call.1} parent=11 // pred_check
          %p245 = pneg %p130
        $region26: #{tpu_custom_call.1} parent=11 // pred_check_branch
          %247 = sbr.rel (%p245) target = $region28
        $region27: #{tpu_custom_call.1} parent=11 // pred_region
          _
        $region28: #{tpu_custom_call.1} parent=11 // pred_fallthru
          _
        // Predicated region
        $region29: #{tpu_custom_call.1} parent=11 // pred_check
          %p248 = pneg %p151
        $region30: #{tpu_custom_call.1} parent=11 // pred_check_branch
          %250 = sbr.rel (%p248) target = $region32
        $region31: #{tpu_custom_call.1} parent=11 // pred_region
          %s252 = ssub.s32 2048, 2048
          %253 = vsyncadd [#allocation12], %s252
          %s254 = sshll.u32 [#allocation11], 4
          %s255 = int_to_ptr.vmem [resolvable:$true] %s254
          %260 = dma.hbm_to_vmem [thread:$0]  %s5, 2048, %s255, [#allocation12], 64, 64, 4
        $region32: #{tpu_custom_call.1} parent=11 // pred_fallthru
          _
        // Predicated region
        $region33: #{tpu_custom_call.1} parent=11 // pred_check
          %p261 = pneg %p172
        $region34: #{tpu_custom_call.1} parent=11 // pred_check_branch
          %263 = sbr.rel (%p261) target = $region36
        $region35: #{tpu_custom_call.1} parent=11 // pred_region
          _
        $region36: #{tpu_custom_call.1} parent=11 // pred_fallthru
          _
      $region12: #{tpu_custom_call.1} parent=5 // pred_fallthru
        _
      %p264 = scmp.lt.s32.totalorder %s20, 3
      // Predicated region
      $region37: #{tpu_custom_call.1} parent=5 // pred_check
        %p265 = pneg %p264
      $region38: #{tpu_custom_call.1} parent=5 // pred_check_branch
        %267 = sbr.rel (%p265) target = $region40
      $region39: #{tpu_custom_call.1} parent=5 // pred_region
        // Predicated region
        $region41: #{tpu_custom_call.1} parent=39 // pred_check
          %p268 = pneg %p40
        $region42: #{tpu_custom_call.1} parent=39 // pred_check_branch
          %270 = sbr.rel (%p268) target = $region44
        $region43: #{tpu_custom_call.1} parent=39 // pred_region
          %s271 = sand.u32 %s30, 1
          %s272 = scalar_lea.sflag [#allocation4], %s271
          %s273 = sand.u32 %s30, 1
          %s274 = smul.addr %s273, 8
          %s275 = scalar_lea.vmem [#allocation3], %s274
          %s276 = smul.u32 4, %s20
          %s278 = ssub.s32 128, 128
          %279 = vsyncadd %s272, %s278
          %s280 = smul.addr %s276, 32
          %s281 = scalar_lea.hbm %s0, %s280
          %s283 = sshll.u32 %s275, 4
          %s284 = int_to_ptr.vmem [resolvable:$true] %s283
          %286 = dma.hbm_to_vmem [thread:$0]  %s281, 128, %s284, %s272
        $region44: #{tpu_custom_call.1} parent=39 // pred_fallthru
          _
      $region40: #{tpu_custom_call.1} parent=5 // pred_fallthru
        _
      %p287 = scmp.le.s32.totalorder 1, %s20
      %p288 = scmp.lt.s32.totalorder %s20, 4
      %p289 = pnand %p287, %p288
      %p290 = pneg %p289
      // Predicated region
      $region45: #{tpu_custom_call.1} parent=5 // pred_check
        _
      $region46: #{tpu_custom_call.1} parent=5 // pred_check_branch
        %292 = sbr.rel (%p289) target = $region48
      $region47: #{tpu_custom_call.1} parent=5 // pred_region
        %s293 = ssub.s32 %s20, 1
        %s294 = sand.u32 %s33, 1
        %s295 = scalar_lea.sflag [#allocation4], %s294
        %s296 = sand.u32 %s33, 1
        %s297 = smul.addr %s296, 8
        %s298 = scalar_lea.vmem [#allocation3], %s297
        // Predicated region
        $region49: #{tpu_custom_call.1} parent=47 // pred_check
          %p299 = pneg %p46
        $region50: #{tpu_custom_call.1} parent=47 // pred_check_branch
          %301 = sbr.rel (%p299) target = $region52
        $region51: #{tpu_custom_call.1} parent=47 // pred_region
          %302 = dma.done %s295, 128
        $region52: #{tpu_custom_call.1} parent=47 // pred_fallthru
          _
        // Predicated region
        $region53: #{tpu_custom_call.1} parent=47 // pred_check
          %p303 = pneg %p67
        $region54: #{tpu_custom_call.1} parent=47 // pred_check_branch
          %305 = sbr.rel (%p303) target = $region56
        $region55: #{tpu_custom_call.1} parent=47 // pred_region
          %306 = dma.done [#allocation6], 16
        $region56: #{tpu_custom_call.1} parent=47 // pred_fallthru
          _
        // Predicated region
        $region57: #{tpu_custom_call.1} parent=47 // pred_check
          %p307 = pneg %p88
        $region58: #{tpu_custom_call.1} parent=47 // pred_check_branch
          %309 = sbr.rel (%p307) target = $region60
        $region59: #{tpu_custom_call.1} parent=47 // pred_region
          %310 = dma.done [#allocation9], 2048
        $region60: #{tpu_custom_call.1} parent=47 // pred_fallthru
          _
        // Predicated region
        $region61: #{tpu_custom_call.1} parent=47 // pred_check
          %p311 = pneg %p109
        $region62: #{tpu_custom_call.1} parent=47 // pred_check_branch
          %313 = sbr.rel (%p311) target = $region64
        $region63: #{tpu_custom_call.1} parent=47 // pred_region
          %314 = dma.done [#allocation9], 2048
        $region64: #{tpu_custom_call.1} parent=47 // pred_fallthru
          _
        // Predicated region
        $region65: #{tpu_custom_call.1} parent=47 // pred_check
          %p315 = pneg %p151
        $region66: #{tpu_custom_call.1} parent=47 // pred_check_branch
          %317 = sbr.rel (%p315) target = $region68
        $region67: #{tpu_custom_call.1} parent=47 // pred_region
          %318 = dma.done [#allocation12], 2048
        $region68: #{tpu_custom_call.1} parent=47 // pred_fallthru
          _
        %319 = sfence
        %s320 = sand.u32 %s33, 1
        %s321 = scalar_lea.sflag [#allocation4], %s320
        %s322 = sand.u32 %s33, 1
        %s323 = smul.addr %s322, 8
        %s324 = scalar_lea.vmem [#allocation3], %s323
        %p325 = pneg %p46
        %p326 = pneg %p43
        %p327 = pneg %p67
        %p328 = pneg %p64
        %p329 = pneg %p88
        %p330 = pneg %p85
        %p331 = pneg %p109
        %p332 = pneg %p106
        %p333 = pneg %p130
        %p334 = pneg %p127
        %p335 = pneg %p151
        %p336 = pneg %p148
        %p337 = pneg %p172
        %p338 = pneg %p169
        %p339 = pneg %p193
        %p340 = pneg %p190
        %s341 = smul.u32 4, %s25
        %p343 = scmp.eq.s32.totalorder %s25, 0
        // Predicated region
        $region69: #{tpu_custom_call.1} parent=47 // pred_check
          %p344 = pneg %p343
        $region70: #{tpu_custom_call.1} parent=47 // pred_check_branch
          %346 = sbr.rel (%p344) target = $region72
        $region71: #{tpu_custom_call.1} parent=47 // pred_region
          %347 = vst [vmem:[#allocation2] sm:$0xff] 0.0
          %348 = vst [vmem:[#allocation2 + $0x8] sm:$0xff] 0.0
          %349 = vst [vmem:[#allocation2 + $0x10] sm:$0xff] 0.0
          %350 = vst [vmem:[#allocation2 + $0x18] sm:$0xff] 0.0
          %351 = vst [vmem:[#allocation2 + $0x20] sm:$0xff] 0.0
          %352 = vst [vmem:[#allocation2 + $0x28] sm:$0xff] 0.0
          %353 = vst [vmem:[#allocation2 + $0x30] sm:$0xff] 0.0
          %354 = vst [vmem:[#allocation2 + $0x38] sm:$0xff] 0.0
          %355 = vst [vmem:[#allocation2 + $0x40] sm:$0xff] 0.0
          %356 = vst [vmem:[#allocation2 + $0x48] sm:$0xff] 0.0
          %357 = vst [vmem:[#allocation2 + $0x50] sm:$0xff] 0.0
          %358 = vst [vmem:[#allocation2 + $0x58] sm:$0xff] 0.0
          %359 = vst [vmem:[#allocation2 + $0x60] sm:$0xff] 0.0
          %360 = vst [vmem:[#allocation2 + $0x68] sm:$0xff] 0.0
          %361 = vst [vmem:[#allocation2 + $0x70] sm:$0xff] 0.0
          %362 = vst [vmem:[#allocation2 + $0x78] sm:$0xff] 0.0
        $region72: #{tpu_custom_call.1} parent=47 // pred_fallthru
          _
        %v363 = vld [vmem:[%s298] sm:$0xff]
        %v364 = vlaneseq
        %v365 = vshrl.u32 %v364, 7
        %v366 = vadd.s32 %v365, 8
        %v367 = vadd.s32 %v365, 16
        %v368 = vadd.s32 %v365, 24
        %v369 = vadd.s32 %v365, 32
        %v370 = vadd.s32 %v365, 40
        %v371 = vadd.s32 %v365, 48
        %v372 = vadd.s32 %v365, 56
        %v373 = vadd.s32 %v365, 64
        %v374 = vadd.s32 %v365, 72
        %v375 = vadd.s32 %v365, 80
        %v376 = vadd.s32 %v365, 88
        %v377 = vadd.s32 %v365, 96
        %v378 = vadd.s32 %v365, 104
        %v379 = vadd.s32 %v365, 112
        %v380 = vadd.s32 %v365, 120
        %v381 = vlaneseq
        %v382 = vshrl.u32 %v381, 7
        %v383 = vsub.s32 0, %v382
        %v384 = vrot.slane %v363, %v383
        %v385 = vlaneseq
        %v386 = vshrl.u32 %v385, 7
        %v387 = vsub.s32 2, %v386
        %v388 = vrot.slane %v363, %v387
        %v389 = vlaneseq
        %v390 = vshrl.u32 %v389, 7
        %v391 = vsub.s32 4, %v390
        %v392 = vrot.slane %v363, %v391
        %v393 = vlaneseq
        %v394 = vshrl.u32 %v393, 7
        %v395 = vsub.s32 6, %v394
        %v396 = vrot.slane %v363, %v395
        %v397 = vlaneseq
        %v398 = vshrl.u32 %v397, 7
        %v399 = vsub.s32 0, %v398
        %v400 = vrot.slane %v384, %v399
        %v401 = vlaneseq
        %v402 = vshrl.u32 %v401, 7
        %v403 = vsub.s32 0, %v402
        %v404 = vrot.slane %v388, %v403
        %v405 = vlaneseq
        %v406 = vshrl.u32 %v405, 7
        %v407 = vsub.s32 0, %v406
        %v408 = vrot.slane %v392, %v407
        %v409 = vlaneseq
        %v410 = vshrl.u32 %v409, 7
        %v411 = vsub.s32 0, %v410
        %v412 = vrot.slane %v396, %v411
        %vm413 = vcmp.eq.s32.totalorder %v400, %v365
        %vm414 = vcmp.eq.s32.totalorder %v404, %v365
        %vm415 = vcmp.eq.s32.totalorder %v408, %v365
        %vm416 = vcmp.eq.s32.totalorder %v412, %v365
        %vm417 = vcmp.eq.s32.totalorder %v400, %v366
        %vm418 = vcmp.eq.s32.totalorder %v404, %v366
        %vm419 = vcmp.eq.s32.totalorder %v408, %v366
        %vm420 = vcmp.eq.s32.totalorder %v412, %v366
        %vm421 = vcmp.eq.s32.totalorder %v400, %v367
        %vm422 = vcmp.eq.s32.totalorder %v404, %v367
        %vm423 = vcmp.eq.s32.totalorder %v408, %v367
        %vm424 = vcmp.eq.s32.totalorder %v412, %v367
        %vm425 = vcmp.eq.s32.totalorder %v400, %v368
        %vm426 = vcmp.eq.s32.totalorder %v404, %v368
        %vm427 = vcmp.eq.s32.totalorder %v408, %v368
        %vm428 = vcmp.eq.s32.totalorder %v412, %v368
        %vm429 = vcmp.eq.s32.totalorder %v400, %v369
        %vm430 = vcmp.eq.s32.totalorder %v404, %v369
        %vm431 = vcmp.eq.s32.totalorder %v408, %v369
        %vm432 = vcmp.eq.s32.totalorder %v412, %v369
        %vm433 = vcmp.eq.s32.totalorder %v400, %v370
        %vm434 = vcmp.eq.s32.totalorder %v404, %v370
        %vm435 = vcmp.eq.s32.totalorder %v408, %v370
        %vm436 = vcmp.eq.s32.totalorder %v412, %v370
        %vm437 = vcmp.eq.s32.totalorder %v400, %v371
        %vm438 = vcmp.eq.s32.totalorder %v404, %v371
        %vm439 = vcmp.eq.s32.totalorder %v408, %v371
        %vm440 = vcmp.eq.s32.totalorder %v412, %v371
        %vm441 = vcmp.eq.s32.totalorder %v400, %v372
        %vm442 = vcmp.eq.s32.totalorder %v404, %v372
        %vm443 = vcmp.eq.s32.totalorder %v408, %v372
        %vm444 = vcmp.eq.s32.totalorder %v412, %v372
        %vm445 = vcmp.eq.s32.totalorder %v400, %v373
        %vm446 = vcmp.eq.s32.totalorder %v404, %v373
        %vm447 = vcmp.eq.s32.totalorder %v408, %v373
        %vm448 = vcmp.eq.s32.totalorder %v412, %v373
        %vm449 = vcmp.eq.s32.totalorder %v400, %v374
        %vm450 = vcmp.eq.s32.totalorder %v404, %v374
        %vm451 = vcmp.eq.s32.totalorder %v408, %v374
        %vm452 = vcmp.eq.s32.totalorder %v412, %v374
        %vm453 = vcmp.eq.s32.totalorder %v400, %v375
        %vm454 = vcmp.eq.s32.totalorder %v404, %v375
        %vm455 = vcmp.eq.s32.totalorder %v408, %v375
        %vm456 = vcmp.eq.s32.totalorder %v412, %v375
        %vm457 = vcmp.eq.s32.totalorder %v400, %v376
        %vm458 = vcmp.eq.s32.totalorder %v404, %v376
        %vm459 = vcmp.eq.s32.totalorder %v408, %v376
        %vm460 = vcmp.eq.s32.totalorder %v412, %v376
        %vm461 = vcmp.eq.s32.totalorder %v400, %v377
        %vm462 = vcmp.eq.s32.totalorder %v404, %v377
        %vm463 = vcmp.eq.s32.totalorder %v408, %v377
        %vm464 = vcmp.eq.s32.totalorder %v412, %v377
        %vm465 = vcmp.eq.s32.totalorder %v400, %v378
        %vm466 = vcmp.eq.s32.totalorder %v404, %v378
        %vm467 = vcmp.eq.s32.totalorder %v408, %v378
        %vm468 = vcmp.eq.s32.totalorder %v412, %v378
        %vm469 = vcmp.eq.s32.totalorder %v400, %v379
        %vm470 = vcmp.eq.s32.totalorder %v404, %v379
        %vm471 = vcmp.eq.s32.totalorder %v408, %v379
        %vm472 = vcmp.eq.s32.totalorder %v412, %v379
        %vm473 = vcmp.eq.s32.totalorder %v400, %v380
        %vm474 = vcmp.eq.s32.totalorder %v404, %v380
        %vm475 = vcmp.eq.s32.totalorder %v408, %v380
        %vm476 = vcmp.eq.s32.totalorder %v412, %v380
        %v477 = vsel %vm413, 1, 0
        %v478 = vsel %vm414, 1, 0
        %v479 = vsel %vm415, 1, 0
        %v480 = vsel %vm416, 1, 0
        %v481 = vsel %vm417, 1, 0
        %v482 = vsel %vm418, 1, 0
        %v483 = vsel %vm419, 1, 0
        %v484 = vsel %vm420, 1, 0
        %v485 = vsel %vm421, 1, 0
        %v486 = vsel %vm422, 1, 0
        %v487 = vsel %vm423, 1, 0
        %v488 = vsel %vm424, 1, 0
        %v489 = vsel %vm425, 1, 0
        %v490 = vsel %vm426, 1, 0
        %v491 = vsel %vm427, 1, 0
        %v492 = vsel %vm428, 1, 0
        %v493 = vsel %vm429, 1, 0
        %v494 = vsel %vm430, 1, 0
        %v495 = vsel %vm431, 1, 0
        %v496 = vsel %vm432, 1, 0
        %v497 = vsel %vm433, 1, 0
        %v498 = vsel %vm434, 1, 0
        %v499 = vsel %vm435, 1, 0
        %v500 = vsel %vm436, 1, 0
        %v501 = vsel %vm437, 1, 0
        %v502 = vsel %vm438, 1, 0
        %v503 = vsel %vm439, 1, 0
        %v504 = vsel %vm440, 1, 0
        %v505 = vsel %vm441, 1, 0
        %v506 = vsel %vm442, 1, 0
        %v507 = vsel %vm443, 1, 0
        %v508 = vsel %vm444, 1, 0
        %v509 = vsel %vm445, 1, 0
        %v510 = vsel %vm446, 1, 0
        %v511 = vsel %vm447, 1, 0
        %v512 = vsel %vm448, 1, 0
        %v513 = vsel %vm449, 1, 0
        %v514 = vsel %vm450, 1, 0
        %v515 = vsel %vm451, 1, 0
        %v516 = vsel %vm452, 1, 0
        %v517 = vsel %vm453, 1, 0
        %v518 = vsel %vm454, 1, 0
        %v519 = vsel %vm455, 1, 0
        %v520 = vsel %vm456, 1, 0
        %v521 = vsel %vm457, 1, 0
        %v522 = vsel %vm458, 1, 0
        %v523 = vsel %vm459, 1, 0
        %v524 = vsel %vm460, 1, 0
        %v525 = vsel %vm461, 1, 0
        %v526 = vsel %vm462, 1, 0
        %v527 = vsel %vm463, 1, 0
        %v528 = vsel %vm464, 1, 0
        %v529 = vsel %vm465, 1, 0
        %v530 = vsel %vm466, 1, 0
        %v531 = vsel %vm467, 1, 0
        %v532 = vsel %vm468, 1, 0
        %v533 = vsel %vm469, 1, 0
        %v534 = vsel %vm470, 1, 0
        %v535 = vsel %vm471, 1, 0
        %v536 = vsel %vm472, 1, 0
        %v537 = vsel %vm473, 1, 0
        %v538 = vsel %vm474, 1, 0
        %v539 = vsel %vm475, 1, 0
        %v540 = vsel %vm476, 1, 0
        %v541 = vcvt.s32.f32 %v477
        %v542 = vcvt.s32.f32 %v478
        %v543 = vcvt.s32.f32 %v479
        %v544 = vcvt.s32.f32 %v480
        %v545 = vcvt.s32.f32 %v481
        %v546 = vcvt.s32.f32 %v482
        %v547 = vcvt.s32.f32 %v483
        %v548 = vcvt.s32.f32 %v484
        %v549 = vcvt.s32.f32 %v485
        %v550 = vcvt.s32.f32 %v486
        %v551 = vcvt.s32.f32 %v487
        %v552 = vcvt.s32.f32 %v488
        %v553 = vcvt.s32.f32 %v489
        %v554 = vcvt.s32.f32 %v490
        %v555 = vcvt.s32.f32 %v491
        %v556 = vcvt.s32.f32 %v492
        %v557 = vcvt.s32.f32 %v493
        %v558 = vcvt.s32.f32 %v494
        %v559 = vcvt.s32.f32 %v495
        %v560 = vcvt.s32.f32 %v496
        %v561 = vcvt.s32.f32 %v497
        %v562 = vcvt.s32.f32 %v498
        %v563 = vcvt.s32.f32 %v499
        %v564 = vcvt.s32.f32 %v500
        %v565 = vcvt.s32.f32 %v501
        %v566 = vcvt.s32.f32 %v502
        %v567 = vcvt.s32.f32 %v503
        %v568 = vcvt.s32.f32 %v504
        %v569 = vcvt.s32.f32 %v505
        %v570 = vcvt.s32.f32 %v506
        %v571 = vcvt.s32.f32 %v507
        %v572 = vcvt.s32.f32 %v508
        %v573 = vcvt.s32.f32 %v509
        %v574 = vcvt.s32.f32 %v510
        %v575 = vcvt.s32.f32 %v511
        %v576 = vcvt.s32.f32 %v512
        %v577 = vcvt.s32.f32 %v513
        %v578 = vcvt.s32.f32 %v514
        %v579 = vcvt.s32.f32 %v515
        %v580 = vcvt.s32.f32 %v516
        %v581 = vcvt.s32.f32 %v517
        %v582 = vcvt.s32.f32 %v518
        %v583 = vcvt.s32.f32 %v519
        %v584 = vcvt.s32.f32 %v520
        %v585 = vcvt.s32.f32 %v521
        %v586 = vcvt.s32.f32 %v522
        %v587 = vcvt.s32.f32 %v523
        %v588 = vcvt.s32.f32 %v524
        %v589 = vcvt.s32.f32 %v525
        %v590 = vcvt.s32.f32 %v526
        %v591 = vcvt.s32.f32 %v527
        %v592 = vcvt.s32.f32 %v528
        %v593 = vcvt.s32.f32 %v529
        %v594 = vcvt.s32.f32 %v530
        %v595 = vcvt.s32.f32 %v531
        %v596 = vcvt.s32.f32 %v532
        %v597 = vcvt.s32.f32 %v533
        %v598 = vcvt.s32.f32 %v534
        %v599 = vcvt.s32.f32 %v535
        %v600 = vcvt.s32.f32 %v536
        %v601 = vcvt.s32.f32 %v537
        %v602 = vcvt.s32.f32 %v538
        %v603 = vcvt.s32.f32 %v539
        %v604 = vcvt.s32.f32 %v540
        %v605 = vpack.c.bf16 %v545, %v541
        %v606 = vpack.c.bf16 %v546, %v542
        %v607 = vpack.c.bf16 %v547, %v543
        %v608 = vpack.c.bf16 %v548, %v544
        %v609 = vpack.c.bf16 %v553, %v549
        %v610 = vpack.c.bf16 %v554, %v550
        %v611 = vpack.c.bf16 %v555, %v551
        %v612 = vpack.c.bf16 %v556, %v552
        %v613 = vpack.c.bf16 %v561, %v557
        %v614 = vpack.c.bf16 %v562, %v558
        %v615 = vpack.c.bf16 %v563, %v559
        %v616 = vpack.c.bf16 %v564, %v560
        %v617 = vpack.c.bf16 %v569, %v565
        %v618 = vpack.c.bf16 %v570, %v566
        %v619 = vpack.c.bf16 %v571, %v567
        %v620 = vpack.c.bf16 %v572, %v568
        %v621 = vpack.c.bf16 %v577, %v573
        %v622 = vpack.c.bf16 %v578, %v574
        %v623 = vpack.c.bf16 %v579, %v575
        %v624 = vpack.c.bf16 %v580, %v576
        %v625 = vpack.c.bf16 %v585, %v581
        %v626 = vpack.c.bf16 %v586, %v582
        %v627 = vpack.c.bf16 %v587, %v583
        %v628 = vpack.c.bf16 %v588, %v584
        %v629 = vpack.c.bf16 %v593, %v589
        %v630 = vpack.c.bf16 %v594, %v590
        %v631 = vpack.c.bf16 %v595, %v591
        %v632 = vpack.c.bf16 %v596, %v592
        %v633 = vpack.c.bf16 %v601, %v597
        %v634 = vpack.c.bf16 %v602, %v598
        %v635 = vpack.c.bf16 %v603, %v599
        %v636 = vpack.c.bf16 %v604, %v600
        %v637 = vlaneseq
        %v638 = vshrl.u32 %v637, 7
        %v639 = vsub.s32 1, %v638
        %v640 = vrot.slane %v363, %v639
        %v641 = vlaneseq
        %v642 = vshrl.u32 %v641, 7
        %v643 = vsub.s32 3, %v642
        %v644 = vrot.slane %v363, %v643
        %v645 = vlaneseq
        %v646 = vshrl.u32 %v645, 7
        %v647 = vsub.s32 5, %v646
        %v648 = vrot.slane %v363, %v647
        %v649 = vlaneseq
        %v650 = vshrl.u32 %v649, 7
        %v651 = vsub.s32 7, %v650
        %v652 = vrot.slane %v363, %v651
        %v653 = vlaneseq
        %v654 = vshrl.u32 %v653, 7
        %v655 = vsub.s32 1, %v654
        %v656 = vrot.slane %v640, %v655
        %v657 = vlaneseq
        %v658 = vshrl.u32 %v657, 7
        %v659 = vsub.s32 1, %v658
        %v660 = vrot.slane %v644, %v659
        %v661 = vlaneseq
        %v662 = vshrl.u32 %v661, 7
        %v663 = vsub.s32 1, %v662
        %v664 = vrot.slane %v648, %v663
        %v665 = vlaneseq
        %v666 = vshrl.u32 %v665, 7
        %v667 = vsub.s32 1, %v666
        %v668 = vrot.slane %v652, %v667
        %vm669 = vcmp.eq.s32.totalorder %v656, %v365
        %vm670 = vcmp.eq.s32.totalorder %v660, %v365
        %vm671 = vcmp.eq.s32.totalorder %v664, %v365
        %vm672 = vcmp.eq.s32.totalorder %v668, %v365
        %vm673 = vcmp.eq.s32.totalorder %v656, %v366
        %vm674 = vcmp.eq.s32.totalorder %v660, %v366
        %vm675 = vcmp.eq.s32.totalorder %v664, %v366
        %vm676 = vcmp.eq.s32.totalorder %v668, %v366
        %vm677 = vcmp.eq.s32.totalorder %v656, %v367
        %vm678 = vcmp.eq.s32.totalorder %v660, %v367
        %vm679 = vcmp.eq.s32.totalorder %v664, %v367
        %vm680 = vcmp.eq.s32.totalorder %v668, %v367
        %vm681 = vcmp.eq.s32.totalorder %v656, %v368
        %vm682 = vcmp.eq.s32.totalorder %v660, %v368
        %vm683 = vcmp.eq.s32.totalorder %v664, %v368
        %vm684 = vcmp.eq.s32.totalorder %v668, %v368
        %vm685 = vcmp.eq.s32.totalorder %v656, %v369
        %vm686 = vcmp.eq.s32.totalorder %v660, %v369
        %vm687 = vcmp.eq.s32.totalorder %v664, %v369
        %vm688 = vcmp.eq.s32.totalorder %v668, %v369
        %vm689 = vcmp.eq.s32.totalorder %v656, %v370
        %vm690 = vcmp.eq.s32.totalorder %v660, %v370
        %vm691 = vcmp.eq.s32.totalorder %v664, %v370
        %vm692 = vcmp.eq.s32.totalorder %v668, %v370
        %vm693 = vcmp.eq.s32.totalorder %v656, %v371
        %vm694 = vcmp.eq.s32.totalorder %v660, %v371
        %vm695 = vcmp.eq.s32.totalorder %v664, %v371
        %vm696 = vcmp.eq.s32.totalorder %v668, %v371
        %vm697 = vcmp.eq.s32.totalorder %v656, %v372
        %vm698 = vcmp.eq.s32.totalorder %v660, %v372
        %vm699 = vcmp.eq.s32.totalorder %v664, %v372
        %vm700 = vcmp.eq.s32.totalorder %v668, %v372
        %vm701 = vcmp.eq.s32.totalorder %v656, %v373
        %vm702 = vcmp.eq.s32.totalorder %v660, %v373
        %vm703 = vcmp.eq.s32.totalorder %v664, %v373
        %vm704 = vcmp.eq.s32.totalorder %v668, %v373
        %vm705 = vcmp.eq.s32.totalorder %v656, %v374
        %vm706 = vcmp.eq.s32.totalorder %v660, %v374
        %vm707 = vcmp.eq.s32.totalorder %v664, %v374
        %vm708 = vcmp.eq.s32.totalorder %v668, %v374
        %vm709 = vcmp.eq.s32.totalorder %v656, %v375
        %vm710 = vcmp.eq.s32.totalorder %v660, %v375
        %vm711 = vcmp.eq.s32.totalorder %v664, %v375
        %vm712 = vcmp.eq.s32.totalorder %v668, %v375
        %vm713 = vcmp.eq.s32.totalorder %v656, %v376
        %vm714 = vcmp.eq.s32.totalorder %v660, %v376
        %vm715 = vcmp.eq.s32.totalorder %v664, %v376
        %vm716 = vcmp.eq.s32.totalorder %v668, %v376
        %vm717 = vcmp.eq.s32.totalorder %v656, %v377
        %vm718 = vcmp.eq.s32.totalorder %v660, %v377
        %vm719 = vcmp.eq.s32.totalorder %v664, %v377
        %vm720 = vcmp.eq.s32.totalorder %v668, %v377
        %vm721 = vcmp.eq.s32.totalorder %v656, %v378
        %vm722 = vcmp.eq.s32.totalorder %v660, %v378
        %vm723 = vcmp.eq.s32.totalorder %v664, %v378
        %vm724 = vcmp.eq.s32.totalorder %v668, %v378
        %vm725 = vcmp.eq.s32.totalorder %v656, %v379
        %vm726 = vcmp.eq.s32.totalorder %v660, %v379
        %vm727 = vcmp.eq.s32.totalorder %v664, %v379
        %vm728 = vcmp.eq.s32.totalorder %v668, %v379
        %vm729 = vcmp.eq.s32.totalorder %v656, %v380
        %vm730 = vcmp.eq.s32.totalorder %v660, %v380
        %vm731 = vcmp.eq.s32.totalorder %v664, %v380
        %vm732 = vcmp.eq.s32.totalorder %v668, %v380
        %v733 = vsel %vm669, 1, 0
        %v734 = vsel %vm670, 1, 0
        %v735 = vsel %vm671, 1, 0
        %v736 = vsel %vm672, 1, 0
        %v737 = vsel %vm673, 1, 0
        %v738 = vsel %vm674, 1, 0
        %v739 = vsel %vm675, 1, 0
        %v740 = vsel %vm676, 1, 0
        %v741 = vsel %vm677, 1, 0
        %v742 = vsel %vm678, 1, 0
        %v743 = vsel %vm679, 1, 0
        %v744 = vsel %vm680, 1, 0
        %v745 = vsel %vm681, 1, 0
        %v746 = vsel %vm682, 1, 0
        %v747 = vsel %vm683, 1, 0
        %v748 = vsel %vm684, 1, 0
        %v749 = vsel %vm685, 1, 0
        %v750 = vsel %vm686, 1, 0
        %v751 = vsel %vm687, 1, 0
        %v752 = vsel %vm688, 1, 0
        %v753 = vsel %vm689, 1, 0
        %v754 = vsel %vm690, 1, 0
        %v755 = vsel %vm691, 1, 0
        %v756 = vsel %vm692, 1, 0
        %v757 = vsel %vm693, 1, 0
        %v758 = vsel %vm694, 1, 0
        %v759 = vsel %vm695, 1, 0
        %v760 = vsel %vm696, 1, 0
        %v761 = vsel %vm697, 1, 0
        %v762 = vsel %vm698, 1, 0
        %v763 = vsel %vm699, 1, 0
        %v764 = vsel %vm700, 1, 0
        %v765 = vsel %vm701, 1, 0
        %v766 = vsel %vm702, 1, 0
        %v767 = vsel %vm703, 1, 0
        %v768 = vsel %vm704, 1, 0
        %v769 = vsel %vm705, 1, 0
        %v770 = vsel %vm706, 1, 0
        %v771 = vsel %vm707, 1, 0
        %v772 = vsel %vm708, 1, 0
        %v773 = vsel %vm709, 1, 0
        %v774 = vsel %vm710, 1, 0
        %v775 = vsel %vm711, 1, 0
        %v776 = vsel %vm712, 1, 0
        %v777 = vsel %vm713, 1, 0
        %v778 = vsel %vm714, 1, 0
        %v779 = vsel %vm715, 1, 0
        %v780 = vsel %vm716, 1, 0
        %v781 = vsel %vm717, 1, 0
        %v782 = vsel %vm718, 1, 0
        %v783 = vsel %vm719, 1, 0
        %v784 = vsel %vm720, 1, 0
        %v785 = vsel %vm721, 1, 0
        %v786 = vsel %vm722, 1, 0
        %v787 = vsel %vm723, 1, 0
        %v788 = vsel %vm724, 1, 0
        %v789 = vsel %vm725, 1, 0
        %v790 = vsel %vm726, 1, 0
        %v791 = vsel %vm727, 1, 0
        %v792 = vsel %vm728, 1, 0
        %v793 = vsel %vm729, 1, 0
        %v794 = vsel %vm730, 1, 0
        %v795 = vsel %vm731, 1, 0
        %v796 = vsel %vm732, 1, 0
        %v797 = vcvt.s32.f32 %v733
        %v798 = vcvt.s32.f32 %v734
        %v799 = vcvt.s32.f32 %v735
        %v800 = vcvt.s32.f32 %v736
        %v801 = vcvt.s32.f32 %v737
        %v802 = vcvt.s32.f32 %v738
        %v803 = vcvt.s32.f32 %v739
        %v804 = vcvt.s32.f32 %v740
        %v805 = vcvt.s32.f32 %v741
        %v806 = vcvt.s32.f32 %v742
        %v807 = vcvt.s32.f32 %v743
        %v808 = vcvt.s32.f32 %v744
        %v809 = vcvt.s32.f32 %v745
        %v810 = vcvt.s32.f32 %v746
        %v811 = vcvt.s32.f32 %v747
        %v812 = vcvt.s32.f32 %v748
        %v813 = vcvt.s32.f32 %v749
        %v814 = vcvt.s32.f32 %v750
        %v815 = vcvt.s32.f32 %v751
        %v816 = vcvt.s32.f32 %v752
        %v817 = vcvt.s32.f32 %v753
        %v818 = vcvt.s32.f32 %v754
        %v819 = vcvt.s32.f32 %v755
        %v820 = vcvt.s32.f32 %v756
        %v821 = vcvt.s32.f32 %v757
        %v822 = vcvt.s32.f32 %v758
        %v823 = vcvt.s32.f32 %v759
        %v824 = vcvt.s32.f32 %v760
        %v825 = vcvt.s32.f32 %v761
        %v826 = vcvt.s32.f32 %v762
        %v827 = vcvt.s32.f32 %v763
        %v828 = vcvt.s32.f32 %v764
        %v829 = vcvt.s32.f32 %v765
        %v830 = vcvt.s32.f32 %v766
        %v831 = vcvt.s32.f32 %v767
        %v832 = vcvt.s32.f32 %v768
        %v833 = vcvt.s32.f32 %v769
        %v834 = vcvt.s32.f32 %v770
        %v835 = vcvt.s32.f32 %v771
        %v836 = vcvt.s32.f32 %v772
        %v837 = vcvt.s32.f32 %v773
        %v838 = vcvt.s32.f32 %v774
        %v839 = vcvt.s32.f32 %v775
        %v840 = vcvt.s32.f32 %v776
        %v841 = vcvt.s32.f32 %v777
        %v842 = vcvt.s32.f32 %v778
        %v843 = vcvt.s32.f32 %v779
        %v844 = vcvt.s32.f32 %v780
        %v845 = vcvt.s32.f32 %v781
        %v846 = vcvt.s32.f32 %v782
        %v847 = vcvt.s32.f32 %v783
        %v848 = vcvt.s32.f32 %v784
        %v849 = vcvt.s32.f32 %v785
        %v850 = vcvt.s32.f32 %v786
        %v851 = vcvt.s32.f32 %v787
        %v852 = vcvt.s32.f32 %v788
        %v853 = vcvt.s32.f32 %v789
        %v854 = vcvt.s32.f32 %v790
        %v855 = vcvt.s32.f32 %v791
        %v856 = vcvt.s32.f32 %v792
        %v857 = vcvt.s32.f32 %v793
        %v858 = vcvt.s32.f32 %v794
        %v859 = vcvt.s32.f32 %v795
        %v860 = vcvt.s32.f32 %v796
        %v861 = vpack.c.bf16 %v801, %v797
        %v862 = vpack.c.bf16 %v802, %v798
        %v863 = vpack.c.bf16 %v803, %v799
        %v864 = vpack.c.bf16 %v804, %v800
        %v865 = vpack.c.bf16 %v809, %v805
        %v866 = vpack.c.bf16 %v810, %v806
        %v867 = vpack.c.bf16 %v811, %v807
        %v868 = vpack.c.bf16 %v812, %v808
        %v869 = vpack.c.bf16 %v817, %v813
        %v870 = vpack.c.bf16 %v818, %v814
        %v871 = vpack.c.bf16 %v819, %v815
        %v872 = vpack.c.bf16 %v820, %v816
        %v873 = vpack.c.bf16 %v825, %v821
        %v874 = vpack.c.bf16 %v826, %v822
        %v875 = vpack.c.bf16 %v827, %v823
        %v876 = vpack.c.bf16 %v828, %v824
        %v877 = vpack.c.bf16 %v833, %v829
        %v878 = vpack.c.bf16 %v834, %v830
        %v879 = vpack.c.bf16 %v835, %v831
        %v880 = vpack.c.bf16 %v836, %v832
        %v881 = vpack.c.bf16 %v841, %v837
        %v882 = vpack.c.bf16 %v842, %v838
        %v883 = vpack.c.bf16 %v843, %v839
        %v884 = vpack.c.bf16 %v844, %v840
        %v885 = vpack.c.bf16 %v849, %v845
        %v886 = vpack.c.bf16 %v850, %v846
        %v887 = vpack.c.bf16 %v851, %v847
        %v888 = vpack.c.bf16 %v852, %v848
        %v889 = vpack.c.bf16 %v857, %v853
        %v890 = vpack.c.bf16 %v858, %v854
        %v891 = vpack.c.bf16 %v859, %v855
        %v892 = vpack.c.bf16 %v860, %v856
        %v893 = vld [vmem:[#allocation2] sm:$0xff]
        %v894 = vld [vmem:[#allocation2 + $0x8] sm:$0xff]
        %v895 = vld [vmem:[#allocation2 + $0x10] sm:$0xff]
        %v896 = vld [vmem:[#allocation2 + $0x18] sm:$0xff]
        %v897 = vld [vmem:[#allocation2 + $0x20] sm:$0xff]
        %v898 = vld [vmem:[#allocation2 + $0x28] sm:$0xff]
        %v899 = vld [vmem:[#allocation2 + $0x30] sm:$0xff]
        %v900 = vld [vmem:[#allocation2 + $0x38] sm:$0xff]
        %v901 = vld [vmem:[#allocation2 + $0x40] sm:$0xff]
        %v902 = vld [vmem:[#allocation2 + $0x48] sm:$0xff]
        %v903 = vld [vmem:[#allocation2 + $0x50] sm:$0xff]
        %v904 = vld [vmem:[#allocation2 + $0x58] sm:$0xff]
        %v905 = vld [vmem:[#allocation2 + $0x60] sm:$0xff]
        %v906 = vld [vmem:[#allocation2 + $0x68] sm:$0xff]
        %v907 = vld [vmem:[#allocation2 + $0x70] sm:$0xff]
        %v908 = vld [vmem:[#allocation2 + $0x78] sm:$0xff]
        %909 = vmatprep.subr.bf16.mxu0 %v634
        %910 = vmatpush1.bf16.xpose.msra.mxu0 %v633
        %911 = vmatprep.subr.bf16.mxu0 %v630
        %912 = vmatpush1.bf16.xpose.msra.mxu0 %v629
        %913 = vmatprep.subr.bf16.mxu0 %v626
        %914 = vmatpush1.bf16.xpose.msra.mxu0 %v625
        %915 = vmatprep.subr.bf16.mxu0 %v622
        %916 = vmatpush1.bf16.xpose.msra.mxu0 %v621
        %917 = vmatprep.subr.bf16.mxu0 %v618
        %918 = vmatpush1.bf16.xpose.msra.mxu0 %v617
        %919 = vmatprep.subr.bf16.mxu0 %v614
        %920 = vmatpush1.bf16.xpose.msra.mxu0 %v613
        %921 = vmatprep.subr.bf16.mxu0 %v610
        %922 = vmatpush1.bf16.xpose.msra.mxu0 %v609
        %923 = vmatprep.subr.bf16.mxu0 %v606
        %924 = vmatpush1.bf16.xpose.msra.mxu0 %v605
        %925 = vmatprep.subr.bf16.mxu0 0
        %926 = vmatpush2.bf16.xpose.msra.mxu0 0
        %927 = vmatprep.subr.bf16.mxu0 0
        %928 = vmatpush2.bf16.xpose.msra.mxu0 0
        %929 = vmatprep.subr.bf16.mxu0 0
        %930 = vmatpush2.bf16.xpose.msra.mxu0 0
        %931 = vmatprep.subr.bf16.mxu0 0
        %932 = vmatpush2.bf16.xpose.msra.mxu0 0
        %933 = vmatprep.subr.bf16.mxu0 0
        %934 = vmatpush2.bf16.xpose.msra.mxu0 0
        %935 = vmatprep.subr.bf16.mxu0 0
        %936 = vmatpush2.bf16.xpose.msra.mxu0 0
        %937 = vmatprep.subr.bf16.mxu0 0
        %938 = vmatpush2.bf16.xpose.msra.mxu0 0
        %939 = vmatprep.subr.bf16.mxu0 0
        %940 = vmatpush2.bf16.xpose.msra.mxu0 0
        %941 = vmatprep.mubr.bf16.mxu0 %v862
        %942 = vmatmul.mubr.bf16.gmra.mxu0 %v861
        %v943 = vpop.f32.mrf.mxu0
        %v944 = vadd.f32 0.0, %v943
        %v945 = vpop.f32.mrf.mxu0
        %v946 = vpop.f32.mrf.mxu0
        %v947 = vadd.f32 0.0, %v946
        %v948 = vpop.f32.mrf.mxu0
        %949 = vmatprep.mubr.bf16.mxu0 %v866
        %950 = vmatmul.mubr.bf16.gmra.mxu0 %v865
        %v951 = vpop.f32.mrf.mxu0
        %v952 = vadd.f32 0.0, %v951
        %v953 = vpop.f32.mrf.mxu0
        %v954 = vpop.f32.mrf.mxu0
        %v955 = vadd.f32 0.0, %v954
        %v956 = vpop.f32.mrf.mxu0
        %957 = vmatprep.mubr.bf16.mxu0 %v870
        %958 = vmatmul.mubr.bf16.gmra.mxu0 %v869
        %v959 = vpop.f32.mrf.mxu0
        %v960 = vadd.f32 0.0, %v959
        %v961 = vpop.f32.mrf.mxu0
        %v962 = vpop.f32.mrf.mxu0
        %v963 = vadd.f32 0.0, %v962
        %v964 = vpop.f32.mrf.mxu0
        %965 = vmatprep.mubr.bf16.mxu0 %v874
        %966 = vmatmul.mubr.bf16.gmra.mxu0 %v873
        %v967 = vpop.f32.mrf.mxu0
        %v968 = vadd.f32 0.0, %v967
        %v969 = vpop.f32.mrf.mxu0
        %v970 = vpop.f32.mrf.mxu0
        %v971 = vadd.f32 0.0, %v970
        %v972 = vpop.f32.mrf.mxu0
        %973 = vmatprep.mubr.bf16.mxu0 %v878
        %974 = vmatmul.mubr.bf16.gmra.mxu0 %v877
        %v975 = vpop.f32.mrf.mxu0
        %v976 = vadd.f32 0.0, %v975
        %v977 = vpop.f32.mrf.mxu0
        %v978 = vpop.f32.mrf.mxu0
        %v979 = vadd.f32 0.0, %v978
        %v980 = vpop.f32.mrf.mxu0
        %981 = vmatprep.mubr.bf16.mxu0 %v882
        %982 = vmatmul.mubr.bf16.gmra.mxu0 %v881
        %v983 = vpop.f32.mrf.mxu0
        %v984 = vadd.f32 0.0, %v983
        %v985 = vpop.f32.mrf.mxu0
        %v986 = vpop.f32.mrf.mxu0
        %v987 = vadd.f32 0.0, %v986
        %v988 = vpop.f32.mrf.mxu0
        %989 = vmatprep.mubr.bf16.mxu0 %v886
        %990 = vmatmul.mubr.bf16.gmra.mxu0 %v885
        %v991 = vpop.f32.mrf.mxu0
        %v992 = vadd.f32 0.0, %v991
        %v993 = vpop.f32.mrf.mxu0
        %v994 = vpop.f32.mrf.mxu0
        %v995 = vadd.f32 0.0, %v994
        %v996 = vpop.f32.mrf.mxu0
        %997 = vmatprep.mubr.bf16.mxu0 %v890
        %998 = vmatmul.mubr.bf16.gmra.mxu0 %v889
        %v999 = vpop.f32.mrf.mxu0
        %v1000 = vadd.f32 0.0, %v999
        %v1001 = vpop.f32.mrf.mxu0
        %v1002 = vpop.f32.mrf.mxu0
        %v1003 = vadd.f32 0.0, %v1002
        %v1004 = vpop.f32.mrf.mxu0
        %1005 = vdwg.mxu0
        %1006 = vmatprep.subr.bf16.mxu0 %v636
        %1007 = vmatpush1.bf16.xpose.msra.mxu0 %v635
        %1008 = vmatprep.subr.bf16.mxu0 %v632
        %1009 = vmatpush1.bf16.xpose.msra.mxu0 %v631
        %1010 = vmatprep.subr.bf16.mxu0 %v628
        %1011 = vmatpush1.bf16.xpose.msra.mxu0 %v627
        %1012 = vmatprep.subr.bf16.mxu0 %v624
        %1013 = vmatpush1.bf16.xpose.msra.mxu0 %v623
        %1014 = vmatprep.subr.bf16.mxu0 %v620
        %1015 = vmatpush1.bf16.xpose.msra.mxu0 %v619
        %1016 = vmatprep.subr.bf16.mxu0 %v616
        %1017 = vmatpush1.bf16.xpose.msra.mxu0 %v615
        %1018 = vmatprep.subr.bf16.mxu0 %v612
        %1019 = vmatpush1.bf16.xpose.msra.mxu0 %v611
        %1020 = vmatprep.subr.bf16.mxu0 %v608
        %1021 = vmatpush1.bf16.xpose.msra.mxu0 %v607
        %1022 = vmatprep.subr.bf16.mxu0 0
        %1023 = vmatpush2.bf16.xpose.msra.mxu0 0
        %1024 = vmatprep.subr.bf16.mxu0 0
        %1025 = vmatpush2.bf16.xpose.msra.mxu0 0
        %1026 = vmatprep.subr.bf16.mxu0 0
        %1027 = vmatpush2.bf16.xpose.msra.mxu0 0
        %1028 = vmatprep.subr.bf16.mxu0 0
        %1029 = vmatpush2.bf16.xpose.msra.mxu0 0
        %1030 = vmatprep.subr.bf16.mxu0 0
        %1031 = vmatpush2.bf16.xpose.msra.mxu0 0
        %1032 = vmatprep.subr.bf16.mxu0 0
        %1033 = vmatpush2.bf16.xpose.msra.mxu0 0
        %1034 = vmatprep.subr.bf16.mxu0 0
        %1035 = vmatpush2.bf16.xpose.msra.mxu0 0
        %1036 = vmatprep.subr.bf16.mxu0 0
        %1037 = vmatpush2.bf16.xpose.msra.mxu0 0
        %1038 = vmatprep.mubr.bf16.mxu0 %v864
        %1039 = vmatmul.mubr.bf16.gmra.mxu0 %v863
        %v1040 = vpop.f32.mrf.mxu0
        %v1041 = vadd.f32 %v944, %v1040
        %v1042 = vpop.f32.mrf.mxu0
        %v1043 = vpop.f32.mrf.mxu0
        %v1044 = vadd.f32 %v947, %v1043
        %v1045 = vpop.f32.mrf.mxu0
        %1046 = vmatprep.mubr.bf16.mxu0 %v868
        %1047 = vmatmul.mubr.bf16.gmra.mxu0 %v867
        %v1048 = vpop.f32.mrf.mxu0
        %v1049 = vadd.f32 %v952, %v1048
        %v1050 = vpop.f32.mrf.mxu0
        %v1051 = vpop.f32.mrf.mxu0
        %v1052 = vadd.f32 %v955, %v1051
        %v1053 = vpop.f32.mrf.mxu0
        %1054 = vmatprep.mubr.bf16.mxu0 %v872
        %1055 = vmatmul.mubr.bf16.gmra.mxu0 %v871
        %v1056 = vpop.f32.mrf.mxu0
        %v1057 = vadd.f32 %v960, %v1056
        %v1058 = vpop.f32.mrf.mxu0
        %v1059 = vpop.f32.mrf.mxu0
        %v1060 = vadd.f32 %v963, %v1059
        %v1061 = vpop.f32.mrf.mxu0
        %1062 = vmatprep.mubr.bf16.mxu0 %v876
        %1063 = vmatmul.mubr.bf16.gmra.mxu0 %v875
        %v1064 = vpop.f32.mrf.mxu0
        %v1065 = vadd.f32 %v968, %v1064
        %v1066 = vpop.f32.mrf.mxu0
        %v1067 = vpop.f32.mrf.mxu0
        %v1068 = vadd.f32 %v971, %v1067
        %v1069 = vpop.f32.mrf.mxu0
        %1070 = vmatprep.mubr.bf16.mxu0 %v880
        %1071 = vmatmul.mubr.bf16.gmra.mxu0 %v879
        %v1072 = vpop.f32.mrf.mxu0
        %v1073 = vadd.f32 %v976, %v1072
        %v1074 = vpop.f32.mrf.mxu0
        %v1075 = vpop.f32.mrf.mxu0
        %v1076 = vadd.f32 %v979, %v1075
        %v1077 = vpop.f32.mrf.mxu0
        %1078 = vmatprep.mubr.bf16.mxu0 %v884
        %1079 = vmatmul.mubr.bf16.gmra.mxu0 %v883
        %v1080 = vpop.f32.mrf.mxu0
        %v1081 = vadd.f32 %v984, %v1080
        %v1082 = vpop.f32.mrf.mxu0
        %v1083 = vpop.f32.mrf.mxu0
        %v1084 = vadd.f32 %v987, %v1083
        %v1085 = vpop.f32.mrf.mxu0
        %1086 = vmatprep.mubr.bf16.mxu0 %v888
        %1087 = vmatmul.mubr.bf16.gmra.mxu0 %v887
        %v1088 = vpop.f32.mrf.mxu0
        %v1089 = vadd.f32 %v992, %v1088
        %v1090 = vpop.f32.mrf.mxu0
        %v1091 = vpop.f32.mrf.mxu0
        %v1092 = vadd.f32 %v995, %v1091
        %v1093 = vpop.f32.mrf.mxu0
        %1094 = vmatprep.mubr.bf16.mxu0 %v892
        %1095 = vmatmul.mubr.bf16.gmra.mxu0 %v891
        %v1096 = vpop.f32.mrf.mxu0
        %v1097 = vadd.f32 %v1000, %v1096
        %v1098 = vpop.f32.mrf.mxu0
        %v1099 = vpop.f32.mrf.mxu0
        %v1100 = vadd.f32 %v1003, %v1099
        %v1101 = vpop.f32.mrf.mxu0
        %1102 = vdwg.mxu0
        %v1103 = vadd.f32 %v893, %v1041
        %v1104 = vadd.f32 %v894, %v1044
        %v1105 = vadd.f32 %v895, %v1049
        %v1106 = vadd.f32 %v896, %v1052
        %v1107 = vadd.f32 %v897, %v1057
        %v1108 = vadd.f32 %v898, %v1060
        %v1109 = vadd.f32 %v899, %v1065
        %v1110 = vadd.f32 %v900, %v1068
        %v1111 = vadd.f32 %v901, %v1073
        %v1112 = vadd.f32 %v902, %v1076
        %v1113 = vadd.f32 %v903, %v1081
        %v1114 = vadd.f32 %v904, %v1084
        %v1115 = vadd.f32 %v905, %v1089
        %v1116 = vadd.f32 %v906, %v1092
        %v1117 = vadd.f32 %v907, %v1097
        %v1118 = vadd.f32 %v908, %v1100
        %1119 = vst [vmem:[#allocation2] sm:$0xff] %v1103
        %1120 = vst [vmem:[#allocation2 + $0x8] sm:$0xff] %v1104
        %1121 = vst [vmem:[#allocation2 + $0x10] sm:$0xff] %v1105
        %1122 = vst [vmem:[#allocation2 + $0x18] sm:$0xff] %v1106
        %1123 = vst [vmem:[#allocation2 + $0x20] sm:$0xff] %v1107
        %1124 = vst [vmem:[#allocation2 + $0x28] sm:$0xff] %v1108
        %1125 = vst [vmem:[#allocation2 + $0x30] sm:$0xff] %v1109
        %1126 = vst [vmem:[#allocation2 + $0x38] sm:$0xff] %v1110
        %1127 = vst [vmem:[#allocation2 + $0x40] sm:$0xff] %v1111
        %1128 = vst [vmem:[#allocation2 + $0x48] sm:$0xff] %v1112
        %1129 = vst [vmem:[#allocation2 + $0x50] sm:$0xff] %v1113
        %1130 = vst [vmem:[#allocation2 + $0x58] sm:$0xff] %v1114
        %1131 = vst [vmem:[#allocation2 + $0x60] sm:$0xff] %v1115
        %1132 = vst [vmem:[#allocation2 + $0x68] sm:$0xff] %v1116
        %1133 = vst [vmem:[#allocation2 + $0x70] sm:$0xff] %v1117
        %1134 = vst [vmem:[#allocation2 + $0x78] sm:$0xff] %v1118
        %p1135 = scmp.eq.s32.totalorder %s25, 2
        // Predicated region
        $region73: #{tpu_custom_call.1} parent=47 // pred_check
          %p1136 = pneg %p1135
        $region74: #{tpu_custom_call.1} parent=47 // pred_check_branch
          %1138 = sbr.rel (%p1136) target = $region76
        $region75: #{tpu_custom_call.1} parent=47 // pred_region
          %v1139 = vld [vmem:[#allocation8] sm:$0xff]
          %v1140 = vld [vmem:[#allocation8 + $0x8] sm:$0xff]
          %v1141 = vld [vmem:[#allocation8 + $0x10] sm:$0xff]
          %v1142 = vld [vmem:[#allocation8 + $0x18] sm:$0xff]
          %v1143 = vld [vmem:[#allocation8 + $0x20] sm:$0xff]
          %v1144 = vld [vmem:[#allocation8 + $0x28] sm:$0xff]
          %v1145 = vld [vmem:[#allocation8 + $0x30] sm:$0xff]
          %v1146 = vld [vmem:[#allocation8 + $0x38] sm:$0xff]
          %v1147 = vld [vmem:[#allocation8 + $0x40] sm:$0xff]
          %v1148 = vld [vmem:[#allocation8 + $0x48] sm:$0xff]
          %v1149 = vld [vmem:[#allocation8 + $0x50] sm:$0xff]
          %v1150 = vld [vmem:[#allocation8 + $0x58] sm:$0xff]
          %v1151 = vld [vmem:[#allocation8 + $0x60] sm:$0xff]
          %v1152 = vld [vmem:[#allocation8 + $0x68] sm:$0xff]
          %v1153 = vld [vmem:[#allocation8 + $0x70] sm:$0xff]
          %v1154 = vld [vmem:[#allocation8 + $0x78] sm:$0xff]
          %v1155 = vld [vmem:[#allocation2] sm:$0xff]
          %v1156 = vld [vmem:[#allocation2 + $0x8] sm:$0xff]
          %v1157 = vld [vmem:[#allocation2 + $0x10] sm:$0xff]
          %v1158 = vld [vmem:[#allocation2 + $0x18] sm:$0xff]
          %v1159 = vld [vmem:[#allocation2 + $0x20] sm:$0xff]
          %v1160 = vld [vmem:[#allocation2 + $0x28] sm:$0xff]
          %v1161 = vld [vmem:[#allocation2 + $0x30] sm:$0xff]
          %v1162 = vld [vmem:[#allocation2 + $0x38] sm:$0xff]
          %v1163 = vld [vmem:[#allocation2 + $0x40] sm:$0xff]
          %v1164 = vld [vmem:[#allocation2 + $0x48] sm:$0xff]
          %v1165 = vld [vmem:[#allocation2 + $0x50] sm:$0xff]
          %v1166 = vld [vmem:[#allocation2 + $0x58] sm:$0xff]
          %v1167 = vld [vmem:[#allocation2 + $0x60] sm:$0xff]
          %v1168 = vld [vmem:[#allocation2 + $0x68] sm:$0xff]
          %v1169 = vld [vmem:[#allocation2 + $0x70] sm:$0xff]
          %v1170 = vld [vmem:[#allocation2 + $0x78] sm:$0xff]
          %1171 = vmatprep.subr.mxu0 0.0
          %1172 = vmatpush1.msra.mxu0 %v1154
          %1173 = vmatprep.subr.mxu0 0.0
          %1174 = vmatpush1.msra.mxu0 %v1153
          %1175 = vmatprep.subr.mxu0 0.0
          %1176 = vmatpush1.msra.mxu0 %v1152
          %1177 = vmatprep.subr.mxu0 0.0
          %1178 = vmatpush1.msra.mxu0 %v1151
          %1179 = vmatprep.subr.mxu0 0.0
          %1180 = vmatpush1.msra.mxu0 %v1150
          %1181 = vmatprep.subr.mxu0 0.0
          %1182 = vmatpush1.msra.mxu0 %v1149
          %1183 = vmatprep.subr.mxu0 0.0
          %1184 = vmatpush1.msra.mxu0 %v1148
          %1185 = vmatprep.subr.mxu0 0.0
          %1186 = vmatpush1.msra.mxu0 %v1147
          %1187 = vmatprep.subr.mxu0 0.0
          %1188 = vmatpush1.msra.mxu0 %v1146
          %1189 = vmatprep.subr.mxu0 0.0
          %1190 = vmatpush1.msra.mxu0 %v1145
          %1191 = vmatprep.subr.mxu0 0.0
          %1192 = vmatpush1.msra.mxu0 %v1144
          %1193 = vmatprep.subr.mxu0 0.0
          %1194 = vmatpush1.msra.mxu0 %v1143
          %1195 = vmatprep.subr.mxu0 0.0
          %1196 = vmatpush1.msra.mxu0 %v1142
          %1197 = vmatprep.subr.mxu0 0.0
          %1198 = vmatpush1.msra.mxu0 %v1141
          %1199 = vmatprep.subr.mxu0 0.0
          %1200 = vmatpush1.msra.mxu0 %v1140
          %1201 = vmatprep.subr.mxu0 0.0
          %1202 = vmatpush1.msra.mxu0 %v1139
          %1203 = vmatprep.subr.mxu0 0.0
          %1204 = vmatpush2.msra.mxu0 0.0
          %1205 = vmatprep.subr.mxu0 0.0
          %1206 = vmatpush2.msra.mxu0 0.0
          %1207 = vmatprep.subr.mxu0 0.0
          %1208 = vmatpush2.msra.mxu0 0.0
          %1209 = vmatprep.subr.mxu0 0.0
          %1210 = vmatpush2.msra.mxu0 0.0
          %1211 = vmatprep.subr.mxu0 0.0
          %1212 = vmatpush2.msra.mxu0 0.0
          %1213 = vmatprep.subr.mxu0 0.0
          %1214 = vmatpush2.msra.mxu0 0.0
          %1215 = vmatprep.subr.mxu0 0.0
          %1216 = vmatpush2.msra.mxu0 0.0
          %1217 = vmatprep.subr.mxu0 0.0
          %1218 = vmatpush2.msra.mxu0 0.0
          %1219 = vmatprep.subr.mxu0 0.0
          %1220 = vmatpush2.msra.mxu0 0.0
          %1221 = vmatprep.subr.mxu0 0.0
          %1222 = vmatpush2.msra.mxu0 0.0
          %1223 = vmatprep.subr.mxu0 0.0
          %1224 = vmatpush2.msra.mxu0 0.0
          %1225 = vmatprep.subr.mxu0 0.0
          %1226 = vmatpush2.msra.mxu0 0.0
          %1227 = vmatprep.subr.mxu0 0.0
          %1228 = vmatpush2.msra.mxu0 0.0
          %1229 = vmatprep.subr.mxu0 0.0
          %1230 = vmatpush2.msra.mxu0 0.0
          %1231 = vmatprep.subr.mxu0 0.0
          %1232 = vmatpush2.msra.mxu0 0.0
          %1233 = vmatprep.subr.mxu0 0.0
          %1234 = vmatpush2.msra.mxu0 0.0
          %1235 = vmatprep.mubr.f32.mxu0 0.0
          %1236 = vmatmul.mubr.f32.gmra.mxu0 %v1155
          %v1237 = vpop.f32.mrf.mxu0
          %v1238 = vadd.f32 0.0, %v1237
          %v1239 = vpop.f32.mrf.mxu0
          %1240 = vmatprep.mubr.f32.mxu0 0.0
          %1241 = vmatmul.mubr.f32.gmra.mxu0 %v1156
          %v1242 = vpop.f32.mrf.mxu0
          %v1243 = vadd.f32 0.0, %v1242
          %v1244 = vpop.f32.mrf.mxu0
          %1245 = vmatprep.mubr.f32.mxu0 0.0
          %1246 = vmatmul.mubr.f32.gmra.mxu0 %v1157
          %v1247 = vpop.f32.mrf.mxu0
          %v1248 = vadd.f32 0.0, %v1247
          %v1249 = vpop.f32.mrf.mxu0
          %1250 = vmatprep.mubr.f32.mxu0 0.0
          %1251 = vmatmul.mubr.f32.gmra.mxu0 %v1158
          %v1252 = vpop.f32.mrf.mxu0
          %v1253 = vadd.f32 0.0, %v1252
          %v1254 = vpop.f32.mrf.mxu0
          %1255 = vmatprep.mubr.f32.mxu0 0.0
          %1256 = vmatmul.mubr.f32.gmra.mxu0 %v1159
          %v1257 = vpop.f32.mrf.mxu0
          %v1258 = vadd.f32 0.0, %v1257
          %v1259 = vpop.f32.mrf.mxu0
          %1260 = vmatprep.mubr.f32.mxu0 0.0
          %1261 = vmatmul.mubr.f32.gmra.mxu0 %v1160
          %v1262 = vpop.f32.mrf.mxu0
          %v1263 = vadd.f32 0.0, %v1262
          %v1264 = vpop.f32.mrf.mxu0
          %1265 = vmatprep.mubr.f32.mxu0 0.0
          %1266 = vmatmul.mubr.f32.gmra.mxu0 %v1161
          %v1267 = vpop.f32.mrf.mxu0
          %v1268 = vadd.f32 0.0, %v1267
          %v1269 = vpop.f32.mrf.mxu0
          %1270 = vmatprep.mubr.f32.mxu0 0.0
          %1271 = vmatmul.mubr.f32.gmra.mxu0 %v1162
          %v1272 = vpop.f32.mrf.mxu0
          %v1273 = vadd.f32 0.0, %v1272
          %v1274 = vpop.f32.mrf.mxu0
          %1275 = vmatprep.mubr.f32.mxu0 0.0
          %1276 = vmatmul.mubr.f32.gmra.mxu0 %v1163
          %v1277 = vpop.f32.mrf.mxu0
          %v1278 = vadd.f32 0.0, %v1277
          %v1279 = vpop.f32.mrf.mxu0
          %1280 = vmatprep.mubr.f32.mxu0 0.0
          %1281 = vmatmul.mubr.f32.gmra.mxu0 %v1164
          %v1282 = vpop.f32.mrf.mxu0
          %v1283 = vadd.f32 0.0, %v1282
          %v1284 = vpop.f32.mrf.mxu0
          %1285 = vmatprep.mubr.f32.mxu0 0.0
          %1286 = vmatmul.mubr.f32.gmra.mxu0 %v1165
          %v1287 = vpop.f32.mrf.mxu0
          %v1288 = vadd.f32 0.0, %v1287
          %v1289 = vpop.f32.mrf.mxu0
          %1290 = vmatprep.mubr.f32.mxu0 0.0
          %1291 = vmatmul.mubr.f32.gmra.mxu0 %v1166
          %v1292 = vpop.f32.mrf.mxu0
          %v1293 = vadd.f32 0.0, %v1292
          %v1294 = vpop.f32.mrf.mxu0
          %1295 = vmatprep.mubr.f32.mxu0 0.0
          %1296 = vmatmul.mubr.f32.gmra.mxu0 %v1167
          %v1297 = vpop.f32.mrf.mxu0
          %v1298 = vadd.f32 0.0, %v1297
          %v1299 = vpop.f32.mrf.mxu0
          %1300 = vmatprep.mubr.f32.mxu0 0.0
          %1301 = vmatmul.mubr.f32.gmra.mxu0 %v1168
          %v1302 = vpop.f32.mrf.mxu0
          %v1303 = vadd.f32 0.0, %v1302
          %v1304 = vpop.f32.mrf.mxu0
          %1305 = vmatprep.mubr.f32.mxu0 0.0
          %1306 = vmatmul.mubr.f32.gmra.mxu0 %v1169
          %v1307 = vpop.f32.mrf.mxu0
          %v1308 = vadd.f32 0.0, %v1307
          %v1309 = vpop.f32.mrf.mxu0
          %1310 = vmatprep.mubr.f32.mxu0 0.0
          %1311 = vmatmul.mubr.f32.gmra.mxu0 %v1170
          %v1312 = vpop.f32.mrf.mxu0
          %v1313 = vadd.f32 0.0, %v1312
          %v1314 = vpop.f32.mrf.mxu0
          %1315 = vdwg.mxu0
          %s1316 = sld [smem:[#allocation7]]
          %s1317 = sadd.f32 %s1316, 1.0
          %v1318 = vstv %s1317
          %v1319 = vmul.f32 %v1318, %v1139
          %v1320 = vmul.f32 %v1318, %v1140
          %v1321 = vmul.f32 %v1318, %v1141
          %v1322 = vmul.f32 %v1318, %v1142
          %v1323 = vmul.f32 %v1318, %v1143
          %v1324 = vmul.f32 %v1318, %v1144
          %v1325 = vmul.f32 %v1318, %v1145
          %v1326 = vmul.f32 %v1318, %v1146
          %v1327 = vmul.f32 %v1318, %v1147
          %v1328 = vmul.f32 %v1318, %v1148
          %v1329 = vmul.f32 %v1318, %v1149
          %v1330 = vmul.f32 %v1318, %v1150
          %v1331 = vmul.f32 %v1318, %v1151
          %v1332 = vmul.f32 %v1318, %v1152
          %v1333 = vmul.f32 %v1318, %v1153
          %v1334 = vmul.f32 %v1318, %v1154
          %v1335 = vadd.f32 %v1319, %v1238
          %v1336 = vadd.f32 %v1320, %v1243
          %v1337 = vadd.f32 %v1321, %v1248
          %v1338 = vadd.f32 %v1322, %v1253
          %v1339 = vadd.f32 %v1323, %v1258
          %v1340 = vadd.f32 %v1324, %v1263
          %v1341 = vadd.f32 %v1325, %v1268
          %v1342 = vadd.f32 %v1326, %v1273
          %v1343 = vadd.f32 %v1327, %v1278
          %v1344 = vadd.f32 %v1328, %v1283
          %v1345 = vadd.f32 %v1329, %v1288
          %v1346 = vadd.f32 %v1330, %v1293
          %v1347 = vadd.f32 %v1331, %v1298
          %v1348 = vadd.f32 %v1332, %v1303
          %v1349 = vadd.f32 %v1333, %v1308
          %v1350 = vadd.f32 %v1334, %v1313
          %v1351 = vpack.c.bf16 %v1336, %v1335
          %v1352 = vpack.c.bf16 %v1338, %v1337
          %v1353 = vpack.c.bf16 %v1340, %v1339
          %v1354 = vpack.c.bf16 %v1342, %v1341
          %v1355 = vpack.c.bf16 %v1344, %v1343
          %v1356 = vpack.c.bf16 %v1346, %v1345
          %v1357 = vpack.c.bf16 %v1348, %v1347
          %v1358 = vpack.c.bf16 %v1350, %v1349
          %v1359 = vld [vmem:[#allocation10] sm:$0xf]
          %v1360 = vld [vmem:[#allocation10 + $0x4] sm:$0xf]
          %v1361 = vld [vmem:[#allocation10 + $0x8] sm:$0xf]
          %v1362 = vld [vmem:[#allocation10 + $0xc] sm:$0xf]
          %v1363 = vld [vmem:[#allocation10 + $0x10] sm:$0xf]
          %v1364 = vld [vmem:[#allocation10 + $0x14] sm:$0xf]
          %v1365 = vld [vmem:[#allocation10 + $0x18] sm:$0xf]
          %v1366 = vld [vmem:[#allocation10 + $0x1c] sm:$0xf]
          %v1367 = vld [vmem:[#allocation10 + $0x20] sm:$0xf]
          %v1368 = vld [vmem:[#allocation10 + $0x24] sm:$0xf]
          %v1369 = vld [vmem:[#allocation10 + $0x28] sm:$0xf]
          %v1370 = vld [vmem:[#allocation10 + $0x2c] sm:$0xf]
          %v1371 = vld [vmem:[#allocation10 + $0x30] sm:$0xf]
          %v1372 = vld [vmem:[#allocation10 + $0x34] sm:$0xf]
          %v1373 = vld [vmem:[#allocation10 + $0x38] sm:$0xf]
          %v1374 = vld [vmem:[#allocation10 + $0x3c] sm:$0xf]
          %v1375 = vld [vmem:[%s4] sm:$0x1]
          %v1377 = vlaneseq
          %v1378 = vshrl.u32 %v1377, 7
          %v1379 = vsub.s32 0, %v1378
          %v1380 = vrot.slane %v1375, %v1379
          %v1398 = vunpack.c.l.b16 %v1359
          %v1399 = vunpack.c.l.b16 %v1360
          %v1400 = vunpack.c.l.b16 %v1361
          %v1401 = vunpack.c.l.b16 %v1362
          %v1402 = vunpack.c.l.b16 %v1363
          %v1403 = vunpack.c.l.b16 %v1364
          %v1404 = vunpack.c.l.b16 %v1365
          %v1405 = vunpack.c.l.b16 %v1366
          %v1406 = vunpack.c.l.b16 %v1367
          %v1407 = vunpack.c.l.b16 %v1368
          %v1408 = vunpack.c.l.b16 %v1369
          %v1409 = vunpack.c.l.b16 %v1370
          %v1410 = vunpack.c.l.b16 %v1371
          %v1411 = vunpack.c.l.b16 %v1372
          %v1412 = vunpack.c.l.b16 %v1373
          %v1413 = vunpack.c.l.b16 %v1374
          %v1414 = vpack.c.b16 %v1399, %v1398
          %v1415 = vpack.c.b16 %v1401, %v1400
          %v1416 = vpack.c.b16 %v1403, %v1402
          %v1417 = vpack.c.b16 %v1405, %v1404
          %v1418 = vpack.c.b16 %v1407, %v1406
          %v1419 = vpack.c.b16 %v1409, %v1408
          %v1420 = vpack.c.b16 %v1411, %v1410
          %v1421 = vpack.c.b16 %v1413, %v1412
          %1430 = vmatprep.subr.bf16.mxu0 0
          %1431 = vmatpush1.bf16.msra.mxu0 %v1421
          %1432 = vmatprep.subr.bf16.mxu0 0
          %1433 = vmatpush1.bf16.msra.mxu0 %v1420
          %1434 = vmatprep.subr.bf16.mxu0 0
          %1435 = vmatpush1.bf16.msra.mxu0 %v1419
          %1436 = vmatprep.subr.bf16.mxu0 0
          %1437 = vmatpush1.bf16.msra.mxu0 %v1418
          %1438 = vmatprep.subr.bf16.mxu0 0
          %1439 = vmatpush1.bf16.msra.mxu0 %v1417
          %1440 = vmatprep.subr.bf16.mxu0 0
          %1441 = vmatpush1.bf16.msra.mxu0 %v1416
          %1442 = vmatprep.subr.bf16.mxu0 0
          %1443 = vmatpush1.bf16.msra.mxu0 %v1415
          %1444 = vmatprep.subr.bf16.mxu0 0
          %1445 = vmatpush1.bf16.msra.mxu0 %v1414
          %1446 = vmatprep.subr.bf16.mxu0 0
          %1447 = vmatpush2.bf16.msra.mxu0 0
          %1448 = vmatprep.subr.bf16.mxu0 0
          %1449 = vmatpush2.bf16.msra.mxu0 0
          %1450 = vmatprep.subr.bf16.mxu0 0
          %1451 = vmatpush2.bf16.msra.mxu0 0
          %1452 = vmatprep.subr.bf16.mxu0 0
          %1453 = vmatpush2.bf16.msra.mxu0 0
          %1454 = vmatprep.subr.bf16.mxu0 0
          %1455 = vmatpush2.bf16.msra.mxu0 0
          %1456 = vmatprep.subr.bf16.mxu0 0
          %1457 = vmatpush2.bf16.msra.mxu0 0
          %1458 = vmatprep.subr.bf16.mxu0 0
          %1459 = vmatpush2.bf16.msra.mxu0 0
          %1460 = vmatprep.subr.bf16.mxu0 0
          %1461 = vmatpush2.bf16.msra.mxu0 0
          %1462 = vmatprep.mubr.bf16.mxu0 0
          %1463 = vmatmul.mubr.bf16.gmra.mxu0 %v1351
          %v1464 = vpop.f32.mrf.mxu0
          %v1465 = vadd.f32 %v1380, %v1464
          %v1466 = vpop.f32.mrf.mxu0
          %v1467 = vpop.f32.mrf.mxu0
          %v1468 = vadd.f32 %v1380, %v1467
          %v1469 = vpop.f32.mrf.mxu0
          %1470 = vmatprep.mubr.bf16.mxu0 0
          %1471 = vmatmul.mubr.bf16.gmra.mxu0 %v1352
          %v1472 = vpop.f32.mrf.mxu0
          %v1473 = vadd.f32 %v1380, %v1472
          %v1474 = vpop.f32.mrf.mxu0
          %v1475 = vpop.f32.mrf.mxu0
          %v1476 = vadd.f32 %v1380, %v1475
          %v1477 = vpop.f32.mrf.mxu0
          %1478 = vmatprep.mubr.bf16.mxu0 0
          %1479 = vmatmul.mubr.bf16.gmra.mxu0 %v1353
          %v1480 = vpop.f32.mrf.mxu0
          %v1481 = vadd.f32 %v1380, %v1480
          %v1482 = vpop.f32.mrf.mxu0
          %v1483 = vpop.f32.mrf.mxu0
          %v1484 = vadd.f32 %v1380, %v1483
          %v1485 = vpop.f32.mrf.mxu0
          %1486 = vmatprep.mubr.bf16.mxu0 0
          %1487 = vmatmul.mubr.bf16.gmra.mxu0 %v1354
          %v1488 = vpop.f32.mrf.mxu0
          %v1489 = vadd.f32 %v1380, %v1488
          %v1490 = vpop.f32.mrf.mxu0
          %v1491 = vpop.f32.mrf.mxu0
          %v1492 = vadd.f32 %v1380, %v1491
          %v1493 = vpop.f32.mrf.mxu0
          %1494 = vmatprep.mubr.bf16.mxu0 0
          %1495 = vmatmul.mubr.bf16.gmra.mxu0 %v1355
          %v1496 = vpop.f32.mrf.mxu0
          %v1497 = vadd.f32 %v1380, %v1496
          %v1498 = vpop.f32.mrf.mxu0
          %v1499 = vpop.f32.mrf.mxu0
          %v1500 = vadd.f32 %v1380, %v1499
          %v1501 = vpop.f32.mrf.mxu0
          %1502 = vmatprep.mubr.bf16.mxu0 0
          %1503 = vmatmul.mubr.bf16.gmra.mxu0 %v1356
          %v1504 = vpop.f32.mrf.mxu0
          %v1505 = vadd.f32 %v1380, %v1504
          %v1506 = vpop.f32.mrf.mxu0
          %v1507 = vpop.f32.mrf.mxu0
          %v1508 = vadd.f32 %v1380, %v1507
          %v1509 = vpop.f32.mrf.mxu0
          %1510 = vmatprep.mubr.bf16.mxu0 0
          %1511 = vmatmul.mubr.bf16.gmra.mxu0 %v1357
          %v1512 = vpop.f32.mrf.mxu0
          %v1513 = vadd.f32 %v1380, %v1512
          %v1514 = vpop.f32.mrf.mxu0
          %v1515 = vpop.f32.mrf.mxu0
          %v1516 = vadd.f32 %v1380, %v1515
          %v1517 = vpop.f32.mrf.mxu0
          %1518 = vmatprep.mubr.bf16.mxu0 0
          %1519 = vmatmul.mubr.bf16.gmra.mxu0 %v1358
          %v1520 = vpop.f32.mrf.mxu0
          %v1521 = vadd.f32 %v1380, %v1520
          %v1522 = vpop.f32.mrf.mxu0
          %v1523 = vpop.f32.mrf.mxu0
          %v1524 = vadd.f32 %v1380, %v1523
          %v1525 = vpop.f32.mrf.mxu0
          %1526 = vdwg.mxu0
          %v1527 = vmax.f32 %v1465, 0.0
          %v1528 = vmax.f32 %v1468, 0.0
          %v1529 = vmax.f32 %v1473, 0.0
          %v1530 = vmax.f32 %v1476, 0.0
          %v1531 = vmax.f32 %v1481, 0.0
          %v1532 = vmax.f32 %v1484, 0.0
          %v1533 = vmax.f32 %v1489, 0.0
          %v1534 = vmax.f32 %v1492, 0.0
          %v1535 = vmax.f32 %v1497, 0.0
          %v1536 = vmax.f32 %v1500, 0.0
          %v1537 = vmax.f32 %v1505, 0.0
          %v1538 = vmax.f32 %v1508, 0.0
          %v1539 = vmax.f32 %v1513, 0.0
          %v1540 = vmax.f32 %v1516, 0.0
          %v1541 = vmax.f32 %v1521, 0.0
          %v1542 = vmax.f32 %v1524, 0.0
          %v1543 = vpack.c.bf16 %v1528, %v1527
          %v1544 = vpack.c.bf16 %v1530, %v1529
          %v1545 = vpack.c.bf16 %v1532, %v1531
          %v1546 = vpack.c.bf16 %v1534, %v1533
          %v1547 = vpack.c.bf16 %v1536, %v1535
          %v1548 = vpack.c.bf16 %v1538, %v1537
          %v1549 = vpack.c.bf16 %v1540, %v1539
          %v1550 = vpack.c.bf16 %v1542, %v1541
          %v1551 = vld [vmem:[#allocation11] sm:$0xf]
          %v1552 = vld [vmem:[#allocation11 + $0x4] sm:$0xf]
          %v1553 = vld [vmem:[#allocation11 + $0x8] sm:$0xf]
          %v1554 = vld [vmem:[#allocation11 + $0xc] sm:$0xf]
          %v1555 = vld [vmem:[#allocation11 + $0x10] sm:$0xf]
          %v1556 = vld [vmem:[#allocation11 + $0x14] sm:$0xf]
          %v1557 = vld [vmem:[#allocation11 + $0x18] sm:$0xf]
          %v1558 = vld [vmem:[#allocation11 + $0x1c] sm:$0xf]
          %v1559 = vld [vmem:[#allocation11 + $0x20] sm:$0xf]
          %v1560 = vld [vmem:[#allocation11 + $0x24] sm:$0xf]
          %v1561 = vld [vmem:[#allocation11 + $0x28] sm:$0xf]
          %v1562 = vld [vmem:[#allocation11 + $0x2c] sm:$0xf]
          %v1563 = vld [vmem:[#allocation11 + $0x30] sm:$0xf]
          %v1564 = vld [vmem:[#allocation11 + $0x34] sm:$0xf]
          %v1565 = vld [vmem:[#allocation11 + $0x38] sm:$0xf]
          %v1566 = vld [vmem:[#allocation11 + $0x3c] sm:$0xf]
          %v1567 = vld [vmem:[%s6] sm:$0x1]
          %v1569 = vlaneseq
          %v1570 = vshrl.u32 %v1569, 7
          %v1571 = vsub.s32 0, %v1570
          %v1572 = vrot.slane %v1567, %v1571
          %v1590 = vunpack.c.l.b16 %v1551
          %v1591 = vunpack.c.l.b16 %v1552
          %v1592 = vunpack.c.l.b16 %v1553
          %v1593 = vunpack.c.l.b16 %v1554
          %v1594 = vunpack.c.l.b16 %v1555
          %v1595 = vunpack.c.l.b16 %v1556
          %v1596 = vunpack.c.l.b16 %v1557
          %v1597 = vunpack.c.l.b16 %v1558
          %v1598 = vunpack.c.l.b16 %v1559
          %v1599 = vunpack.c.l.b16 %v1560
          %v1600 = vunpack.c.l.b16 %v1561
          %v1601 = vunpack.c.l.b16 %v1562
          %v1602 = vunpack.c.l.b16 %v1563
          %v1603 = vunpack.c.l.b16 %v1564
          %v1604 = vunpack.c.l.b16 %v1565
          %v1605 = vunpack.c.l.b16 %v1566
          %v1606 = vpack.c.b16 %v1591, %v1590
          %v1607 = vpack.c.b16 %v1593, %v1592
          %v1608 = vpack.c.b16 %v1595, %v1594
          %v1609 = vpack.c.b16 %v1597, %v1596
          %v1610 = vpack.c.b16 %v1599, %v1598
          %v1611 = vpack.c.b16 %v1601, %v1600
          %v1612 = vpack.c.b16 %v1603, %v1602
          %v1613 = vpack.c.b16 %v1605, %v1604
          %1622 = vmatprep.subr.bf16.mxu0 0
          %1623 = vmatpush1.bf16.msra.mxu0 %v1613
          %1624 = vmatprep.subr.bf16.mxu0 0
          %1625 = vmatpush1.bf16.msra.mxu0 %v1612
          %1626 = vmatprep.subr.bf16.mxu0 0
          %1627 = vmatpush1.bf16.msra.mxu0 %v1611
          %1628 = vmatprep.subr.bf16.mxu0 0
          %1629 = vmatpush1.bf16.msra.mxu0 %v1610
          %1630 = vmatprep.subr.bf16.mxu0 0
          %1631 = vmatpush1.bf16.msra.mxu0 %v1609
          %1632 = vmatprep.subr.bf16.mxu0 0
          %1633 = vmatpush1.bf16.msra.mxu0 %v1608
          %1634 = vmatprep.subr.bf16.mxu0 0
          %1635 = vmatpush1.bf16.msra.mxu0 %v1607
          %1636 = vmatprep.subr.bf16.mxu0 0
          %1637 = vmatpush1.bf16.msra.mxu0 %v1606
          %1638 = vmatprep.subr.bf16.mxu0 0
          %1639 = vmatpush2.bf16.msra.mxu0 0
          %1640 = vmatprep.subr.bf16.mxu0 0
          %1641 = vmatpush2.bf16.msra.mxu0 0
          %1642 = vmatprep.subr.bf16.mxu0 0
          %1643 = vmatpush2.bf16.msra.mxu0 0
          %1644 = vmatprep.subr.bf16.mxu0 0
          %1645 = vmatpush2.bf16.msra.mxu0 0
          %1646 = vmatprep.subr.bf16.mxu0 0
          %1647 = vmatpush2.bf16.msra.mxu0 0
          %1648 = vmatprep.subr.bf16.mxu0 0
          %1649 = vmatpush2.bf16.msra.mxu0 0
          %1650 = vmatprep.subr.bf16.mxu0 0
          %1651 = vmatpush2.bf16.msra.mxu0 0
          %1652 = vmatprep.subr.bf16.mxu0 0
          %1653 = vmatpush2.bf16.msra.mxu0 0
          %1654 = vmatprep.mubr.bf16.mxu0 0
          %1655 = vmatmul.mubr.bf16.gmra.mxu0 %v1543
          %v1656 = vpop.f32.mrf.mxu0
          %v1657 = vadd.f32 %v1572, %v1656
          %v1658 = vpop.f32.mrf.mxu0
          %v1659 = vpop.f32.mrf.mxu0
          %v1660 = vadd.f32 %v1572, %v1659
          %v1661 = vpop.f32.mrf.mxu0
          %1662 = vmatprep.mubr.bf16.mxu0 0
          %1663 = vmatmul.mubr.bf16.gmra.mxu0 %v1544
          %v1664 = vpop.f32.mrf.mxu0
          %v1665 = vadd.f32 %v1572, %v1664
          %v1666 = vpop.f32.mrf.mxu0
          %v1667 = vpop.f32.mrf.mxu0
          %v1668 = vadd.f32 %v1572, %v1667
          %v1669 = vpop.f32.mrf.mxu0
          %1670 = vmatprep.mubr.bf16.mxu0 0
          %1671 = vmatmul.mubr.bf16.gmra.mxu0 %v1545
          %v1672 = vpop.f32.mrf.mxu0
          %v1673 = vadd.f32 %v1572, %v1672
          %v1674 = vpop.f32.mrf.mxu0
          %v1675 = vpop.f32.mrf.mxu0
          %v1676 = vadd.f32 %v1572, %v1675
          %v1677 = vpop.f32.mrf.mxu0
          %1678 = vmatprep.mubr.bf16.mxu0 0
          %1679 = vmatmul.mubr.bf16.gmra.mxu0 %v1546
          %v1680 = vpop.f32.mrf.mxu0
          %v1681 = vadd.f32 %v1572, %v1680
          %v1682 = vpop.f32.mrf.mxu0
          %v1683 = vpop.f32.mrf.mxu0
          %v1684 = vadd.f32 %v1572, %v1683
          %v1685 = vpop.f32.mrf.mxu0
          %1686 = vmatprep.mubr.bf16.mxu0 0
          %1687 = vmatmul.mubr.bf16.gmra.mxu0 %v1547
          %v1688 = vpop.f32.mrf.mxu0
          %v1689 = vadd.f32 %v1572, %v1688
          %v1690 = vpop.f32.mrf.mxu0
          %v1691 = vpop.f32.mrf.mxu0
          %v1692 = vadd.f32 %v1572, %v1691
          %v1693 = vpop.f32.mrf.mxu0
          %1694 = vmatprep.mubr.bf16.mxu0 0
          %1695 = vmatmul.mubr.bf16.gmra.mxu0 %v1548
          %v1696 = vpop.f32.mrf.mxu0
          %v1697 = vadd.f32 %v1572, %v1696
          %v1698 = vpop.f32.mrf.mxu0
          %v1699 = vpop.f32.mrf.mxu0
          %v1700 = vadd.f32 %v1572, %v1699
          %v1701 = vpop.f32.mrf.mxu0
          %1702 = vmatprep.mubr.bf16.mxu0 0
          %1703 = vmatmul.mubr.bf16.gmra.mxu0 %v1549
          %v1704 = vpop.f32.mrf.mxu0
          %v1705 = vadd.f32 %v1572, %v1704
          %v1706 = vpop.f32.mrf.mxu0
          %v1707 = vpop.f32.mrf.mxu0
          %v1708 = vadd.f32 %v1572, %v1707
          %v1709 = vpop.f32.mrf.mxu0
          %1710 = vmatprep.mubr.bf16.mxu0 0
          %1711 = vmatmul.mubr.bf16.gmra.mxu0 %v1550
          %v1712 = vpop.f32.mrf.mxu0
          %v1713 = vadd.f32 %v1572, %v1712
          %v1714 = vpop.f32.mrf.mxu0
          %v1715 = vpop.f32.mrf.mxu0
          %v1716 = vadd.f32 %v1572, %v1715
          %v1717 = vpop.f32.mrf.mxu0
          %1718 = vdwg.mxu0
          %1719 = vmatprep.subr.mxu0 0.0
          %1720 = vmatpush1.msra.mxu0 %v1716
          %1721 = vmatprep.subr.mxu0 0.0
          %1722 = vmatpush1.msra.mxu0 %v1713
          %1723 = vmatprep.subr.mxu0 0.0
          %1724 = vmatpush1.msra.mxu0 %v1708
          %1725 = vmatprep.subr.mxu0 0.0
          %1726 = vmatpush1.msra.mxu0 %v1705
          %1727 = vmatprep.subr.mxu0 0.0
          %1728 = vmatpush1.msra.mxu0 %v1700
          %1729 = vmatprep.subr.mxu0 0.0
          %1730 = vmatpush1.msra.mxu0 %v1697
          %1731 = vmatprep.subr.mxu0 0.0
          %1732 = vmatpush1.msra.mxu0 %v1692
          %1733 = vmatprep.subr.mxu0 0.0
          %1734 = vmatpush1.msra.mxu0 %v1689
          %1735 = vmatprep.subr.mxu0 0.0
          %1736 = vmatpush1.msra.mxu0 %v1684
          %1737 = vmatprep.subr.mxu0 0.0
          %1738 = vmatpush1.msra.mxu0 %v1681
          %1739 = vmatprep.subr.mxu0 0.0
          %1740 = vmatpush1.msra.mxu0 %v1676
          %1741 = vmatprep.subr.mxu0 0.0
          %1742 = vmatpush1.msra.mxu0 %v1673
          %1743 = vmatprep.subr.mxu0 0.0
          %1744 = vmatpush1.msra.mxu0 %v1668
          %1745 = vmatprep.subr.mxu0 0.0
          %1746 = vmatpush1.msra.mxu0 %v1665
          %1747 = vmatprep.subr.mxu0 0.0
          %1748 = vmatpush1.msra.mxu0 %v1660
          %1749 = vmatprep.subr.mxu0 0.0
          %1750 = vmatpush1.msra.mxu0 %v1657
          %1751 = vmatprep.subr.mxu0 0.0
          %1752 = vmatpush2.msra.mxu0 0.0
          %1753 = vmatprep.subr.mxu0 0.0
          %1754 = vmatpush2.msra.mxu0 0.0
          %1755 = vmatprep.subr.mxu0 0.0
          %1756 = vmatpush2.msra.mxu0 0.0
          %1757 = vmatprep.subr.mxu0 0.0
          %1758 = vmatpush2.msra.mxu0 0.0
          %1759 = vmatprep.subr.mxu0 0.0
          %1760 = vmatpush2.msra.mxu0 0.0
          %1761 = vmatprep.subr.mxu0 0.0
          %1762 = vmatpush2.msra.mxu0 0.0
          %1763 = vmatprep.subr.mxu0 0.0
          %1764 = vmatpush2.msra.mxu0 0.0
          %1765 = vmatprep.subr.mxu0 0.0
          %1766 = vmatpush2.msra.mxu0 0.0
          %1767 = vmatprep.subr.mxu0 0.0
          %1768 = vmatpush2.msra.mxu0 0.0
          %1769 = vmatprep.subr.mxu0 0.0
          %1770 = vmatpush2.msra.mxu0 0.0
          %1771 = vmatprep.subr.mxu0 0.0
          %1772 = vmatpush2.msra.mxu0 0.0
          %1773 = vmatprep.subr.mxu0 0.0
          %1774 = vmatpush2.msra.mxu0 0.0
          %1775 = vmatprep.subr.mxu0 0.0
          %1776 = vmatpush2.msra.mxu0 0.0
          %1777 = vmatprep.subr.mxu0 0.0
          %1778 = vmatpush2.msra.mxu0 0.0
          %1779 = vmatprep.subr.mxu0 0.0
          %1780 = vmatpush2.msra.mxu0 0.0
          %1781 = vmatprep.subr.mxu0 0.0
          %1782 = vmatpush2.msra.mxu0 0.0
          %1783 = vmatprep.mubr.f32.mxu0 0.0
          %1784 = vmatmul.mubr.f32.gmra.mxu0 %v1155
          %v1785 = vpop.f32.mrf.mxu0
          %v1786 = vadd.f32 0.0, %v1785
          %v1787 = vpop.f32.mrf.mxu0
          %1788 = vmatprep.mubr.f32.mxu0 0.0
          %1789 = vmatmul.mubr.f32.gmra.mxu0 %v1156
          %v1790 = vpop.f32.mrf.mxu0
          %v1791 = vadd.f32 0.0, %v1790
          %v1792 = vpop.f32.mrf.mxu0
          %1793 = vmatprep.mubr.f32.mxu0 0.0
          %1794 = vmatmul.mubr.f32.gmra.mxu0 %v1157
          %v1795 = vpop.f32.mrf.mxu0
          %v1796 = vadd.f32 0.0, %v1795
          %v1797 = vpop.f32.mrf.mxu0
          %1798 = vmatprep.mubr.f32.mxu0 0.0
          %1799 = vmatmul.mubr.f32.gmra.mxu0 %v1158
          %v1800 = vpop.f32.mrf.mxu0
          %v1801 = vadd.f32 0.0, %v1800
          %v1802 = vpop.f32.mrf.mxu0
          %1803 = vmatprep.mubr.f32.mxu0 0.0
          %1804 = vmatmul.mubr.f32.gmra.mxu0 %v1159
          %v1805 = vpop.f32.mrf.mxu0
          %v1806 = vadd.f32 0.0, %v1805
          %v1807 = vpop.f32.mrf.mxu0
          %1808 = vmatprep.mubr.f32.mxu0 0.0
          %1809 = vmatmul.mubr.f32.gmra.mxu0 %v1160
          %v1810 = vpop.f32.mrf.mxu0
          %v1811 = vadd.f32 0.0, %v1810
          %v1812 = vpop.f32.mrf.mxu0
          %1813 = vmatprep.mubr.f32.mxu0 0.0
          %1814 = vmatmul.mubr.f32.gmra.mxu0 %v1161
          %v1815 = vpop.f32.mrf.mxu0
          %v1816 = vadd.f32 0.0, %v1815
          %v1817 = vpop.f32.mrf.mxu0
          %1818 = vmatprep.mubr.f32.mxu0 0.0
          %1819 = vmatmul.mubr.f32.gmra.mxu0 %v1162
          %v1820 = vpop.f32.mrf.mxu0
          %v1821 = vadd.f32 0.0, %v1820
          %v1822 = vpop.f32.mrf.mxu0
          %1823 = vmatprep.mubr.f32.mxu0 0.0
          %1824 = vmatmul.mubr.f32.gmra.mxu0 %v1163
          %v1825 = vpop.f32.mrf.mxu0
          %v1826 = vadd.f32 0.0, %v1825
          %v1827 = vpop.f32.mrf.mxu0
          %1828 = vmatprep.mubr.f32.mxu0 0.0
          %1829 = vmatmul.mubr.f32.gmra.mxu0 %v1164
          %v1830 = vpop.f32.mrf.mxu0
          %v1831 = vadd.f32 0.0, %v1830
          %v1832 = vpop.f32.mrf.mxu0
          %1833 = vmatprep.mubr.f32.mxu0 0.0
          %1834 = vmatmul.mubr.f32.gmra.mxu0 %v1165
          %v1835 = vpop.f32.mrf.mxu0
          %v1836 = vadd.f32 0.0, %v1835
          %v1837 = vpop.f32.mrf.mxu0
          %1838 = vmatprep.mubr.f32.mxu0 0.0
          %1839 = vmatmul.mubr.f32.gmra.mxu0 %v1166
          %v1840 = vpop.f32.mrf.mxu0
          %v1841 = vadd.f32 0.0, %v1840
          %v1842 = vpop.f32.mrf.mxu0
          %1843 = vmatprep.mubr.f32.mxu0 0.0
          %1844 = vmatmul.mubr.f32.gmra.mxu0 %v1167
          %v1845 = vpop.f32.mrf.mxu0
          %v1846 = vadd.f32 0.0, %v1845
          %v1847 = vpop.f32.mrf.mxu0
          %1848 = vmatprep.mubr.f32.mxu0 0.0
          %1849 = vmatmul.mubr.f32.gmra.mxu0 %v1168
          %v1850 = vpop.f32.mrf.mxu0
          %v1851 = vadd.f32 0.0, %v1850
          %v1852 = vpop.f32.mrf.mxu0
          %1853 = vmatprep.mubr.f32.mxu0 0.0
          %1854 = vmatmul.mubr.f32.gmra.mxu0 %v1169
          %v1855 = vpop.f32.mrf.mxu0
          %v1856 = vadd.f32 0.0, %v1855
          %v1857 = vpop.f32.mrf.mxu0
          %1858 = vmatprep.mubr.f32.mxu0 0.0
          %1859 = vmatmul.mubr.f32.gmra.mxu0 %v1170
          %v1860 = vpop.f32.mrf.mxu0
          %v1861 = vadd.f32 0.0, %v1860
          %v1862 = vpop.f32.mrf.mxu0
          %1863 = vdwg.mxu0
          %s1864 = sld [smem:[#allocation7 + $0x1]]
          %s1865 = sadd.f32 %s1864, 1.0
          %v1866 = vstv %s1865
          %v1867 = vmul.f32 %v1866, %v1657
          %v1868 = vmul.f32 %v1866, %v1660
          %v1869 = vmul.f32 %v1866, %v1665
          %v1870 = vmul.f32 %v1866, %v1668
          %v1871 = vmul.f32 %v1866, %v1673
          %v1872 = vmul.f32 %v1866, %v1676
          %v1873 = vmul.f32 %v1866, %v1681
          %v1874 = vmul.f32 %v1866, %v1684
          %v1875 = vmul.f32 %v1866, %v1689
          %v1876 = vmul.f32 %v1866, %v1692
          %v1877 = vmul.f32 %v1866, %v1697
          %v1878 = vmul.f32 %v1866, %v1700
          %v1879 = vmul.f32 %v1866, %v1705
          %v1880 = vmul.f32 %v1866, %v1708
          %v1881 = vmul.f32 %v1866, %v1713
          %v1882 = vmul.f32 %v1866, %v1716
          %v1883 = vadd.f32 %v1867, %v1786
          %v1884 = vadd.f32 %v1868, %v1791
          %v1885 = vadd.f32 %v1869, %v1796
          %v1886 = vadd.f32 %v1870, %v1801
          %v1887 = vadd.f32 %v1871, %v1806
          %v1888 = vadd.f32 %v1872, %v1811
          %v1889 = vadd.f32 %v1873, %v1816
          %v1890 = vadd.f32 %v1874, %v1821
          %v1891 = vadd.f32 %v1875, %v1826
          %v1892 = vadd.f32 %v1876, %v1831
          %v1893 = vadd.f32 %v1877, %v1836
          %v1894 = vadd.f32 %v1878, %v1841
          %v1895 = vadd.f32 %v1879, %v1846
          %v1896 = vadd.f32 %v1880, %v1851
          %v1897 = vadd.f32 %v1881, %v1856
          %v1898 = vadd.f32 %v1882, %v1861
          %v1899 = vpack.c.bf16 %v1884, %v1883
          %v1900 = vpack.c.bf16 %v1886, %v1885
          %v1901 = vpack.c.bf16 %v1888, %v1887
          %v1902 = vpack.c.bf16 %v1890, %v1889
          %v1903 = vpack.c.bf16 %v1892, %v1891
          %v1904 = vpack.c.bf16 %v1894, %v1893
          %v1905 = vpack.c.bf16 %v1896, %v1895
          %v1906 = vpack.c.bf16 %v1898, %v1897
          %s1907 = scalar_lea.vmem [#allocation10], 64
          %v1908 = vld [vmem:[%s1907] sm:$0xf]
          %v1909 = vld [vmem:[%s1907 + $0x4] sm:$0xf]
          %v1910 = vld [vmem:[%s1907 + $0x8] sm:$0xf]
          %v1911 = vld [vmem:[%s1907 + $0xc] sm:$0xf]
          %v1912 = vld [vmem:[%s1907 + $0x10] sm:$0xf]
          %v1913 = vld [vmem:[%s1907 + $0x14] sm:$0xf]
          %v1914 = vld [vmem:[%s1907 + $0x18] sm:$0xf]
          %v1915 = vld [vmem:[%s1907 + $0x1c] sm:$0xf]
          %v1916 = vld [vmem:[%s1907 + $0x20] sm:$0xf]
          %v1917 = vld [vmem:[%s1907 + $0x24] sm:$0xf]
          %v1918 = vld [vmem:[%s1907 + $0x28] sm:$0xf]
          %v1919 = vld [vmem:[%s1907 + $0x2c] sm:$0xf]
          %v1920 = vld [vmem:[%s1907 + $0x30] sm:$0xf]
          %v1921 = vld [vmem:[%s1907 + $0x34] sm:$0xf]
          %v1922 = vld [vmem:[%s1907 + $0x38] sm:$0xf]
          %v1923 = vld [vmem:[%s1907 + $0x3c] sm:$0xf]
          %s1924 = scalar_lea.vmem %s4, 1
          %v1925 = vld [vmem:[%s1924] sm:$0x1]
          %v1927 = vlaneseq
          %v1928 = vshrl.u32 %v1927, 7
          %v1929 = vsub.s32 0, %v1928
          %v1930 = vrot.slane %v1925, %v1929
          %v1948 = vunpack.c.l.b16 %v1908
          %v1949 = vunpack.c.l.b16 %v1909
          %v1950 = vunpack.c.l.b16 %v1910
          %v1951 = vunpack.c.l.b16 %v1911
          %v1952 = vunpack.c.l.b16 %v1912
          %v1953 = vunpack.c.l.b16 %v1913
          %v1954 = vunpack.c.l.b16 %v1914
          %v1955 = vunpack.c.l.b16 %v1915
          %v1956 = vunpack.c.l.b16 %v1916
          %v1957 = vunpack.c.l.b16 %v1917
          %v1958 = vunpack.c.l.b16 %v1918
          %v1959 = vunpack.c.l.b16 %v1919
          %v1960 = vunpack.c.l.b16 %v1920
          %v1961 = vunpack.c.l.b16 %v1921
          %v1962 = vunpack.c.l.b16 %v1922
          %v1963 = vunpack.c.l.b16 %v1923
          %v1964 = vpack.c.b16 %v1949, %v1948
          %v1965 = vpack.c.b16 %v1951, %v1950
          %v1966 = vpack.c.b16 %v1953, %v1952
          %v1967 = vpack.c.b16 %v1955, %v1954
          %v1968 = vpack.c.b16 %v1957, %v1956
          %v1969 = vpack.c.b16 %v1959, %v1958
          %v1970 = vpack.c.b16 %v1961, %v1960
          %v1971 = vpack.c.b16 %v1963, %v1962
          %1980 = vmatprep.subr.bf16.mxu0 0
          %1981 = vmatpush1.bf16.msra.mxu0 %v1971
          %1982 = vmatprep.subr.bf16.mxu0 0
          %1983 = vmatpush1.bf16.msra.mxu0 %v1970
          %1984 = vmatprep.subr.bf16.mxu0 0
          %1985 = vmatpush1.bf16.msra.mxu0 %v1969
          %1986 = vmatprep.subr.bf16.mxu0 0
          %1987 = vmatpush1.bf16.msra.mxu0 %v1968
          %1988 = vmatprep.subr.bf16.mxu0 0
          %1989 = vmatpush1.bf16.msra.mxu0 %v1967
          %1990 = vmatprep.subr.bf16.mxu0 0
          %1991 = vmatpush1.bf16.msra.mxu0 %v1966
          %1992 = vmatprep.subr.bf16.mxu0 0
          %1993 = vmatpush1.bf16.msra.mxu0 %v1965
          %1994 = vmatprep.subr.bf16.mxu0 0
          %1995 = vmatpush1.bf16.msra.mxu0 %v1964
          %1996 = vmatprep.subr.bf16.mxu0 0
          %1997 = vmatpush2.bf16.msra.mxu0 0
          %1998 = vmatprep.subr.bf16.mxu0 0
          %1999 = vmatpush2.bf16.msra.mxu0 0
          %2000 = vmatprep.subr.bf16.mxu0 0
          %2001 = vmatpush2.bf16.msra.mxu0 0
          %2002 = vmatprep.subr.bf16.mxu0 0
          %2003 = vmatpush2.bf16.msra.mxu0 0
          %2004 = vmatprep.subr.bf16.mxu0 0
          %2005 = vmatpush2.bf16.msra.mxu0 0
          %2006 = vmatprep.subr.bf16.mxu0 0
          %2007 = vmatpush2.bf16.msra.mxu0 0
          %2008 = vmatprep.subr.bf16.mxu0 0
          %2009 = vmatpush2.bf16.msra.mxu0 0
          %2010 = vmatprep.subr.bf16.mxu0 0
          %2011 = vmatpush2.bf16.msra.mxu0 0
          %2012 = vmatprep.mubr.bf16.mxu0 0
          %2013 = vmatmul.mubr.bf16.gmra.mxu0 %v1899
          %v2014 = vpop.f32.mrf.mxu0
          %v2015 = vadd.f32 %v1930, %v2014
          %v2016 = vpop.f32.mrf.mxu0
          %v2017 = vpop.f32.mrf.mxu0
          %v2018 = vadd.f32 %v1930, %v2017
          %v2019 = vpop.f32.mrf.mxu0
          %2020 = vmatprep.mubr.bf16.mxu0 0
          %2021 = vmatmul.mubr.bf16.gmra.mxu0 %v1900
          %v2022 = vpop.f32.mrf.mxu0
          %v2023 = vadd.f32 %v1930, %v2022
          %v2024 = vpop.f32.mrf.mxu0
          %v2025 = vpop.f32.mrf.mxu0
          %v2026 = vadd.f32 %v1930, %v2025
          %v2027 = vpop.f32.mrf.mxu0
          %2028 = vmatprep.mubr.bf16.mxu0 0
          %2029 = vmatmul.mubr.bf16.gmra.mxu0 %v1901
          %v2030 = vpop.f32.mrf.mxu0
          %v2031 = vadd.f32 %v1930, %v2030
          %v2032 = vpop.f32.mrf.mxu0
          %v2033 = vpop.f32.mrf.mxu0
          %v2034 = vadd.f32 %v1930, %v2033
          %v2035 = vpop.f32.mrf.mxu0
          %2036 = vmatprep.mubr.bf16.mxu0 0
          %2037 = vmatmul.mubr.bf16.gmra.mxu0 %v1902
          %v2038 = vpop.f32.mrf.mxu0
          %v2039 = vadd.f32 %v1930, %v2038
          %v2040 = vpop.f32.mrf.mxu0
          %v2041 = vpop.f32.mrf.mxu0
          %v2042 = vadd.f32 %v1930, %v2041
          %v2043 = vpop.f32.mrf.mxu0
          %2044 = vmatprep.mubr.bf16.mxu0 0
          %2045 = vmatmul.mubr.bf16.gmra.mxu0 %v1903
          %v2046 = vpop.f32.mrf.mxu0
          %v2047 = vadd.f32 %v1930, %v2046
          %v2048 = vpop.f32.mrf.mxu0
          %v2049 = vpop.f32.mrf.mxu0
          %v2050 = vadd.f32 %v1930, %v2049
          %v2051 = vpop.f32.mrf.mxu0
          %2052 = vmatprep.mubr.bf16.mxu0 0
          %2053 = vmatmul.mubr.bf16.gmra.mxu0 %v1904
          %v2054 = vpop.f32.mrf.mxu0
          %v2055 = vadd.f32 %v1930, %v2054
          %v2056 = vpop.f32.mrf.mxu0
          %v2057 = vpop.f32.mrf.mxu0
          %v2058 = vadd.f32 %v1930, %v2057
          %v2059 = vpop.f32.mrf.mxu0
          %2060 = vmatprep.mubr.bf16.mxu0 0
          %2061 = vmatmul.mubr.bf16.gmra.mxu0 %v1905
          %v2062 = vpop.f32.mrf.mxu0
          %v2063 = vadd.f32 %v1930, %v2062
          %v2064 = vpop.f32.mrf.mxu0
          %v2065 = vpop.f32.mrf.mxu0
          %v2066 = vadd.f32 %v1930, %v2065
          %v2067 = vpop.f32.mrf.mxu0
          %2068 = vmatprep.mubr.bf16.mxu0 0
          %2069 = vmatmul.mubr.bf16.gmra.mxu0 %v1906
          %v2070 = vpop.f32.mrf.mxu0
          %v2071 = vadd.f32 %v1930, %v2070
          %v2072 = vpop.f32.mrf.mxu0
          %v2073 = vpop.f32.mrf.mxu0
          %v2074 = vadd.f32 %v1930, %v2073
          %v2075 = vpop.f32.mrf.mxu0
          %2076 = vdwg.mxu0
          %v2077 = vmax.f32 %v2015, 0.0
          %v2078 = vmax.f32 %v2018, 0.0
          %v2079 = vmax.f32 %v2023, 0.0
          %v2080 = vmax.f32 %v2026, 0.0
          %v2081 = vmax.f32 %v2031, 0.0
          %v2082 = vmax.f32 %v2034, 0.0
          %v2083 = vmax.f32 %v2039, 0.0
          %v2084 = vmax.f32 %v2042, 0.0
          %v2085 = vmax.f32 %v2047, 0.0
          %v2086 = vmax.f32 %v2050, 0.0
          %v2087 = vmax.f32 %v2055, 0.0
          %v2088 = vmax.f32 %v2058, 0.0
          %v2089 = vmax.f32 %v2063, 0.0
          %v2090 = vmax.f32 %v2066, 0.0
          %v2091 = vmax.f32 %v2071, 0.0
          %v2092 = vmax.f32 %v2074, 0.0
          %v2093 = vpack.c.bf16 %v2078, %v2077
          %v2094 = vpack.c.bf16 %v2080, %v2079
          %v2095 = vpack.c.bf16 %v2082, %v2081
          %v2096 = vpack.c.bf16 %v2084, %v2083
          %v2097 = vpack.c.bf16 %v2086, %v2085
          %v2098 = vpack.c.bf16 %v2088, %v2087
          %v2099 = vpack.c.bf16 %v2090, %v2089
          %v2100 = vpack.c.bf16 %v2092, %v2091
          %s2101 = scalar_lea.vmem [#allocation11], 64
          %v2102 = vld [vmem:[%s2101] sm:$0xf]
          %v2103 = vld [vmem:[%s2101 + $0x4] sm:$0xf]
          %v2104 = vld [vmem:[%s2101 + $0x8] sm:$0xf]
          %v2105 = vld [vmem:[%s2101 + $0xc] sm:$0xf]
          %v2106 = vld [vmem:[%s2101 + $0x10] sm:$0xf]
          %v2107 = vld [vmem:[%s2101 + $0x14] sm:$0xf]
          %v2108 = vld [vmem:[%s2101 + $0x18] sm:$0xf]
          %v2109 = vld [vmem:[%s2101 + $0x1c] sm:$0xf]
          %v2110 = vld [vmem:[%s2101 + $0x20] sm:$0xf]
          %v2111 = vld [vmem:[%s2101 + $0x24] sm:$0xf]
          %v2112 = vld [vmem:[%s2101 + $0x28] sm:$0xf]
          %v2113 = vld [vmem:[%s2101 + $0x2c] sm:$0xf]
          %v2114 = vld [vmem:[%s2101 + $0x30] sm:$0xf]
          %v2115 = vld [vmem:[%s2101 + $0x34] sm:$0xf]
          %v2116 = vld [vmem:[%s2101 + $0x38] sm:$0xf]
          %v2117 = vld [vmem:[%s2101 + $0x3c] sm:$0xf]
          %s2118 = scalar_lea.vmem %s6, 1
          %v2119 = vld [vmem:[%s2118] sm:$0x1]
          %v2121 = vlaneseq
          %v2122 = vshrl.u32 %v2121, 7
          %v2123 = vsub.s32 0, %v2122
          %v2124 = vrot.slane %v2119, %v2123
          %v2142 = vunpack.c.l.b16 %v2102
          %v2143 = vunpack.c.l.b16 %v2103
          %v2144 = vunpack.c.l.b16 %v2104
          %v2145 = vunpack.c.l.b16 %v2105
          %v2146 = vunpack.c.l.b16 %v2106
          %v2147 = vunpack.c.l.b16 %v2107
          %v2148 = vunpack.c.l.b16 %v2108
          %v2149 = vunpack.c.l.b16 %v2109
          %v2150 = vunpack.c.l.b16 %v2110
          %v2151 = vunpack.c.l.b16 %v2111
          %v2152 = vunpack.c.l.b16 %v2112
          %v2153 = vunpack.c.l.b16 %v2113
          %v2154 = vunpack.c.l.b16 %v2114
          %v2155 = vunpack.c.l.b16 %v2115
          %v2156 = vunpack.c.l.b16 %v2116
          %v2157 = vunpack.c.l.b16 %v2117
          %v2158 = vpack.c.b16 %v2143, %v2142
          %v2159 = vpack.c.b16 %v2145, %v2144
          %v2160 = vpack.c.b16 %v2147, %v2146
          %v2161 = vpack.c.b16 %v2149, %v2148
          %v2162 = vpack.c.b16 %v2151, %v2150
          %v2163 = vpack.c.b16 %v2153, %v2152
          %v2164 = vpack.c.b16 %v2155, %v2154
          %v2165 = vpack.c.b16 %v2157, %v2156
          %2174 = vmatprep.subr.bf16.mxu0 0
          %2175 = vmatpush1.bf16.msra.mxu0 %v2165
          %2176 = vmatprep.subr.bf16.mxu0 0
          %2177 = vmatpush1.bf16.msra.mxu0 %v2164
          %2178 = vmatprep.subr.bf16.mxu0 0
          %2179 = vmatpush1.bf16.msra.mxu0 %v2163
          %2180 = vmatprep.subr.bf16.mxu0 0
          %2181 = vmatpush1.bf16.msra.mxu0 %v2162
          %2182 = vmatprep.subr.bf16.mxu0 0
          %2183 = vmatpush1.bf16.msra.mxu0 %v2161
          %2184 = vmatprep.subr.bf16.mxu0 0
          %2185 = vmatpush1.bf16.msra.mxu0 %v2160
          %2186 = vmatprep.subr.bf16.mxu0 0
          %2187 = vmatpush1.bf16.msra.mxu0 %v2159
          %2188 = vmatprep.subr.bf16.mxu0 0
          %2189 = vmatpush1.bf16.msra.mxu0 %v2158
          %2190 = vmatprep.subr.bf16.mxu0 0
          %2191 = vmatpush2.bf16.msra.mxu0 0
          %2192 = vmatprep.subr.bf16.mxu0 0
          %2193 = vmatpush2.bf16.msra.mxu0 0
          %2194 = vmatprep.subr.bf16.mxu0 0
          %2195 = vmatpush2.bf16.msra.mxu0 0
          %2196 = vmatprep.subr.bf16.mxu0 0
          %2197 = vmatpush2.bf16.msra.mxu0 0
          %2198 = vmatprep.subr.bf16.mxu0 0
          %2199 = vmatpush2.bf16.msra.mxu0 0
          %2200 = vmatprep.subr.bf16.mxu0 0
          %2201 = vmatpush2.bf16.msra.mxu0 0
          %2202 = vmatprep.subr.bf16.mxu0 0
          %2203 = vmatpush2.bf16.msra.mxu0 0
          %2204 = vmatprep.subr.bf16.mxu0 0
          %2205 = vmatpush2.bf16.msra.mxu0 0
          %2206 = vmatprep.mubr.bf16.mxu0 0
          %2207 = vmatmul.mubr.bf16.gmra.mxu0 %v2093
          %v2208 = vpop.f32.mrf.mxu0
          %v2209 = vadd.f32 %v2124, %v2208
          %v2210 = vpop.f32.mrf.mxu0
          %v2211 = vpop.f32.mrf.mxu0
          %v2212 = vadd.f32 %v2124, %v2211
          %v2213 = vpop.f32.mrf.mxu0
          %2214 = vmatprep.mubr.bf16.mxu0 0
          %2215 = vmatmul.mubr.bf16.gmra.mxu0 %v2094
          %v2216 = vpop.f32.mrf.mxu0
          %v2217 = vadd.f32 %v2124, %v2216
          %v2218 = vpop.f32.mrf.mxu0
          %v2219 = vpop.f32.mrf.mxu0
          %v2220 = vadd.f32 %v2124, %v2219
          %v2221 = vpop.f32.mrf.mxu0
          %2222 = vmatprep.mubr.bf16.mxu0 0
          %2223 = vmatmul.mubr.bf16.gmra.mxu0 %v2095
          %v2224 = vpop.f32.mrf.mxu0
          %v2225 = vadd.f32 %v2124, %v2224
          %v2226 = vpop.f32.mrf.mxu0
          %v2227 = vpop.f32.mrf.mxu0
          %v2228 = vadd.f32 %v2124, %v2227
          %v2229 = vpop.f32.mrf.mxu0
          %2230 = vmatprep.mubr.bf16.mxu0 0
          %2231 = vmatmul.mubr.bf16.gmra.mxu0 %v2096
          %v2232 = vpop.f32.mrf.mxu0
          %v2233 = vadd.f32 %v2124, %v2232
          %v2234 = vpop.f32.mrf.mxu0
          %v2235 = vpop.f32.mrf.mxu0
          %v2236 = vadd.f32 %v2124, %v2235
          %v2237 = vpop.f32.mrf.mxu0
          %2238 = vmatprep.mubr.bf16.mxu0 0
          %2239 = vmatmul.mubr.bf16.gmra.mxu0 %v2097
          %v2240 = vpop.f32.mrf.mxu0
          %v2241 = vadd.f32 %v2124, %v2240
          %v2242 = vpop.f32.mrf.mxu0
          %v2243 = vpop.f32.mrf.mxu0
          %v2244 = vadd.f32 %v2124, %v2243
          %v2245 = vpop.f32.mrf.mxu0
          %2246 = vmatprep.mubr.bf16.mxu0 0
          %2247 = vmatmul.mubr.bf16.gmra.mxu0 %v2098
          %v2248 = vpop.f32.mrf.mxu0
          %v2249 = vadd.f32 %v2124, %v2248
          %v2250 = vpop.f32.mrf.mxu0
          %v2251 = vpop.f32.mrf.mxu0
          %v2252 = vadd.f32 %v2124, %v2251
          %v2253 = vpop.f32.mrf.mxu0
          %2254 = vmatprep.mubr.bf16.mxu0 0
          %2255 = vmatmul.mubr.bf16.gmra.mxu0 %v2099
          %v2256 = vpop.f32.mrf.mxu0
          %v2257 = vadd.f32 %v2124, %v2256
          %v2258 = vpop.f32.mrf.mxu0
          %v2259 = vpop.f32.mrf.mxu0
          %v2260 = vadd.f32 %v2124, %v2259
          %v2261 = vpop.f32.mrf.mxu0
          %2262 = vmatprep.mubr.bf16.mxu0 0
          %2263 = vmatmul.mubr.bf16.gmra.mxu0 %v2100
          %v2264 = vpop.f32.mrf.mxu0
          %v2265 = vadd.f32 %v2124, %v2264
          %v2266 = vpop.f32.mrf.mxu0
          %v2267 = vpop.f32.mrf.mxu0
          %v2268 = vadd.f32 %v2124, %v2267
          %v2269 = vpop.f32.mrf.mxu0
          %2270 = vdwg.mxu0
          %2271 = vst [vmem:[#allocation13] sm:$0xff] %v2209
          %2272 = vst [vmem:[#allocation13 + $0x8] sm:$0xff] %v2212
          %2273 = vst [vmem:[#allocation13 + $0x10] sm:$0xff] %v2217
          %2274 = vst [vmem:[#allocation13 + $0x18] sm:$0xff] %v2220
          %2275 = vst [vmem:[#allocation13 + $0x20] sm:$0xff] %v2225
          %2276 = vst [vmem:[#allocation13 + $0x28] sm:$0xff] %v2228
          %2277 = vst [vmem:[#allocation13 + $0x30] sm:$0xff] %v2233
          %2278 = vst [vmem:[#allocation13 + $0x38] sm:$0xff] %v2236
          %2279 = vst [vmem:[#allocation13 + $0x40] sm:$0xff] %v2241
          %2280 = vst [vmem:[#allocation13 + $0x48] sm:$0xff] %v2244
          %2281 = vst [vmem:[#allocation13 + $0x50] sm:$0xff] %v2249
          %2282 = vst [vmem:[#allocation13 + $0x58] sm:$0xff] %v2252
          %2283 = vst [vmem:[#allocation13 + $0x60] sm:$0xff] %v2257
          %2284 = vst [vmem:[#allocation13 + $0x68] sm:$0xff] %v2260
          %2285 = vst [vmem:[#allocation13 + $0x70] sm:$0xff] %v2265
          %2286 = vst [vmem:[#allocation13 + $0x78] sm:$0xff] %v2268
        $region76: #{tpu_custom_call.1} parent=47 // pred_fallthru
          _
        // Predicated region
        $region77: #{tpu_custom_call.1} parent=47 // pred_check
          %p2287 = pneg %p190
        $region78: #{tpu_custom_call.1} parent=47 // pred_check_branch
          %2289 = sbr.rel (%p2287) target = $region80
        $region79: #{tpu_custom_call.1} parent=47 // pred_region
          %s2291 = ssub.s32 2048, 2048
          %2292 = vsyncadd [#allocation5], %s2291
          %s2293 = sshll.u32 [#allocation13], 4
          %s2294 = int_to_ptr.vmem [resolvable:$true] %s2293
          %2299 = dma.vmem_to_hbm [thread:$0]  %s2294, 2048, %s7, [#allocation5], 128, 128, 8
        $region80: #{tpu_custom_call.1} parent=47 // pred_fallthru
          _
        // Predicated region
        $region81: #{tpu_custom_call.1} parent=47 // pred_check
          %p2300 = pneg %p190
        $region82: #{tpu_custom_call.1} parent=47 // pred_check_branch
          %2302 = sbr.rel (%p2300) target = $region84
        $region83: #{tpu_custom_call.1} parent=47 // pred_region
          %2303 = dma.done [#allocation5], 2048
        $region84: #{tpu_custom_call.1} parent=47 // pred_fallthru
          _
      $region48: #{tpu_custom_call.1} parent=5 // pred_fallthru
        _
      %p2304 = scmp.le.s32.totalorder 2, %s20
      // Predicated region
      $region85: #{tpu_custom_call.1} parent=5 // pred_check
        %p2305 = pneg %p2304
      $region86: #{tpu_custom_call.1} parent=5 // pred_check_branch
        %2307 = sbr.rel (%p2305) target = $region88
      $region87: #{tpu_custom_call.1} parent=5 // pred_region
        %s2308 = ssub.s32 %s20, 2
      $region88: #{tpu_custom_call.1} parent=5 // pred_fallthru
        _
    $region6: #{tpu_custom_call.1} parent=1 // loop_footer
      %s24 = sadd.s32 1, %s20
    $region7: #{tpu_custom_call.1} parent=1 // loop_footer_branch
      %19 = sbr.rel target = $region3
    $region8: #{tpu_custom_call.1} parent=1 // loop_exit
      _
    %2309 = vsyncpa [#allocation4], 1
    %s2310 = scalar_lea.sflag [#allocation4], 1
    %2311 = vsyncpa %s2310, 1
    %2312 = vsyncpa [#allocation9], 1
    %2313 = vsyncpa [#allocation12], 1
    %2314 = vsyncpa [#allocation5], 1
    %s2315 = scalar_lea.sflag [#allocation5], 1
    %2316 = vsyncpa %s2315, 1
    %2317 = vsyncpa [#allocation6], 1
    %s2318 = scalar_lea.sflag [#allocation6], 1
    %2319 = vsyncpa %s2318, 1

</llo_original>
